<compile_context>
chip_gen: v7x
topology: tpu7x:2x2x1
jax: 0.10.0
libtpu: 0.0.40
codegen_flags: <defaults>
</compile_context>

<pallas_src>
import functools
import math

import jax
import jax.numpy as jnp
from jax.experimental import pallas as pl
from jax.experimental.pallas import tpu as pltpu


def _default_vmem_limit():
    # Generation-aware scoped-VMEM budget: ~70% of physical (v5e/v6e: 128 MiB -> ~89 MiB,
    # v7x: 64 MiB -> ~44 MiB).  Conservative 48 MiB fallback if the query fails.
    try:
        info = pltpu.get_tpu_info()
        phys = (getattr(info, "vmem_capacity_bytes", None)
                or getattr(info, "vmem_size_bytes", None))
        if phys:
            return max(32 * 1024 * 1024, min(96 * 1024 * 1024, int(phys) * 7 // 10))
    except Exception:
        pass
    return 48 * 1024 * 1024


_VMEM_LIMIT = _default_vmem_limit()


def _round_up(x, m):
    return (x + m - 1) // m * m


def _pick_tile(d, cap, align):
    """Largest tile <= cap that is a multiple of `align` and divides d; else full d."""
    if d <= cap or d % align != 0:
        return d
    t = cap - (cap % align)
    while d % t:
        t -= align
    return t


def _pick_tm(M, cap):
    """Row tile that minimizes padding: split M into ceil(M/cap) near-equal chunks."""
    if M <= cap:
        return _round_up(M, 8)
    n_tiles = -(-M // cap)
    return _round_up(-(-M // n_tiles), 8)


# --------------------------- fused tiled matmul kernel ---------------------------

def _matmul_kernel(*refs, act, has_ln, has_res, eps, multi_k, ln_cache):
    it = iter(refs)
    x_ref = next(it)
    if has_ln:
        g_ref = next(it)
        bln_ref = next(it)
    w_ref = next(it)
    b_ref = next(it)
    r_ref = next(it) if has_res else None
    o_ref = next(it)
    acc_ref = next(it) if multi_k else None
    xn_ref = next(it) if ln_cache else None

    if has_ln:
        def _layer_norm():
            x32 = x_ref[...].astype(jnp.float32)
            mu = jnp.mean(x32, axis=-1, keepdims=True)
            var = jnp.mean((x32 - mu) ** 2, axis=-1, keepdims=True)
            xn = (x32 - mu) * jax.lax.rsqrt(var + eps) * g_ref[...] + bln_ref[...]
            return xn.astype(jnp.bfloat16)

        if ln_cache:
            # LN over the full-K row tile is computed once (j == 0) and reused across N tiles.
            @pl.when(pl.program_id(1) == 0)
            def _():
                xn_ref[...] = _layer_norm()
            x = xn_ref[...]
        else:
            x = _layer_norm()
    else:
        x = x_ref[...].astype(jnp.bfloat16)

    part = jnp.dot(x, w_ref[...].astype(jnp.bfloat16),
                   preferred_element_type=jnp.float32)

    def _epilogue(y):
        y = y + b_ref[...]
        if act == "relu":
            y = jnp.maximum(y, 0.0)
        if has_res:
            y = y + r_ref[...].astype(jnp.float32)
        o_ref[...] = y.astype(o_ref.dtype)

    if multi_k:
        k = pl.program_id(2)

        @pl.when(k == 0)
        def _():
            acc_ref[...] = jnp.zeros_like(acc_ref)

        acc_ref[...] += part

        @pl.when(k == pl.num_programs(2) - 1)
        def _():
            _epilogue(acc_ref[...])
    else:
        # K fits in a single tile: skip the accumulator scratch entirely.
        _epilogue(part)


def linear_pallas(x, w, b, *, act=None, ln=None, residual=None, ln_eps=1e-5,
                  out_dtype=jnp.bfloat16, tm_cap=256, tn_cap=512, tk_cap=512):
    """y = (optional LN(x)) @ w + b, optional ReLU, optional (+ residual).  bf16 MXU, f32 acc."""
    lead = x.shape[:-1]
    K = x.shape[-1]
    N = w.shape[-1]
    x2 = x.reshape(-1, K)
    M = x2.shape[0]
    has_ln = ln is not None
    has_res = residual is not None

    tm = _pick_tm(M, tm_cap)
    Mp = _round_up(M, tm)
    tn = _pick_tile(N, tn_cap, 128)
    tk = K if has_ln else _pick_tile(K, tk_cap, 128)
    nk = K // tk
    multi_k = nk > 1
    ln_cache = has_ln and (N // tn > 1)

    if Mp != M:
        x2 = jnp.pad(x2, ((0, Mp - M), (0, 0)))

    inputs = [x2]
    in_specs = [pl.BlockSpec((tm, tk), lambda i, j, k: (i, k))]
    if has_ln:
        g, bln = ln
        inputs += [g.reshape(1, K), bln.reshape(1, K)]
        in_specs += [pl.BlockSpec((1, tk), lambda i, j, k: (0, k)),
                     pl.BlockSpec((1, tk), lambda i, j, k: (0, k))]
    inputs += [w, b.reshape(1, N)]
    in_specs += [pl.BlockSpec((tk, tn), lambda i, j, k: (k, j)),
                 pl.BlockSpec((1, tn), lambda i, j, k: (0, j))]
    if has_res:
        r2 = residual.reshape(-1, N)
        if Mp != M:
            r2 = jnp.pad(r2, ((0, Mp - M), (0, 0)))
        inputs.append(r2)
        in_specs.append(pl.BlockSpec((tm, tn), lambda i, j, k: (i, j)))

    scratch = []
    if multi_k:
        scratch.append(pltpu.VMEM((tm, tn), jnp.float32))
    if ln_cache:
        scratch.append(pltpu.VMEM((tm, K), jnp.bfloat16))

    out = pl.pallas_call(
        functools.partial(_matmul_kernel, act=act, has_ln=has_ln, has_res=has_res,
                          eps=ln_eps, multi_k=multi_k, ln_cache=ln_cache),
        grid=(Mp // tm, N // tn, nk),
        in_specs=in_specs,
        out_specs=pl.BlockSpec((tm, tn), lambda i, j, k: (i, j)),
        out_shape=jax.ShapeDtypeStruct((Mp, N), out_dtype),
        scratch_shapes=scratch,
        compiler_params=pltpu.CompilerParams(
            dimension_semantics=("parallel", "parallel", "arbitrary"),
            vmem_limit_bytes=_VMEM_LIMIT),
    )(*inputs)

    if Mp != M:
        out = out[:M]
    return out.reshape(lead + (N,))


# ------------------------- flash-style self-attention kernel -------------------------

def _attention_kernel(q_ref, k_ref, v_ref, m_ref, o_ref, m_sc, l_sc, acc_sc,
                      *, n_heads, dh, scale):
    kv = pl.program_id(2)

    @pl.when(kv == 0)
    def _():
        m_sc[...] = jnp.full_like(m_sc, -1e30)
        l_sc[...] = jnp.zeros_like(l_sc)
        acc_sc[...] = jnp.zeros_like(acc_sc)

    key_mask = m_ref[0]                          # (1, tkv), 1.0 = valid key frame
    q_all = q_ref[0] * scale                     # scale folded into Q (tq, D) once per step
    k_all = k_ref[0]                             # (tkv, D)
    v_all = v_ref[0]                             # (tkv, D)
    tq = q_all.shape[0]

    m_prev = m_sc[...]                           # (tq, H)
    l_prev = l_sc[...]                           # (tq, H)

    s_heads = []
    for h in range(n_heads):
        lo = h * dh
        s = jax.lax.dot_general(q_all[:, lo:lo + dh], k_all[:, lo:lo + dh],
                                (((1,), (1,)), ((), ())),
                                preferred_element_type=jnp.float32)      # (tq, tkv)
        s_heads.append(jnp.where(key_mask > 0.0, s, -1e30))

    m_blk = jnp.concatenate([jnp.max(s, axis=-1, keepdims=True) for s in s_heads],
                            axis=-1)                                     # (tq, H)
    m_new = jnp.maximum(m_prev, m_blk)
    alpha = jnp.exp(m_prev - m_new)                                      # (tq, H)

    pv_heads, ps_heads = [], []
    for h in range(n_heads):
        lo = h * dh
        p = jnp.exp(s_heads[h] - m_new[:, h:h + 1]) * key_mask           # (tq, tkv)
        ps_heads.append(jnp.sum(p, axis=-1, keepdims=True))
        pv_heads.append(jnp.dot(p.astype(jnp.bfloat16), v_all[:, lo:lo + dh],
                                preferred_element_type=jnp.float32))     # (tq, dh)

    # single lane-dense updates (no per-head masked sub-128-lane stores)
    alpha_full = jnp.concatenate(
        [jnp.broadcast_to(alpha[:, h:h + 1], (tq, dh)) for h in range(n_heads)], axis=-1)
    acc_sc[...] = alpha_full * acc_sc[...] + jnp.concatenate(pv_heads, axis=-1)
    l_sc[...] = alpha * l_prev + jnp.concatenate(ps_heads, axis=-1)
    m_sc[...] = m_new

    @pl.when(kv == pl.num_programs(2) - 1)
    def _():
        l = l_sc[...]
        inv = pl.reciprocal(jnp.where(l > 0.0, l, 1.0), approx=True)     # (tq, H)
        inv_full = jnp.concatenate(
            [jnp.broadcast_to(inv[:, h:h + 1], (tq, dh)) for h in range(n_heads)], axis=-1)
        o_ref[0, :, :] = (acc_sc[...] * inv_full).astype(o_ref.dtype)


def attention_pallas(qkv, mask, *, n_heads, d_model):
    """qkv: (B, T, 3*D) fused projection output (bf16); mask: (B, 1, T) float (1=valid).
    Heads are read in-kernel from lane-dense D blocks of the fused qkv tensor."""
    B, T, _ = qkv.shape
    dh = d_model // n_heads
    scale = 1.0 / math.sqrt(dh)

    if T <= 256:
        tq = tkv = T
        Tp = T
    else:
        tq, tkv = 128, 256
        Tp = _round_up(T, 256)

    if Tp != T:
        qkv = jnp.pad(qkv, ((0, 0), (0, Tp - T), (0, 0)))
        mask = jnp.pad(mask, ((0, 0), (0, 0), (0, Tp - T)))  # padded keys masked out

    out = pl.pallas_call(
        functools.partial(_attention_kernel, n_heads=n_heads, dh=dh, scale=scale),
        grid=(B, Tp // tq, Tp // tkv),
        in_specs=[
            # Q / K / V are different 128*k-column block views of the same fused qkv tensor.
            pl.BlockSpec((1, tq, d_model), lambda b, qi, kv: (b, qi, 0)),
            pl.BlockSpec((1, tkv, d_model), lambda b, qi, kv: (b, kv, 1)),
            pl.BlockSpec((1, tkv, d_model), lambda b, qi, kv: (b, kv, 2)),
            pl.BlockSpec((1, 1, tkv), lambda b, qi, kv: (b, 0, kv)),
        ],
        out_specs=pl.BlockSpec((1, tq, d_model), lambda b, qi, kv: (b, qi, 0)),
        out_shape=jax.ShapeDtypeStruct((B, Tp, d_model), jnp.bfloat16),
        scratch_shapes=[pltpu.VMEM((tq, n_heads), jnp.float32),   # running max per head
                        pltpu.VMEM((tq, n_heads), jnp.float32),   # running denom per head
                        pltpu.VMEM((tq, d_model), jnp.float32)],  # output accumulator
        compiler_params=pltpu.CompilerParams(
            dimension_semantics=("parallel", "parallel", "arbitrary"),
            vmem_limit_bytes=_VMEM_LIMIT),
    )(qkv, qkv, qkv, mask)

    if Tp != T:
        out = out[:, :T]
    return out


# -------- fused CTC head: after-LN + vocab-tiled linear + log_softmax + top-k --------

def _ctc_head_kernel(x_ref, g_ref, bln_ref, w_ref, cb_ref,
                     eo_ref, lp_ref, bv_ref, bi_ref,
                     xn_sc, m_sc, l_sc, *, beam, eps, nv, tv):
    j = pl.program_id(1)

    @pl.when(j == 0)
    def _():
        x32 = x_ref[...].astype(jnp.float32)
        mu = jnp.mean(x32, axis=-1, keepdims=True)
        var = jnp.mean((x32 - mu) ** 2, axis=-1, keepdims=True)
        xn = (x32 - mu) * jax.lax.rsqrt(var + eps) * g_ref[...] + bln_ref[...]
        eo_ref[...] = xn                                   # encoder_out (after_norm), f32
        xn_sc[...] = xn.astype(jnp.bfloat16)               # reused across vocab tiles
        m_sc[...] = jnp.full_like(m_sc, -1e30)
        l_sc[...] = jnp.zeros_like(l_sc)

    logits = jnp.dot(xn_sc[...], w_ref[...].astype(jnp.bfloat16),
                     preferred_element_type=jnp.float32) + cb_ref[...]   # (tm, tv)

    # online logsumexp across vocab tiles
    m_prev = m_sc[...]
    m_new = jnp.maximum(m_prev, jnp.max(logits, axis=-1, keepdims=True))
    l_sc[...] = l_sc[...] * jnp.exp(m_prev - m_new) + jnp.sum(
        jnp.exp(logits - m_new), axis=-1, keepdims=True)
    m_sc[...] = m_new

    # stash raw logits into the VMEM-resident (tm, Vp) output block (static lane offsets)
    for jj in range(nv):
        @pl.when(j == jj)
        def _(jj=jj):
            lp_ref[:, jj * tv:(jj + 1) * tv] = logits

    @pl.when(j == nv - 1)
    def _():
        lse = m_sc[...] + jnp.log(l_sc[...])                # (tm, 1)
        lp = lp_ref[...] - lse                              # (tm, Vp) log_softmax
        lp_ref[...] = lp
        # torch.topk(dim=-1): iterative max + first-occurrence argmax on the resident block.
        Vp = lp.shape[-1]
        col = jax.lax.broadcasted_iota(jnp.int32, lp.shape, 1)
        cur = lp
        vals, idxs = [], []
        for _ in range(beam):
            mx = jnp.max(cur, axis=-1, keepdims=True)
            ix = jnp.min(jnp.where(cur == mx, col, Vp), axis=-1, keepdims=True)
            vals.append(mx)
            idxs.append(ix)
            cur = jnp.where(col == ix, -jnp.inf, cur)
        bv_ref[...] = jnp.concatenate(vals, axis=-1)
        bi_ref[...] = jnp.concatenate(idxs, axis=-1).astype(jnp.int32)


def ctc_head_pallas(x, g, bln, w, b, *, beam, eps=1e-5, tm_cap=128, tv_cap=1024):
    B, T, D = x.shape
    V = w.shape[-1]
    Vp = _round_up(V, 128)
    if Vp != V:
        w = jnp.pad(w, ((0, 0), (0, Vp - V)))
        b = jnp.pad(b, ((0, Vp - V),), constant_values=-1e30)  # padded vocab never wins top-k
    tv = _pick_tile(Vp, tv_cap, 128)
    nv = Vp // tv

    x2 = x.reshape(B * T, D)
    M = B * T
    tm = _pick_tm(M, tm_cap)
    Mp = _round_up(M, tm)
    if Mp != M:
        x2 = jnp.pad(x2, ((0, Mp - M), (0, 0)))

    eo, lp, bv, bi = pl.pallas_call(
        functools.partial(_ctc_head_kernel, beam=beam, eps=eps, nv=nv, tv=tv),
        grid=(Mp // tm, nv),
        in_specs=[pl.BlockSpec((tm, D), lambda i, j: (i, 0)),
                  pl.BlockSpec((1, D), lambda i, j: (0, 0)),
                  pl.BlockSpec((1, D), lambda i, j: (0, 0)),
                  pl.BlockSpec((D, tv), lambda i, j: (0, j)),
                  pl.BlockSpec((1, tv), lambda i, j: (0, j))],
        out_specs=(pl.BlockSpec((tm, D), lambda i, j: (i, 0)),
                   pl.BlockSpec((tm, Vp), lambda i, j: (i, 0)),
                   pl.BlockSpec((tm, beam), lambda i, j: (i, 0)),
                   pl.BlockSpec((tm, beam), lambda i, j: (i, 0))),
        out_shape=(jax.ShapeDtypeStruct((Mp, D), jnp.float32),
                   jax.ShapeDtypeStruct((Mp, Vp), jnp.float32),
                   jax.ShapeDtypeStruct((Mp, beam), jnp.float32),
                   jax.ShapeDtypeStruct((Mp, beam), jnp.int32)),
        scratch_shapes=[pltpu.VMEM((tm, D), jnp.bfloat16),   # cached after-LN activations
                        pltpu.VMEM((tm, 1), jnp.float32),    # running max
                        pltpu.VMEM((tm, 1), jnp.float32)],   # running sum-exp
        compiler_params=pltpu.CompilerParams(
            dimension_semantics=("parallel", "arbitrary"),
            vmem_limit_bytes=_VMEM_LIMIT),
    )(x2, g.reshape(1, D), bln.reshape(1, D), w, b.reshape(1, Vp))

    eo, lp, bv, bi = eo[:M], lp[:M, :V], bv[:M], bi[:M]
    return (eo.reshape(B, T, D), lp.reshape(B, T, V),
            bv.reshape(B, T, beam), bi.reshape(B, T, beam))


# ------------------------------- glue / model ------------------------------

def im2col(x, kh=3, kw=3, sh=2, sw=2):
    # TODO(synk): replace im2col glue with a fused strided-read Pallas conv kernel
    # for long utterances (front-end runs once; low priority).
    # x: (B, C, H, W) NCHW -> patches (B, Ho, Wo, C*kh*kw), C outer / kernel inner
    B, C, H, W = x.shape
    Ho = (H - kh) // sh + 1
    Wo = (W - kw) // sw + 1
    cols = []
    for i in range(kh):
        for j in range(kw):
            cols.append(x[:, :, i:i + sh * Ho:sh, j:j + sw * Wo:sw])  # (B,C,Ho,Wo)
    patches = jnp.stack(cols, axis=2)             # (B, C, kh*kw, Ho, Wo)
    patches = patches.transpose(0, 3, 4, 1, 2)    # (B, Ho, Wo, C, kh*kw)
    return patches.reshape(B, Ho, Wo, C * kh * kw)


def init_params(key, *, feat_dim, d_model, n_layers, ffn_dim, vocab, conv_ch):
    keys = jax.random.split(key, 8 + 16 * n_layers)
    it = iter(range(len(keys)))

    def w(shape, scale):
        # weights pre-cast to bf16 once (MXU operands); biases / LN params stay f32
        return (jax.random.normal(keys[next(it)], shape, jnp.float32) * scale
                ).astype(jnp.bfloat16)

    F1 = (feat_dim - 1) // 2
    F2 = (F1 - 1) // 2
    p = {
        "conv1_w": w((1 * 9, conv_ch), 0.3),
        "conv1_b": jnp.zeros((conv_ch,), jnp.float32),
        "conv2_w": w((conv_ch * 9, conv_ch), 0.1),
        "conv2_b": jnp.zeros((conv_ch,), jnp.float32),
        "sub_lin_w": w((conv_ch * F2, d_model), 0.1),
        "sub_lin_b": jnp.zeros((d_model,), jnp.float32),
        "after_ln_g": jnp.ones((d_model,), jnp.float32),
        "after_ln_b": jnp.zeros((d_model,), jnp.float32),
        "ctc_w": w((d_model, vocab), 0.1),
        "ctc_b": jnp.zeros((vocab,), jnp.float32),
        "layers": [],
    }
    for _ in range(n_layers):
        wq = w((d_model, d_model), 0.1)
        wk = w((d_model, d_model), 0.1)
        wv = w((d_model, d_model), 0.1)
        p["layers"].append({
            "ln1_g": jnp.ones((d_model,), jnp.float32),
            "ln1_b": jnp.zeros((d_model,), jnp.float32),
            "wqkv": jnp.concatenate([wq, wk, wv], axis=1),      # (D, 3D), fused QKV
            "bqkv": jnp.zeros((3 * d_model,), jnp.float32),
            "wo": w((d_model, d_model), 0.1), "bo": jnp.zeros((d_model,), jnp.float32),
            "ln2_g": jnp.ones((d_model,), jnp.float32),
            "ln2_b": jnp.zeros((d_model,), jnp.float32),
            "w1": w((d_model, ffn_dim), 0.1), "b1": jnp.zeros((ffn_dim,), jnp.float32),
            "w2": w((ffn_dim, d_model), 0.1), "b2": jnp.zeros((d_model,), jnp.float32),
        })
    return p


def encoder_forward(speech, speech_lengths, params, *, n_heads, beam_size, ln_eps=1e-5):
    """Replicates wenet Encoder.forward (encoder + CTC log_softmax + topk)."""
    B, T, _ = speech.shape
    d_model = params["sub_lin_w"].shape[1]
    conv_ch = params["conv1_w"].shape[1]

    # ---- Conv2dSubsampling4: two stride-2 3x3 convs (im2col + tiled matmul+ReLU) ----
    x = speech[:, None, :, :]                                   # (B,1,T,F) NCHW
    p1 = im2col(x)                                              # (B,T1,F1,9)
    h1 = linear_pallas(p1, params["conv1_w"], params["conv1_b"], act="relu")
    x = h1.transpose(0, 3, 1, 2)                                # (B,C,T1,F1)
    p2 = im2col(x)                                              # (B,T2,F2,C*9)
    T2, F2 = p2.shape[1], p2.shape[2]
    h2 = linear_pallas(p2, params["conv2_w"], params["conv2_b"], act="relu")
    x = h2.transpose(0, 1, 3, 2).reshape(B, T2, conv_ch * F2)   # (B,T2,C*F2)
    x = linear_pallas(x, params["sub_lin_w"], params["sub_lin_b"])

    # sinusoidal positional encoding (wenet: x * sqrt(d_model) + pe); bf16 residual stream
    pos = jnp.arange(T2, dtype=jnp.float32)[:, None]
    div = jnp.exp(jnp.arange(0, d_model, 2, dtype=jnp.float32)
                  * (-math.log(10000.0) / d_model))
    pe = jnp.zeros((T2, d_model), jnp.float32)
    pe = pe.at[:, 0::2].set(jnp.sin(pos * div))
    pe = pe.at[:, 1::2].set(jnp.cos(pos * div))
    x = (x.astype(jnp.float32) * math.sqrt(d_model) + pe[None]).astype(jnp.bfloat16)

    # ---- padding mask, subsampled like wenet x_mask[:, :, 2::2][:, :, 2::2] ----
    full_mask = jnp.arange(T)[None, :] < speech_lengths[:, None]        # (B,T) bool
    sub_mask = full_mask[:, 2::2][:, 2::2]                              # (B,T2) bool
    mask_f = sub_mask.astype(jnp.float32)[:, None, :]                   # (B,1,T2)
    encoder_out_lens = jnp.sum(sub_mask, axis=1).astype(jnp.int32)      # .int()

    # ---- pre-norm Transformer encoder layers (bf16 activation stream) ----
    for l in params["layers"]:
        # fused: LN1 + QKV projection in one tiled matmul
        qkv = linear_pallas(x, l["wqkv"], l["bqkv"],
                            ln=(l["ln1_g"], l["ln1_b"]), ln_eps=ln_eps)  # (B,T2,3D) bf16
        ao = attention_pallas(qkv, mask_f, n_heads=n_heads, d_model=d_model)
        # fused: output projection + residual add
        x = linear_pallas(ao, l["wo"], l["bo"], residual=x)
        # fused: LN2 + FFN-1 + ReLU, then FFN-2 + residual add
        ff = linear_pallas(x, l["w1"], l["b1"], act="relu",
                           ln=(l["ln2_g"], l["ln2_b"]), ln_eps=ln_eps)
        x = linear_pallas(ff, l["w2"], l["b2"], residual=x)

    # ---- fused: after-norm + vocab-tiled CTC linear + log_softmax + topk(beam_size) ----
    encoder_out, ctc_log_probs, beam_log_probs, beam_log_probs_idx = ctc_head_pallas(
        x, params["after_ln_g"], params["after_ln_b"],
        params["ctc_w"], params["ctc_b"], beam=beam_size, eps=ln_eps)

    return (encoder_out, encoder_out_lens, ctc_log_probs,
            beam_log_probs, beam_log_probs_idx)


if __name__ == "__main__":
    key = jax.random.PRNGKey(0)
    B, T, FEAT = 2, 32, 16
    D_MODEL, N_HEADS, N_LAYERS, FFN, VOCAB, CONV_CH, BEAM = 128, 4, 2, 256, 256, 8, 10

    pkey, skey = jax.random.split(key)
    params = init_params(pkey, feat_dim=FEAT, d_model=D_MODEL, n_layers=N_LAYERS,
                         ffn_dim=FFN, vocab=VOCAB, conv_ch=CONV_CH)
    speech = jax.random.normal(skey, (B, T, FEAT), jnp.float32)
    speech_lengths = jnp.array([32, 25], jnp.int32)

    fwd = jax.jit(functools.partial(encoder_forward, n_heads=N_HEADS, beam_size=BEAM))
    outs = fwd(speech, speech_lengths, params)
    outs = jax.block_until_ready(outs)
    # encoder_out (B,T',D), encoder_out_lens (B,), ctc_log_probs (B,T',V),
    # beam_log_probs / beam_log_probs_idx (B,T',beam)
    print("KERNEL_OK")
</pallas_src>

<mosaic_0001>
module attributes {stable_mosaic.version = 11 : i64} {
  func.func @_matmul_kernel(%arg0: i32, %arg1: i32, %arg2: i32, %arg3: memref<216x9xf32, #tpu.memory_space<vmem>>, %arg4: memref<9x8xbf16, #tpu.memory_space<vmem>>, %arg5: memref<1x8xf32, #tpu.memory_space<vmem>>, %arg6: memref<216x8xbf16, #tpu.memory_space<vmem>>) attributes {dimension_semantics = [#tpu.dimension_semantics<parallel>, #tpu.dimension_semantics<parallel>, #tpu.dimension_semantics<arbitrary>], iteration_bounds = array<i64: 1, 1, 1>, scalar_prefetch = 0 : i64, scratch_operands = 0 : i64, tpu.core_type = #tpu.core_type<tc>, window_params = [{transform_indices = @transform_0, window_bounds = array<i64: 216, 9>}, {transform_indices = @transform_1, window_bounds = array<i64: 9, 8>}, {transform_indices = @transform_2, window_bounds = array<i64: 1, 8>}, {transform_indices = @transform_3, window_bounds = array<i64: 216, 8>}]} {
    %c0 = arith.constant 0 : index
    %c0_0 = arith.constant 0 : index
    %0 = vector.load %arg3[%c0, %c0_0] : memref<216x9xf32, #tpu.memory_space<vmem>>, vector<216x9xf32>
    %1 = arith.truncf %0 : vector<216x9xf32> to vector<216x9xbf16>
    %c0_1 = arith.constant 0 : index
    %c0_2 = arith.constant 0 : index
    %2 = vector.load %arg4[%c0_1, %c0_2] : memref<9x8xbf16, #tpu.memory_space<vmem>>, vector<9x8xbf16>
    %cst = arith.constant dense<0.000000e+00> : vector<216x8xf32>
    %3 = tpu.matmul %1, %2, %cst {dimension_numbers = #tpu.dot_dimension_numbers<[1], [0], [0], [1], [0, 0, 1, 1], [], []>} : vector<216x9xbf16>, vector<9x8xbf16>, vector<216x8xf32> -> vector<216x8xf32>
    %c0_3 = arith.constant 0 : index
    %c0_4 = arith.constant 0 : index
    %4 = vector.load %arg5[%c0_3, %c0_4] : memref<1x8xf32, #tpu.memory_space<vmem>>, vector<1x8xf32>
    %5 = vector.broadcast %4 : vector<1x8xf32> to vector<216x8xf32>
    %6 = arith.addf %3, %5 : vector<216x8xf32>
    %cst_5 = arith.constant 0.000000e+00 : f32
    %7 = vector.broadcast %cst_5 : f32 to vector<216x8xf32>
    %8 = arith.maximumf %6, %7 : vector<216x8xf32>
    %9 = arith.truncf %8 : vector<216x8xf32> to vector<216x8xbf16>
    %c0_6 = arith.constant 0 : index
    %c0_7 = arith.constant 0 : index
    %10 = vector.load %arg6[%c0_6, %c0_7] : memref<216x8xbf16, #tpu.memory_space<vmem>>, vector<216x8xbf16>
    tpu.vector_store %arg6[%c0_6, %c0_7], %9 {strides = array<i32>} : memref<216x8xbf16, #tpu.memory_space<vmem>>, vector<216x8xbf16>,
    return
  }
  func.func @transform_0(%arg0: i32, %arg1: i32, %arg2: i32) -> (i32, i32) {
    %c0_i32 = arith.constant 0 : i32
    return %arg0, %arg2 : i32, i32
  }
  func.func @transform_1(%arg0: i32, %arg1: i32, %arg2: i32) -> (i32, i32) {
    %c0_i32 = arith.constant 0 : i32
    return %arg2, %arg1 : i32, i32
  }
  func.func @transform_2(%arg0: i32, %arg1: i32, %arg2: i32) -> (i32, i32) {
    %c0_i32 = arith.constant 0 : i32
    %c0_i32_0 = arith.constant 0 : i32
    return %c0_i32, %arg1 : i32, i32
  }
  func.func @transform_3(%arg0: i32, %arg1: i32, %arg2: i32) -> (i32, i32) {
    %c0_i32 = arith.constant 0 : i32
    return %arg0, %arg1 : i32, i32
  }
}

module attributes {stable_mosaic.version = 11 : i64} {
  func.func @_matmul_kernel(%arg0: i32, %arg1: i32, %arg2: i32, %arg3: memref<48x72xbf16, #tpu.memory_space<vmem>>, %arg4: memref<72x8xbf16, #tpu.memory_space<vmem>>, %arg5: memref<1x8xf32, #tpu.memory_space<vmem>>, %arg6: memref<48x8xbf16, #tpu.memory_space<vmem>>) attributes {dimension_semantics = [#tpu.dimension_semantics<parallel>, #tpu.dimension_semantics<parallel>, #tpu.dimension_semantics<arbitrary>], iteration_bounds = array<i64: 1, 1, 1>, scalar_prefetch = 0 : i64, scratch_operands = 0 : i64, tpu.core_type = #tpu.core_type<tc>, window_params = [{transform_indices = @transform_0, window_bounds = array<i64: 48, 72>}, {transform_indices = @transform_1, window_bounds = array<i64: 72, 8>}, {transform_indices = @transform_2, window_bounds = array<i64: 1, 8>}, {transform_indices = @transform_3, window_bounds = array<i64: 48, 8>}]} {
    %c0 = arith.constant 0 : index
    %c0_0 = arith.constant 0 : index
    %0 = vector.load %arg3[%c0, %c0_0] : memref<48x72xbf16, #tpu.memory_space<vmem>>, vector<48x72xbf16>
    %c0_1 = arith.constant 0 : index
    %c0_2 = arith.constant 0 : index
    %1 = vector.load %arg4[%c0_1, %c0_2] : memref<72x8xbf16, #tpu.memory_space<vmem>>, vector<72x8xbf16>
    %cst = arith.constant dense<0.000000e+00> : vector<48x8xf32>
    %2 = tpu.matmul %0, %1, %cst {dimension_numbers = #tpu.dot_dimension_numbers<[1], [0], [0], [1], [0, 0, 1, 1], [], []>} : vector<48x72xbf16>, vector<72x8xbf16>, vector<48x8xf32> -> vector<48x8xf32>
    %c0_3 = arith.constant 0 : index
    %c0_4 = arith.constant 0 : index
    %3 = vector.load %arg5[%c0_3, %c0_4] : memref<1x8xf32, #tpu.memory_space<vmem>>, vector<1x8xf32>
    %4 = vector.broadcast %3 : vector<1x8xf32> to vector<48x8xf32>
    %5 = arith.addf %2, %4 : vector<48x8xf32>
    %cst_5 = arith.constant 0.000000e+00 : f32
    %6 = vector.broadcast %cst_5 : f32 to vector<48x8xf32>
    %7 = arith.maximumf %5, %6 : vector<48x8xf32>
    %8 = arith.truncf %7 : vector<48x8xf32> to vector<48x8xbf16>
    %c0_6 = arith.constant 0 : index
    %c0_7 = arith.constant 0 : index
    %9 = vector.load %arg6[%c0_6, %c0_7] : memref<48x8xbf16, #tpu.memory_space<vmem>>, vector<48x8xbf16>
    tpu.vector_store %arg6[%c0_6, %c0_7], %8 {strides = array<i32>} : memref<48x8xbf16, #tpu.memory_space<vmem>>, vector<48x8xbf16>,
    return
  }
  func.func @transform_0(%arg0: i32, %arg1: i32, %arg2: i32) -> (i32, i32) {
    %c0_i32 = arith.constant 0 : i32
    return %arg0, %arg2 : i32, i32
  }
  func.func @transform_1(%arg0: i32, %arg1: i32, %arg2: i32) -> (i32, i32) {
    %c0_i32 = arith.constant 0 : i32
    return %arg2, %arg1 : i32, i32
  }
  func.func @transform_2(%arg0: i32, %arg1: i32, %arg2: i32) -> (i32, i32) {
    %c0_i32 = arith.constant 0 : i32
    %c0_i32_0 = arith.constant 0 : i32
    return %c0_i32, %arg1 : i32, i32
  }
  func.func @transform_3(%arg0: i32, %arg1: i32, %arg2: i32) -> (i32, i32) {
    %c0_i32 = arith.constant 0 : i32
    return %arg0, %arg1 : i32, i32
  }
}

module attributes {stable_mosaic.version = 11 : i64} {
  func.func @_matmul_kernel(%arg0: i32, %arg1: i32, %arg2: i32, %arg3: memref<16x24xbf16, #tpu.memory_space<vmem>>, %arg4: memref<24x128xbf16, #tpu.memory_space<vmem>>, %arg5: memref<1x128xf32, #tpu.memory_space<vmem>>, %arg6: memref<16x128xbf16, #tpu.memory_space<vmem>>) attributes {dimension_semantics = [#tpu.dimension_semantics<parallel>, #tpu.dimension_semantics<parallel>, #tpu.dimension_semantics<arbitrary>], iteration_bounds = array<i64: 1, 1, 1>, scalar_prefetch = 0 : i64, scratch_operands = 0 : i64, tpu.core_type = #tpu.core_type<tc>, window_params = [{transform_indices = @transform_0, window_bounds = array<i64: 16, 24>}, {transform_indices = @transform_1, window_bounds = array<i64: 24, 128>}, {transform_indices = @transform_2, window_bounds = array<i64: 1, 128>}, {transform_indices = @transform_3, window_bounds = array<i64: 16, 128>}]} {
    %c0 = arith.constant 0 : index
    %c0_0 = arith.constant 0 : index
    %0 = vector.load %arg3[%c0, %c0_0] : memref<16x24xbf16, #tpu.memory_space<vmem>>, vector<16x24xbf16>
    %c0_1 = arith.constant 0 : index
    %c0_2 = arith.constant 0 : index
    %1 = vector.load %arg4[%c0_1, %c0_2] : memref<24x128xbf16, #tpu.memory_space<vmem>>, vector<24x128xbf16>
    %cst = arith.constant dense<0.000000e+00> : vector<16x128xf32>
    %2 = tpu.matmul %0, %1, %cst {dimension_numbers = #tpu.dot_dimension_numbers<[1], [0], [0], [1], [0, 0, 1, 1], [], []>} : vector<16x24xbf16>, vector<24x128xbf16>, vector<16x128xf32> -> vector<16x128xf32>
    %c0_3 = arith.constant 0 : index
    %c0_4 = arith.constant 0 : index
    %3 = vector.load %arg5[%c0_3, %c0_4] : memref<1x128xf32, #tpu.memory_space<vmem>>, vector<1x128xf32>
    %4 = vector.broadcast %3 : vector<1x128xf32> to vector<16x128xf32>
    %5 = arith.addf %2, %4 : vector<16x128xf32>
    %6 = arith.truncf %5 : vector<16x128xf32> to vector<16x128xbf16>
    %c0_5 = arith.constant 0 : index
    %c0_6 = arith.constant 0 : index
    %7 = vector.load %arg6[%c0_5, %c0_6] : memref<16x128xbf16, #tpu.memory_space<vmem>>, vector<16x128xbf16>
    tpu.vector_store %arg6[%c0_5, %c0_6], %6 {strides = array<i32>} : memref<16x128xbf16, #tpu.memory_space<vmem>>, vector<16x128xbf16>,
    return
  }
  func.func @transform_0(%arg0: i32, %arg1: i32, %arg2: i32) -> (i32, i32) {
    %c0_i32 = arith.constant 0 : i32
    return %arg0, %arg2 : i32, i32
  }
  func.func @transform_1(%arg0: i32, %arg1: i32, %arg2: i32) -> (i32, i32) {
    %c0_i32 = arith.constant 0 : i32
    return %arg2, %arg1 : i32, i32
  }
  func.func @transform_2(%arg0: i32, %arg1: i32, %arg2: i32) -> (i32, i32) {
    %c0_i32 = arith.constant 0 : i32
    %c0_i32_0 = arith.constant 0 : i32
    return %c0_i32, %arg1 : i32, i32
  }
  func.func @transform_3(%arg0: i32, %arg1: i32, %arg2: i32) -> (i32, i32) {
    %c0_i32 = arith.constant 0 : i32
    return %arg0, %arg1 : i32, i32
  }
}

module attributes {stable_mosaic.version = 11 : i64} {
  func.func @_matmul_kernel(%arg0: i32, %arg1: i32, %arg2: i32, %arg3: memref<16x128xbf16, #tpu.memory_space<vmem>>, %arg4: memref<1x128xf32, #tpu.memory_space<vmem>>, %arg5: memref<1x128xf32, #tpu.memory_space<vmem>>, %arg6: memref<128x384xbf16, #tpu.memory_space<vmem>>, %arg7: memref<1x384xf32, #tpu.memory_space<vmem>>, %arg8: memref<16x384xbf16, #tpu.memory_space<vmem>>) attributes {dimension_semantics = [#tpu.dimension_semantics<parallel>, #tpu.dimension_semantics<parallel>, #tpu.dimension_semantics<arbitrary>], iteration_bounds = array<i64: 1, 1, 1>, scalar_prefetch = 0 : i64, scratch_operands = 0 : i64, tpu.core_type = #tpu.core_type<tc>, window_params = [{transform_indices = @transform_0, window_bounds = array<i64: 16, 128>}, {transform_indices = @transform_1, window_bounds = array<i64: 1, 128>}, {transform_indices = @transform_2, window_bounds = array<i64: 1, 128>}, {transform_indices = @transform_3, window_bounds = array<i64: 128, 384>}, {transform_indices = @transform_4, window_bounds = array<i64: 1, 384>}, {transform_indices = @transform_5, window_bounds = array<i64: 16, 384>}]} {
    %c0 = arith.constant 0 : index
    %c0_0 = arith.constant 0 : index
    %0 = vector.load %arg3[%c0, %c0_0] : memref<16x128xbf16, #tpu.memory_space<vmem>>, vector<16x128xbf16>
    %1 = arith.extf %0 : vector<16x128xbf16> to vector<16x128xf32>
    %cst = arith.constant dense<0.000000e+00> : vector<16xf32>
    %2 = vector.multi_reduction <add>, %1, %cst [1] : vector<16x128xf32> to vector<16xf32>
    %3 = vector.shape_cast %2 : vector<16xf32> to vector<16x1xf32>
    %cst_1 = arith.constant 1.280000e+02 : f32
    %4 = vector.broadcast %cst_1 : f32 to vector<16x1xf32>
    %5 = arith.divf %3, %4 : vector<16x1xf32>
    %6 = vector.broadcast %5 : vector<16x1xf32> to vector<16x128xf32>
    %7 = arith.subf %1, %6 : vector<16x128xf32>
    %8 = arith.mulf %7, %7 : vector<16x128xf32>
    %cst_2 = arith.constant dense<0.000000e+00> : vector<16xf32>
    %9 = vector.multi_reduction <add>, %8, %cst_2 [1] : vector<16x128xf32> to vector<16xf32>
    %10 = vector.shape_cast %9 : vector<16xf32> to vector<16x1xf32>
    %cst_3 = arith.constant 1.280000e+02 : f32
    %11 = vector.broadcast %cst_3 : f32 to vector<16x1xf32>
    %12 = arith.divf %10, %11 : vector<16x1xf32>
    %13 = vector.broadcast %5 : vector<16x1xf32> to vector<16x128xf32>
    %14 = arith.subf %1, %13 : vector<16x128xf32>
    %cst_4 = arith.constant 9.99999974E-6 : f32
    %15 = vector.broadcast %cst_4 : f32 to vector<16x1xf32>
    %16 = arith.addf %12, %15 : vector<16x1xf32>
    %17 = math.rsqrt %16 : vector<16x1xf32>
    %18 = vector.broadcast %17 : vector<16x1xf32> to vector<16x128xf32>
    %19 = arith.mulf %14, %18 : vector<16x128xf32>
    %c0_5 = arith.constant 0 : index
    %c0_6 = arith.constant 0 : index
    %20 = vector.load %arg4[%c0_5, %c0_6] : memref<1x128xf32, #tpu.memory_space<vmem>>, vector<1x128xf32>
    %21 = vector.broadcast %20 : vector<1x128xf32> to vector<16x128xf32>
    %22 = arith.mulf %19, %21 : vector<16x128xf32>
    %c0_7 = arith.constant 0 : index
    %c0_8 = arith.constant 0 : index
    %23 = vector.load %arg5[%c0_7, %c0_8] : memref<1x128xf32, #tpu.memory_space<vmem>>, vector<1x128xf32>
    %24 = vector.broadcast %23 : vector<1x128xf32> to vector<16x128xf32>
    %25 = arith.addf %22, %24 : vector<16x128xf32>
    %26 = arith.truncf %25 : vector<16x128xf32> to vector<16x128xbf16>
    %c0_9 = arith.constant 0 : index
    %c0_10 = arith.constant 0 : index
    %27 = vector.load %arg6[%c0_9, %c0_10] : memref<128x384xbf16, #tpu.memory_space<vmem>>, vector<128x384xbf16>
    %cst_11 = arith.constant dense<0.000000e+00> : vector<16x384xf32>
    %28 = tpu.matmul %26, %27, %cst_11 {dimension_numbers = #tpu.dot_dimension_numbers<[1], [0], [0], [1], [0, 0, 1, 1], [], []>} : vector<16x128xbf16>, vector<128x384xbf16>, vector<16x384xf32> -> vector<16x384xf32>
    %c0_12 = arith.constant 0 : index
    %c0_13 = arith.constant 0 : index
    %29 = vector.load %arg7[%c0_12, %c0_13] : memref<1x384xf32, #tpu.memory_space<vmem>>, vector<1x384xf32>
    %30 = vector.broadcast %29 : vector<1x384xf32> to vector<16x384xf32>
    %31 = arith.addf %28, %30 : vector<16x384xf32>
    %32 = arith.truncf %31 : vector<16x384xf32> to vector<16x384xbf16>
    %c0_14 = arith.constant 0 : index
    %c0_15 = arith.constant 0 : index
    %33 = vector.load %arg8[%c0_14, %c0_15] : memref<16x384xbf16, #tpu.memory_space<vmem>>, vector<16x384xbf16>
    tpu.vector_store %arg8[%c0_14, %c0_15], %32 {strides = array<i32>} : memref<16x384xbf16, #tpu.memory_space<vmem>>, vector<16x384xbf16>,
    return
  }
  func.func @transform_0(%arg0: i32, %arg1: i32, %arg2: i32) -> (i32, i32) {
    %c0_i32 = arith.constant 0 : i32
    return %arg0, %arg2 : i32, i32
  }
  func.func @transform_1(%arg0: i32, %arg1: i32, %arg2: i32) -> (i32, i32) {
    %c0_i32 = arith.constant 0 : i32
    %c0_i32_0 = arith.constant 0 : i32
    return %c0_i32, %arg2 : i32, i32
  }
  func.func @transform_2(%arg0: i32, %arg1: i32, %arg2: i32) -> (i32, i32) {
    %c0_i32 = arith.constant 0 : i32
    %c0_i32_0 = arith.constant 0 : i32
    return %c0_i32, %arg2 : i32, i32
  }
  func.func @transform_3(%arg0: i32, %arg1: i32, %arg2: i32) -> (i32, i32) {
    %c0_i32 = arith.constant 0 : i32
    return %arg2, %arg1 : i32, i32
  }
  func.func @transform_4(%arg0: i32, %arg1: i32, %arg2: i32) -> (i32, i32) {
    %c0_i32 = arith.constant 0 : i32
    %c0_i32_0 = arith.constant 0 : i32
    return %c0_i32, %arg1 : i32, i32
  }
  func.func @transform_5(%arg0: i32, %arg1: i32, %arg2: i32) -> (i32, i32) {
    %c0_i32 = arith.constant 0 : i32
    return %arg0, %arg1 : i32, i32
  }
}

module attributes {stable_mosaic.version = 11 : i64} {
  func.func @_matmul_kernel(%arg0: i32, %arg1: i32, %arg2: i32, %arg3: memref<16x256xbf16, #tpu.memory_space<vmem>>, %arg4: memref<256x128xbf16, #tpu.memory_space<vmem>>, %arg5: memref<1x128xf32, #tpu.memory_space<vmem>>, %arg6: memref<16x128xbf16, #tpu.memory_space<vmem>>, %arg7: memref<16x128xbf16, #tpu.memory_space<vmem>>) attributes {dimension_semantics = [#tpu.dimension_semantics<parallel>, #tpu.dimension_semantics<parallel>, #tpu.dimension_semantics<arbitrary>], iteration_bounds = array<i64: 1, 1, 1>, scalar_prefetch = 0 : i64, scratch_operands = 0 : i64, tpu.core_type = #tpu.core_type<tc>, window_params = [{transform_indices = @transform_0, window_bounds = array<i64: 16, 256>}, {transform_indices = @transform_1, window_bounds = array<i64: 256, 128>}, {transform_indices = @transform_2, window_bounds = array<i64: 1, 128>}, {transform_indices = @transform_3, window_bounds = array<i64: 16, 128>}, {transform_indices = @transform_4, window_bounds = array<i64: 16, 128>}]} {
    %c0 = arith.constant 0 : index
    %c0_0 = arith.constant 0 : index
    %0 = vector.load %arg3[%c0, %c0_0] : memref<16x256xbf16, #tpu.memory_space<vmem>>, vector<16x256xbf16>
    %c0_1 = arith.constant 0 : index
    %c0_2 = arith.constant 0 : index
    %1 = vector.load %arg4[%c0_1, %c0_2] : memref<256x128xbf16, #tpu.memory_space<vmem>>, vector<256x128xbf16>
    %cst = arith.constant dense<0.000000e+00> : vector<16x128xf32>
    %2 = tpu.matmul %0, %1, %cst {dimension_numbers = #tpu.dot_dimension_numbers<[1], [0], [0], [1], [0, 0, 1, 1], [], []>} : vector<16x256xbf16>, vector<256x128xbf16>, vector<16x128xf32> -> vector<16x128xf32>
    %c0_3 = arith.constant 0 : index
    %c0_4 = arith.constant 0 : index
    %3 = vector.load %arg5[%c0_3, %c0_4] : memref<1x128xf32, #tpu.memory_space<vmem>>, vector<1x128xf32>
    %4 = vector.broadcast %3 : vector<1x128xf32> to vector<16x128xf32>
    %5 = arith.addf %2, %4 : vector<16x128xf32>
    %c0_5 = arith.constant 0 : index
    %c0_6 = arith.constant 0 : index
    %6 = vector.load %arg6[%c0_5, %c0_6] : memref<16x128xbf16, #tpu.memory_space<vmem>>, vector<16x128xbf16>
    %7 = arith.extf %6 : vector<16x128xbf16> to vector<16x128xf32>
    %8 = arith.addf %5, %7 : vector<16x128xf32>
    %9 = arith.truncf %8 : vector<16x128xf32> to vector<16x128xbf16>
    %c0_7 = arith.constant 0 : index
    %c0_8 = arith.constant 0 : index
    %10 = vector.load %arg7[%c0_7, %c0_8] : memref<16x128xbf16, #tpu.memory_space<vmem>>, vector<16x128xbf16>
    tpu.vector_store %arg7[%c0_7, %c0_8], %9 {strides = array<i32>} : memref<16x128xbf16, #tpu.memory_space<vmem>>, vector<16x128xbf16>,
    return
  }
  func.func @transform_0(%arg0: i32, %arg1: i32, %arg2: i32) -> (i32, i32) {
    %c0_i32 = arith.constant 0 : i32
    return %arg0, %arg2 : i32, i32
  }
  func.func @transform_1(%arg0: i32, %arg1: i32, %arg2: i32) -> (i32, i32) {
    %c0_i32 = arith.constant 0 : i32
    return %arg2, %arg1 : i32, i32
  }
  func.func @transform_2(%arg0: i32, %arg1: i32, %arg2: i32) -> (i32, i32) {
    %c0_i32 = arith.constant 0 : i32
    %c0_i32_0 = arith.constant 0 : i32
    return %c0_i32, %arg1 : i32, i32
  }
  func.func @transform_3(%arg0: i32, %arg1: i32, %arg2: i32) -> (i32, i32) {
    %c0_i32 = arith.constant 0 : i32
    return %arg0, %arg1 : i32, i32
  }
  func.func @transform_4(%arg0: i32, %arg1: i32, %arg2: i32) -> (i32, i32) {
    %c0_i32 = arith.constant 0 : i32
    return %arg0, %arg1 : i32, i32
  }
}

module attributes {stable_mosaic.version = 11 : i64} {
  func.func @_matmul_kernel(%arg0: i32, %arg1: i32, %arg2: i32, %arg3: memref<16x128xbf16, #tpu.memory_space<vmem>>, %arg4: memref<1x128xf32, #tpu.memory_space<vmem>>, %arg5: memref<1x128xf32, #tpu.memory_space<vmem>>, %arg6: memref<128x256xbf16, #tpu.memory_space<vmem>>, %arg7: memref<1x256xf32, #tpu.memory_space<vmem>>, %arg8: memref<16x256xbf16, #tpu.memory_space<vmem>>) attributes {dimension_semantics = [#tpu.dimension_semantics<parallel>, #tpu.dimension_semantics<parallel>, #tpu.dimension_semantics<arbitrary>], iteration_bounds = array<i64: 1, 1, 1>, scalar_prefetch = 0 : i64, scratch_operands = 0 : i64, tpu.core_type = #tpu.core_type<tc>, window_params = [{transform_indices = @transform_0, window_bounds = array<i64: 16, 128>}, {transform_indices = @transform_1, window_bounds = array<i64: 1, 128>}, {transform_indices = @transform_2, window_bounds = array<i64: 1, 128>}, {transform_indices = @transform_3, window_bounds = array<i64: 128, 256>}, {transform_indices = @transform_4, window_bounds = array<i64: 1, 256>}, {transform_indices = @transform_5, window_bounds = array<i64: 16, 256>}]} {
    %c0 = arith.constant 0 : index
    %c0_0 = arith.constant 0 : index
    %0 = vector.load %arg3[%c0, %c0_0] : memref<16x128xbf16, #tpu.memory_space<vmem>>, vector<16x128xbf16>
    %1 = arith.extf %0 : vector<16x128xbf16> to vector<16x128xf32>
    %cst = arith.constant dense<0.000000e+00> : vector<16xf32>
    %2 = vector.multi_reduction <add>, %1, %cst [1] : vector<16x128xf32> to vector<16xf32>
    %3 = vector.shape_cast %2 : vector<16xf32> to vector<16x1xf32>
    %cst_1 = arith.constant 1.280000e+02 : f32
    %4 = vector.broadcast %cst_1 : f32 to vector<16x1xf32>
    %5 = arith.divf %3, %4 : vector<16x1xf32>
    %6 = vector.broadcast %5 : vector<16x1xf32> to vector<16x128xf32>
    %7 = arith.subf %1, %6 : vector<16x128xf32>
    %8 = arith.mulf %7, %7 : vector<16x128xf32>
    %cst_2 = arith.constant dense<0.000000e+00> : vector<16xf32>
    %9 = vector.multi_reduction <add>, %8, %cst_2 [1] : vector<16x128xf32> to vector<16xf32>
    %10 = vector.shape_cast %9 : vector<16xf32> to vector<16x1xf32>
    %cst_3 = arith.constant 1.280000e+02 : f32
    %11 = vector.broadcast %cst_3 : f32 to vector<16x1xf32>
    %12 = arith.divf %10, %11 : vector<16x1xf32>
    %13 = vector.broadcast %5 : vector<16x1xf32> to vector<16x128xf32>
    %14 = arith.subf %1, %13 : vector<16x128xf32>
    %cst_4 = arith.constant 9.99999974E-6 : f32
    %15 = vector.broadcast %cst_4 : f32 to vector<16x1xf32>
    %16 = arith.addf %12, %15 : vector<16x1xf32>
    %17 = math.rsqrt %16 : vector<16x1xf32>
    %18 = vector.broadcast %17 : vector<16x1xf32> to vector<16x128xf32>
    %19 = arith.mulf %14, %18 : vector<16x128xf32>
    %c0_5 = arith.constant 0 : index
    %c0_6 = arith.constant 0 : index
    %20 = vector.load %arg4[%c0_5, %c0_6] : memref<1x128xf32, #tpu.memory_space<vmem>>, vector<1x128xf32>
    %21 = vector.broadcast %20 : vector<1x128xf32> to vector<16x128xf32>
    %22 = arith.mulf %19, %21 : vector<16x128xf32>
    %c0_7 = arith.constant 0 : index
    %c0_8 = arith.constant 0 : index
    %23 = vector.load %arg5[%c0_7, %c0_8] : memref<1x128xf32, #tpu.memory_space<vmem>>, vector<1x128xf32>
    %24 = vector.broadcast %23 : vector<1x128xf32> to vector<16x128xf32>
    %25 = arith.addf %22, %24 : vector<16x128xf32>
    %26 = arith.truncf %25 : vector<16x128xf32> to vector<16x128xbf16>
    %c0_9 = arith.constant 0 : index
    %c0_10 = arith.constant 0 : index
    %27 = vector.load %arg6[%c0_9, %c0_10] : memref<128x256xbf16, #tpu.memory_space<vmem>>, vector<128x256xbf16>
    %cst_11 = arith.constant dense<0.000000e+00> : vector<16x256xf32>
    %28 = tpu.matmul %26, %27, %cst_11 {dimension_numbers = #tpu.dot_dimension_numbers<[1], [0], [0], [1], [0, 0, 1, 1], [], []>} : vector<16x128xbf16>, vector<128x256xbf16>, vector<16x256xf32> -> vector<16x256xf32>
    %c0_12 = arith.constant 0 : index
    %c0_13 = arith.constant 0 : index
    %29 = vector.load %arg7[%c0_12, %c0_13] : memref<1x256xf32, #tpu.memory_space<vmem>>, vector<1x256xf32>
    %30 = vector.broadcast %29 : vector<1x256xf32> to vector<16x256xf32>
    %31 = arith.addf %28, %30 : vector<16x256xf32>
    %cst_14 = arith.constant 0.000000e+00 : f32
    %32 = vector.broadcast %cst_14 : f32 to vector<16x256xf32>
    %33 = arith.maximumf %31, %32 : vector<16x256xf32>
    %34 = arith.truncf %33 : vector<16x256xf32> to vector<16x256xbf16>
    %c0_15 = arith.constant 0 : index
    %c0_16 = arith.constant 0 : index
    %35 = vector.load %arg8[%c0_15, %c0_16] : memref<16x256xbf16, #tpu.memory_space<vmem>>, vector<16x256xbf16>
    tpu.vector_store %arg8[%c0_15, %c0_16], %34 {strides = array<i32>} : memref<16x256xbf16, #tpu.memory_space<vmem>>, vector<16x256xbf16>,
    return
  }
  func.func @transform_0(%arg0: i32, %arg1: i32, %arg2: i32) -> (i32, i32) {
    %c0_i32 = arith.constant 0 : i32
    return %arg0, %arg2 : i32, i32
  }
  func.func @transform_1(%arg0: i32, %arg1: i32, %arg2: i32) -> (i32, i32) {
    %c0_i32 = arith.constant 0 : i32
    %c0_i32_0 = arith.constant 0 : i32
    return %c0_i32, %arg2 : i32, i32
  }
  func.func @transform_2(%arg0: i32, %arg1: i32, %arg2: i32) -> (i32, i32) {
    %c0_i32 = arith.constant 0 : i32
    %c0_i32_0 = arith.constant 0 : i32
    return %c0_i32, %arg2 : i32, i32
  }
  func.func @transform_3(%arg0: i32, %arg1: i32, %arg2: i32) -> (i32, i32) {
    %c0_i32 = arith.constant 0 : i32
    return %arg2, %arg1 : i32, i32
  }
  func.func @transform_4(%arg0: i32, %arg1: i32, %arg2: i32) -> (i32, i32) {
    %c0_i32 = arith.constant 0 : i32
    %c0_i32_0 = arith.constant 0 : i32
    return %c0_i32, %arg1 : i32, i32
  }
  func.func @transform_5(%arg0: i32, %arg1: i32, %arg2: i32) -> (i32, i32) {
    %c0_i32 = arith.constant 0 : i32
    return %arg0, %arg1 : i32, i32
  }
}

module attributes {stable_mosaic.version = 11 : i64} {
  func.func @_matmul_kernel(%arg0: i32, %arg1: i32, %arg2: i32, %arg3: memref<16x128xbf16, #tpu.memory_space<vmem>>, %arg4: memref<128x128xbf16, #tpu.memory_space<vmem>>, %arg5: memref<1x128xf32, #tpu.memory_space<vmem>>, %arg6: memref<16x128xbf16, #tpu.memory_space<vmem>>, %arg7: memref<16x128xbf16, #tpu.memory_space<vmem>>) attributes {dimension_semantics = [#tpu.dimension_semantics<parallel>, #tpu.dimension_semantics<parallel>, #tpu.dimension_semantics<arbitrary>], iteration_bounds = array<i64: 1, 1, 1>, scalar_prefetch = 0 : i64, scratch_operands = 0 : i64, tpu.core_type = #tpu.core_type<tc>, window_params = [{transform_indices = @transform_0, window_bounds = array<i64: 16, 128>}, {transform_indices = @transform_1, window_bounds = array<i64: 128, 128>}, {transform_indices = @transform_2, window_bounds = array<i64: 1, 128>}, {transform_indices = @transform_3, window_bounds = array<i64: 16, 128>}, {transform_indices = @transform_4, window_bounds = array<i64: 16, 128>}]} {
    %c0 = arith.constant 0 : index
    %c0_0 = arith.constant 0 : index
    %0 = vector.load %arg3[%c0, %c0_0] : memref<16x128xbf16, #tpu.memory_space<vmem>>, vector<16x128xbf16>
    %c0_1 = arith.constant 0 : index
    %c0_2 = arith.constant 0 : index
    %1 = vector.load %arg4[%c0_1, %c0_2] : memref<128x128xbf16, #tpu.memory_space<vmem>>, vector<128x128xbf16>
    %cst = arith.constant dense<0.000000e+00> : vector<16x128xf32>
    %2 = tpu.matmul %0, %1, %cst {dimension_numbers = #tpu.dot_dimension_numbers<[1], [0], [0], [1], [0, 0, 1, 1], [], []>} : vector<16x128xbf16>, vector<128x128xbf16>, vector<16x128xf32> -> vector<16x128xf32>
    %c0_3 = arith.constant 0 : index
    %c0_4 = arith.constant 0 : index
    %3 = vector.load %arg5[%c0_3, %c0_4] : memref<1x128xf32, #tpu.memory_space<vmem>>, vector<1x128xf32>
    %4 = vector.broadcast %3 : vector<1x128xf32> to vector<16x128xf32>
    %5 = arith.addf %2, %4 : vector<16x128xf32>
    %c0_5 = arith.constant 0 : index
    %c0_6 = arith.constant 0 : index
    %6 = vector.load %arg6[%c0_5, %c0_6] : memref<16x128xbf16, #tpu.memory_space<vmem>>, vector<16x128xbf16>
    %7 = arith.extf %6 : vector<16x128xbf16> to vector<16x128xf32>
    %8 = arith.addf %5, %7 : vector<16x128xf32>
    %9 = arith.truncf %8 : vector<16x128xf32> to vector<16x128xbf16>
    %c0_7 = arith.constant 0 : index
    %c0_8 = arith.constant 0 : index
    %10 = vector.load %arg7[%c0_7, %c0_8] : memref<16x128xbf16, #tpu.memory_space<vmem>>, vector<16x128xbf16>
    tpu.vector_store %arg7[%c0_7, %c0_8], %9 {strides = array<i32>} : memref<16x128xbf16, #tpu.memory_space<vmem>>, vector<16x128xbf16>,
    return
  }
  func.func @transform_0(%arg0: i32, %arg1: i32, %arg2: i32) -> (i32, i32) {
    %c0_i32 = arith.constant 0 : i32
    return %arg0, %arg2 : i32, i32
  }
  func.func @transform_1(%arg0: i32, %arg1: i32, %arg2: i32) -> (i32, i32) {
    %c0_i32 = arith.constant 0 : i32
    return %arg2, %arg1 : i32, i32
  }
  func.func @transform_2(%arg0: i32, %arg1: i32, %arg2: i32) -> (i32, i32) {
    %c0_i32 = arith.constant 0 : i32
    %c0_i32_0 = arith.constant 0 : i32
    return %c0_i32, %arg1 : i32, i32
  }
  func.func @transform_3(%arg0: i32, %arg1: i32, %arg2: i32) -> (i32, i32) {
    %c0_i32 = arith.constant 0 : i32
    return %arg0, %arg1 : i32, i32
  }
  func.func @transform_4(%arg0: i32, %arg1: i32, %arg2: i32) -> (i32, i32) {
    %c0_i32 = arith.constant 0 : i32
    return %arg0, %arg1 : i32, i32
  }
}

module attributes {stable_mosaic.version = 11 : i64} {
  func.func @_attention_kernel(%arg0: i32, %arg1: i32, %arg2: i32, %arg3: memref<1x7x128xbf16, #tpu.memory_space<vmem>>, %arg4: memref<1x7x128xbf16, #tpu.memory_space<vmem>>, %arg5: memref<1x7x128xbf16, #tpu.memory_space<vmem>>, %arg6: memref<1x1x7xf32, #tpu.memory_space<vmem>>, %arg7: memref<1x7x128xbf16, #tpu.memory_space<vmem>>, %arg8: memref<7x4xf32, #tpu.memory_space<vmem>>, %arg9: memref<7x4xf32, #tpu.memory_space<vmem>>, %arg10: memref<7x128xf32, #tpu.memory_space<vmem>>) attributes {dimension_semantics = [#tpu.dimension_semantics<parallel>, #tpu.dimension_semantics<parallel>, #tpu.dimension_semantics<arbitrary>], iteration_bounds = array<i64: 2, 1, 1>, scalar_prefetch = 0 : i64, scratch_operands = 3 : i64, tpu.core_type = #tpu.core_type<tc>, window_params = [{transform_indices = @transform_0, window_bounds = array<i64: 1, 7, 128>}, {transform_indices = @transform_1, window_bounds = array<i64: 1, 7, 128>}, {transform_indices = @transform_2, window_bounds = array<i64: 1, 7, 128>}, {transform_indices = @transform_3, window_bounds = array<i64: 1, 1, 7>}, {transform_indices = @transform_4, window_bounds = array<i64: 1, 7, 128>}]} {
    %c0_i32 = arith.constant 0 : i32
    %0 = arith.cmpi eq, %arg2, %c0_i32 : i32
    %1 = arith.extui %0 : i1 to i32
    %c0_i32_0 = arith.constant 0 : i32
    %2 = arith.cmpi ne, %1, %c0_i32_0 : i32
    scf.if %2 {
      %cst_50 = arith.constant -1.000000e+30 : f32
      %133 = vector.broadcast %cst_50 : f32 to vector<7x4xf32>
      %c0_51 = arith.constant 0 : index
      %c0_52 = arith.constant 0 : index
      %134 = vector.load %arg8[%c0_51, %c0_52] : memref<7x4xf32, #tpu.memory_space<vmem>>, vector<7x4xf32>
      tpu.vector_store %arg8[%c0_51, %c0_52], %133 {strides = array<i32>} : memref<7x4xf32, #tpu.memory_space<vmem>>, vector<7x4xf32>,
      %cst_53 = arith.constant 0.000000e+00 : f32
      %135 = vector.broadcast %cst_53 : f32 to vector<7x4xf32>
      %c0_54 = arith.constant 0 : index
      %c0_55 = arith.constant 0 : index
      %136 = vector.load %arg9[%c0_54, %c0_55] : memref<7x4xf32, #tpu.memory_space<vmem>>, vector<7x4xf32>
      tpu.vector_store %arg9[%c0_54, %c0_55], %135 {strides = array<i32>} : memref<7x4xf32, #tpu.memory_space<vmem>>, vector<7x4xf32>,
      %cst_56 = arith.constant 0.000000e+00 : f32
      %137 = vector.broadcast %cst_56 : f32 to vector<7x128xf32>
      %c0_57 = arith.constant 0 : index
      %c0_58 = arith.constant 0 : index
      %138 = vector.load %arg10[%c0_57, %c0_58] : memref<7x128xf32, #tpu.memory_space<vmem>>, vector<7x128xf32>
      tpu.vector_store %arg10[%c0_57, %c0_58], %137 {strides = array<i32>} : memref<7x128xf32, #tpu.memory_space<vmem>>, vector<7x128xf32>,
    } else {
    }
    %c0 = arith.constant 0 : index
    %c0_1 = arith.constant 0 : index
    %c0_2 = arith.constant 0 : index
    %3 = vector.load %arg6[%c0, %c0_1, %c0_2] : memref<1x1x7xf32, #tpu.memory_space<vmem>>, vector<1x1x7xf32>
    %4 = vector.shape_cast %3 : vector<1x1x7xf32> to vector<1x7xf32>
    %c0_3 = arith.constant 0 : index
    %c0_4 = arith.constant 0 : index
    %c0_5 = arith.constant 0 : index
    %5 = vector.load %arg3[%c0_3, %c0_4, %c0_5] : memref<1x7x128xbf16, #tpu.memory_space<vmem>>, vector<1x7x128xbf16>
    %6 = vector.shape_cast %5 : vector<1x7x128xbf16> to vector<7x128xbf16>
    %cst = arith.constant 1.767580e-01 : bf16
    %7 = vector.broadcast %cst : bf16 to vector<7x128xbf16>
    %8 = arith.mulf %6, %7 : vector<7x128xbf16>
    %c0_6 = arith.constant 0 : index
    %c0_7 = arith.constant 0 : index
    %c0_8 = arith.constant 0 : index
    %9 = vector.load %arg4[%c0_6, %c0_7, %c0_8] : memref<1x7x128xbf16, #tpu.memory_space<vmem>>, vector<1x7x128xbf16>
    %10 = vector.shape_cast %9 : vector<1x7x128xbf16> to vector<7x128xbf16>
    %c0_9 = arith.constant 0 : index
    %c0_10 = arith.constant 0 : index
    %c0_11 = arith.constant 0 : index
    %11 = vector.load %arg5[%c0_9, %c0_10, %c0_11] : memref<1x7x128xbf16, #tpu.memory_space<vmem>>, vector<1x7x128xbf16>
    %12 = vector.shape_cast %11 : vector<1x7x128xbf16> to vector<7x128xbf16>
    %c0_12 = arith.constant 0 : index
    %c0_13 = arith.constant 0 : index
    %13 = vector.load %arg8[%c0_12, %c0_13] : memref<7x4xf32, #tpu.memory_space<vmem>>, vector<7x4xf32>
    %c0_14 = arith.constant 0 : index
    %c0_15 = arith.constant 0 : index
    %14 = vector.load %arg9[%c0_14, %c0_15] : memref<7x4xf32, #tpu.memory_space<vmem>>, vector<7x4xf32>
    %15 = vector.extract_strided_slice %8 {offsets = [0, 0], sizes = [7, 32], strides = [1, 1]} : vector<7x128xbf16> to vector<7x32xbf16>
    %16 = vector.extract_strided_slice %10 {offsets = [0, 0], sizes = [7, 32], strides = [1, 1]} : vector<7x128xbf16> to vector<7x32xbf16>
    %cst_16 = arith.constant dense<0.000000e+00> : vector<7x7xf32>
    %17 = tpu.matmul %15, %16, %cst_16 {dimension_numbers = #tpu.dot_dimension_numbers<[1], [1], [0], [0], [0, 0, 1, 0], [], []>} : vector<7x32xbf16>, vector<7x32xbf16>, vector<7x7xf32> -> vector<7x7xf32>
    %cst_17 = arith.constant 0.000000e+00 : f32
    %18 = vector.broadcast %cst_17 : f32 to vector<1x7xf32>
    %19 = arith.cmpf ogt, %4, %18 : vector<1x7xf32>
    %cst_18 = arith.constant -1.000000e+30 : f32
    %20 = vector.shape_cast %19 : vector<1x7xi1> to vector<1x7xi1>
    %21 = vector.broadcast %20 : vector<1x7xi1> to vector<7x7xi1>
    %22 = vector.broadcast %cst_18 : f32 to vector<7x7xf32>
    %23 = arith.select %21, %17, %22 : vector<7x7xi1>, vector<7x7xf32>
    %24 = vector.extract_strided_slice %8 {offsets = [0, 32], sizes = [7, 32], strides = [1, 1]} : vector<7x128xbf16> to vector<7x32xbf16>
    %25 = vector.extract_strided_slice %10 {offsets = [0, 32], sizes = [7, 32], strides = [1, 1]} : vector<7x128xbf16> to vector<7x32xbf16>
    %cst_19 = arith.constant dense<0.000000e+00> : vector<7x7xf32>
    %26 = tpu.matmul %24, %25, %cst_19 {dimension_numbers = #tpu.dot_dimension_numbers<[1], [1], [0], [0], [0, 0, 1, 0], [], []>} : vector<7x32xbf16>, vector<7x32xbf16>, vector<7x7xf32> -> vector<7x7xf32>
    %cst_20 = arith.constant 0.000000e+00 : f32
    %27 = vector.broadcast %cst_20 : f32 to vector<1x7xf32>
    %28 = arith.cmpf ogt, %4, %27 : vector<1x7xf32>
    %cst_21 = arith.constant -1.000000e+30 : f32
    %29 = vector.shape_cast %28 : vector<1x7xi1> to vector<1x7xi1>
    %30 = vector.broadcast %29 : vector<1x7xi1> to vector<7x7xi1>
    %31 = vector.broadcast %cst_21 : f32 to vector<7x7xf32>
    %32 = arith.select %30, %26, %31 : vector<7x7xi1>, vector<7x7xf32>
    %33 = vector.extract_strided_slice %8 {offsets = [0, 64], sizes = [7, 32], strides = [1, 1]} : vector<7x128xbf16> to vector<7x32xbf16>
    %34 = vector.extract_strided_slice %10 {offsets = [0, 64], sizes = [7, 32], strides = [1, 1]} : vector<7x128xbf16> to vector<7x32xbf16>
    %cst_22 = arith.constant dense<0.000000e+00> : vector<7x7xf32>
    %35 = tpu.matmul %33, %34, %cst_22 {dimension_numbers = #tpu.dot_dimension_numbers<[1], [1], [0], [0], [0, 0, 1, 0], [], []>} : vector<7x32xbf16>, vector<7x32xbf16>, vector<7x7xf32> -> vector<7x7xf32>
    %cst_23 = arith.constant 0.000000e+00 : f32
    %36 = vector.broadcast %cst_23 : f32 to vector<1x7xf32>
    %37 = arith.cmpf ogt, %4, %36 : vector<1x7xf32>
    %cst_24 = arith.constant -1.000000e+30 : f32
    %38 = vector.shape_cast %37 : vector<1x7xi1> to vector<1x7xi1>
    %39 = vector.broadcast %38 : vector<1x7xi1> to vector<7x7xi1>
    %40 = vector.broadcast %cst_24 : f32 to vector<7x7xf32>
    %41 = arith.select %39, %35, %40 : vector<7x7xi1>, vector<7x7xf32>
    %42 = vector.extract_strided_slice %8 {offsets = [0, 96], sizes = [7, 32], strides = [1, 1]} : vector<7x128xbf16> to vector<7x32xbf16>
    %43 = vector.extract_strided_slice %10 {offsets = [0, 96], sizes = [7, 32], strides = [1, 1]} : vector<7x128xbf16> to vector<7x32xbf16>
    %cst_25 = arith.constant dense<0.000000e+00> : vector<7x7xf32>
    %44 = tpu.matmul %42, %43, %cst_25 {dimension_numbers = #tpu.dot_dimension_numbers<[1], [1], [0], [0], [0, 0, 1, 0], [], []>} : vector<7x32xbf16>, vector<7x32xbf16>, vector<7x7xf32> -> vector<7x7xf32>
    %cst_26 = arith.constant 0.000000e+00 : f32
    %45 = vector.broadcast %cst_26 : f32 to vector<1x7xf32>
    %46 = arith.cmpf ogt, %4, %45 : vector<1x7xf32>
    %cst_27 = arith.constant -1.000000e+30 : f32
    %47 = vector.shape_cast %46 : vector<1x7xi1> to vector<1x7xi1>
    %48 = vector.broadcast %47 : vector<1x7xi1> to vector<7x7xi1>
    %49 = vector.broadcast %cst_27 : f32 to vector<7x7xf32>
    %50 = arith.select %48, %44, %49 : vector<7x7xi1>, vector<7x7xf32>
    %cst_28 = arith.constant dense<0xFF800000> : vector<7xf32>
    %51 = vector.multi_reduction <maximumf>, %23, %cst_28 [1] : vector<7x7xf32> to vector<7xf32>
    %52 = vector.shape_cast %51 : vector<7xf32> to vector<7x1xf32>
    %cst_29 = arith.constant dense<0xFF800000> : vector<7xf32>
    %53 = vector.multi_reduction <maximumf>, %32, %cst_29 [1] : vector<7x7xf32> to vector<7xf32>
    %54 = vector.shape_cast %53 : vector<7xf32> to vector<7x1xf32>
    %cst_30 = arith.constant dense<0xFF800000> : vector<7xf32>
    %55 = vector.multi_reduction <maximumf>, %41, %cst_30 [1] : vector<7x7xf32> to vector<7xf32>
    %56 = vector.shape_cast %55 : vector<7xf32> to vector<7x1xf32>
    %cst_31 = arith.constant dense<0xFF800000> : vector<7xf32>
    %57 = vector.multi_reduction <maximumf>, %50, %cst_31 [1] : vector<7x7xf32> to vector<7xf32>
    %58 = vector.shape_cast %57 : vector<7xf32> to vector<7x1xf32>
    %59 = tpu.concatenate %52, %54, %56, %58 in 1 : vector<7x1xf32>, vector<7x1xf32>, vector<7x1xf32>, vector<7x1xf32> -> vector<7x4xf32>
    %60 = arith.maximumf %13, %59 : vector<7x4xf32>
    %61 = arith.subf %13, %60 : vector<7x4xf32>
    %62 = math.exp %61 : vector<7x4xf32>
    %63 = vector.extract_strided_slice %60 {offsets = [0, 0], sizes = [7, 1], strides = [1, 1]} : vector<7x4xf32> to vector<7x1xf32>
    %64 = vector.broadcast %63 : vector<7x1xf32> to vector<7x7xf32>
    %65 = arith.subf %23, %64 : vector<7x7xf32>
    %66 = math.exp %65 : vector<7x7xf32>
    %67 = vector.broadcast %4 : vector<1x7xf32> to vector<7x7xf32>
    %68 = arith.mulf %66, %67 : vector<7x7xf32>
    %cst_32 = arith.constant dense<0.000000e+00> : vector<7xf32>
    %69 = vector.multi_reduction <add>, %68, %cst_32 [1] : vector<7x7xf32> to vector<7xf32>
    %70 = vector.shape_cast %69 : vector<7xf32> to vector<7x1xf32>
    %71 = arith.truncf %68 : vector<7x7xf32> to vector<7x7xbf16>
    %72 = vector.extract_strided_slice %12 {offsets = [0, 0], sizes = [7, 32], strides = [1, 1]} : vector<7x128xbf16> to vector<7x32xbf16>
    %cst_33 = arith.constant dense<0.000000e+00> : vector<7x32xf32>
    %73 = tpu.matmul %71, %72, %cst_33 {dimension_numbers = #tpu.dot_dimension_numbers<[1], [0], [0], [1], [0, 0, 1, 1], [], []>} : vector<7x7xbf16>, vector<7x32xbf16>, vector<7x32xf32> -> vector<7x32xf32>
    %74 = vector.extract_strided_slice %60 {offsets = [0, 1], sizes = [7, 1], strides = [1, 1]} : vector<7x4xf32> to vector<7x1xf32>
    %75 = vector.broadcast %74 : vector<7x1xf32> to vector<7x7xf32>
    %76 = arith.subf %32, %75 : vector<7x7xf32>
    %77 = math.exp %76 : vector<7x7xf32>
    %78 = vector.broadcast %4 : vector<1x7xf32> to vector<7x7xf32>
    %79 = arith.mulf %77, %78 : vector<7x7xf32>
    %cst_34 = arith.constant dense<0.000000e+00> : vector<7xf32>
    %80 = vector.multi_reduction <add>, %79, %cst_34 [1] : vector<7x7xf32> to vector<7xf32>
    %81 = vector.shape_cast %80 : vector<7xf32> to vector<7x1xf32>
    %82 = arith.truncf %79 : vector<7x7xf32> to vector<7x7xbf16>
    %83 = vector.extract_strided_slice %12 {offsets = [0, 32], sizes = [7, 32], strides = [1, 1]} : vector<7x128xbf16> to vector<7x32xbf16>
    %cst_35 = arith.constant dense<0.000000e+00> : vector<7x32xf32>
    %84 = tpu.matmul %82, %83, %cst_35 {dimension_numbers = #tpu.dot_dimension_numbers<[1], [0], [0], [1], [0, 0, 1, 1], [], []>} : vector<7x7xbf16>, vector<7x32xbf16>, vector<7x32xf32> -> vector<7x32xf32>
    %85 = vector.extract_strided_slice %60 {offsets = [0, 2], sizes = [7, 1], strides = [1, 1]} : vector<7x4xf32> to vector<7x1xf32>
    %86 = vector.broadcast %85 : vector<7x1xf32> to vector<7x7xf32>
    %87 = arith.subf %41, %86 : vector<7x7xf32>
    %88 = math.exp %87 : vector<7x7xf32>
    %89 = vector.broadcast %4 : vector<1x7xf32> to vector<7x7xf32>
    %90 = arith.mulf %88, %89 : vector<7x7xf32>
    %cst_36 = arith.constant dense<0.000000e+00> : vector<7xf32>
    %91 = vector.multi_reduction <add>, %90, %cst_36 [1] : vector<7x7xf32> to vector<7xf32>
    %92 = vector.shape_cast %91 : vector<7xf32> to vector<7x1xf32>
    %93 = arith.truncf %90 : vector<7x7xf32> to vector<7x7xbf16>
    %94 = vector.extract_strided_slice %12 {offsets = [0, 64], sizes = [7, 32], strides = [1, 1]} : vector<7x128xbf16> to vector<7x32xbf16>
    %cst_37 = arith.constant dense<0.000000e+00> : vector<7x32xf32>
    %95 = tpu.matmul %93, %94, %cst_37 {dimension_numbers = #tpu.dot_dimension_numbers<[1], [0], [0], [1], [0, 0, 1, 1], [], []>} : vector<7x7xbf16>, vector<7x32xbf16>, vector<7x32xf32> -> vector<7x32xf32>
    %96 = vector.extract_strided_slice %60 {offsets = [0, 3], sizes = [7, 1], strides = [1, 1]} : vector<7x4xf32> to vector<7x1xf32>
    %97 = vector.broadcast %96 : vector<7x1xf32> to vector<7x7xf32>
    %98 = arith.subf %50, %97 : vector<7x7xf32>
    %99 = math.exp %98 : vector<7x7xf32>
    %100 = vector.broadcast %4 : vector<1x7xf32> to vector<7x7xf32>
    %101 = arith.mulf %99, %100 : vector<7x7xf32>
    %cst_38 = arith.constant dense<0.000000e+00> : vector<7xf32>
    %102 = vector.multi_reduction <add>, %101, %cst_38 [1] : vector<7x7xf32> to vector<7xf32>
    %103 = vector.shape_cast %102 : vector<7xf32> to vector<7x1xf32>
    %104 = arith.truncf %101 : vector<7x7xf32> to vector<7x7xbf16>
    %105 = vector.extract_strided_slice %12 {offsets = [0, 96], sizes = [7, 32], strides = [1, 1]} : vector<7x128xbf16> to vector<7x32xbf16>
    %cst_39 = arith.constant dense<0.000000e+00> : vector<7x32xf32>
    %106 = tpu.matmul %104, %105, %cst_39 {dimension_numbers = #tpu.dot_dimension_numbers<[1], [0], [0], [1], [0, 0, 1, 1], [], []>} : vector<7x7xbf16>, vector<7x32xbf16>, vector<7x32xf32> -> vector<7x32xf32>
    %107 = vector.extract_strided_slice %62 {offsets = [0, 0], sizes = [7, 1], strides = [1, 1]} : vector<7x4xf32> to vector<7x1xf32>
    %108 = vector.shape_cast %107 : vector<7x1xf32> to vector<7x1xf32>
    %109 = vector.broadcast %108 : vector<7x1xf32> to vector<7x32xf32>
    %110 = vector.extract_strided_slice %62 {offsets = [0, 1], sizes = [7, 1], strides = [1, 1]} : vector<7x4xf32> to vector<7x1xf32>
    %111 = vector.shape_cast %110 : vector<7x1xf32> to vector<7x1xf32>
    %112 = vector.broadcast %111 : vector<7x1xf32> to vector<7x32xf32>
    %113 = vector.extract_strided_slice %62 {offsets = [0, 2], sizes = [7, 1], strides = [1, 1]} : vector<7x4xf32> to vector<7x1xf32>
    %114 = vector.shape_cast %113 : vector<7x1xf32> to vector<7x1xf32>
    %115 = vector.broadcast %114 : vector<7x1xf32> to vector<7x32xf32>
    %116 = vector.extract_strided_slice %62 {offsets = [0, 3], sizes = [7, 1], strides = [1, 1]} : vector<7x4xf32> to vector<7x1xf32>
    %117 = vector.shape_cast %116 : vector<7x1xf32> to vector<7x1xf32>
    %118 = vector.broadcast %117 : vector<7x1xf32> to vector<7x32xf32>
    %119 = tpu.concatenate %109, %112, %115, %118 in 1 : vector<7x32xf32>, vector<7x32xf32>, vector<7x32xf32>, vector<7x32xf32> -> vector<7x128xf32>
    %c0_40 = arith.constant 0 : index
    %c0_41 = arith.constant 0 : index
    %120 = vector.load %arg10[%c0_40, %c0_41] : memref<7x128xf32, #tpu.memory_space<vmem>>, vector<7x128xf32>
    %121 = arith.mulf %119, %120 : vector<7x128xf32>
    %122 = tpu.concatenate %73, %84, %95, %106 in 1 : vector<7x32xf32>, vector<7x32xf32>, vector<7x32xf32>, vector<7x32xf32> -> vector<7x128xf32>
    %123 = arith.addf %121, %122 : vector<7x128xf32>
    %c0_42 = arith.constant 0 : index
    %c0_43 = arith.constant 0 : index
    %124 = vector.load %arg10[%c0_42, %c0_43] : memref<7x128xf32, #tpu.memory_space<vmem>>, vector<7x128xf32>
    tpu.vector_store %arg10[%c0_42, %c0_43], %123 {strides = array<i32>} : memref<7x128xf32, #tpu.memory_space<vmem>>, vector<7x128xf32>,
    %125 = arith.mulf %62, %14 : vector<7x4xf32>
    %126 = tpu.concatenate %70, %81, %92, %103 in 1 : vector<7x1xf32>, vector<7x1xf32>, vector<7x1xf32>, vector<7x1xf32> -> vector<7x4xf32>
    %127 = arith.addf %125, %126 : vector<7x4xf32>
    %c0_44 = arith.constant 0 : index
    %c0_45 = arith.constant 0 : index
    %128 = vector.load %arg9[%c0_44, %c0_45] : memref<7x4xf32, #tpu.memory_space<vmem>>, vector<7x4xf32>
    tpu.vector_store %arg9[%c0_44, %c0_45], %127 {strides = array<i32>} : memref<7x4xf32, #tpu.memory_space<vmem>>, vector<7x4xf32>,
    %c0_46 = arith.constant 0 : index
    %c0_47 = arith.constant 0 : index
    %129 = vector.load %arg8[%c0_46, %c0_47] : memref<7x4xf32, #tpu.memory_space<vmem>>, vector<7x4xf32>
    tpu.vector_store %arg8[%c0_46, %c0_47], %60 {strides = array<i32>} : memref<7x4xf32, #tpu.memory_space<vmem>>, vector<7x4xf32>,
    %c0_i32_48 = arith.constant 0 : i32
    %130 = arith.cmpi eq, %arg2, %c0_i32_48 : i32
    %131 = arith.extui %130 : i1 to i32
    %c0_i32_49 = arith.constant 0 : i32
    %132 = arith.cmpi ne, %131, %c0_i32_49 : i32
    scf.if %132 {
      %c0_50 = arith.constant 0 : index
      %c0_51 = arith.constant 0 : index
      %133 = vector.load %arg9[%c0_50, %c0_51] : memref<7x4xf32, #tpu.memory_space<vmem>>, vector<7x4xf32>
      %cst_52 = arith.constant 0.000000e+00 : f32
      %134 = vector.broadcast %cst_52 : f32 to vector<7x4xf32>
      %135 = arith.cmpf ogt, %133, %134 : vector<7x4xf32>
      %cst_53 = arith.constant 1.000000e+00 : f32
      %136 = vector.broadcast %cst_53 : f32 to vector<7x4xf32>
      %137 = arith.select %135, %133, %136 : vector<7x4xi1>, vector<7x4xf32>
      %138 = tpu.reciprocal %137 {approx = true} : vector<7x4xf32> -> vector<7x4xf32>
      %139 = vector.extract_strided_slice %138 {offsets = [0, 0], sizes = [7, 1], strides = [1, 1]} : vector<7x4xf32> to vector<7x1xf32>
      %140 = vector.shape_cast %139 : vector<7x1xf32> to vector<7x1xf32>
      %141 = vector.broadcast %140 : vector<7x1xf32> to vector<7x32xf32>
      %142 = vector.extract_strided_slice %138 {offsets = [0, 1], sizes = [7, 1], strides = [1, 1]} : vector<7x4xf32> to vector<7x1xf32>
      %143 = vector.shape_cast %142 : vector<7x1xf32> to vector<7x1xf32>
      %144 = vector.broadcast %143 : vector<7x1xf32> to vector<7x32xf32>
      %145 = vector.extract_strided_slice %138 {offsets = [0, 2], sizes = [7, 1], strides = [1, 1]} : vector<7x4xf32> to vector<7x1xf32>
      %146 = vector.shape_cast %145 : vector<7x1xf32> to vector<7x1xf32>
      %147 = vector.broadcast %146 : vector<7x1xf32> to vector<7x32xf32>
      %148 = vector.extract_strided_slice %138 {offsets = [0, 3], sizes = [7, 1], strides = [1, 1]} : vector<7x4xf32> to vector<7x1xf32>
      %149 = vector.shape_cast %148 : vector<7x1xf32> to vector<7x1xf32>
      %150 = vector.broadcast %149 : vector<7x1xf32> to vector<7x32xf32>
      %151 = tpu.concatenate %141, %144, %147, %150 in 1 : vector<7x32xf32>, vector<7x32xf32>, vector<7x32xf32>, vector<7x32xf32> -> vector<7x128xf32>
      %c0_54 = arith.constant 0 : index
      %c0_55 = arith.constant 0 : index
      %152 = vector.load %arg10[%c0_54, %c0_55] : memref<7x128xf32, #tpu.memory_space<vmem>>, vector<7x128xf32>
      %153 = arith.mulf %152, %151 : vector<7x128xf32>
      %154 = arith.truncf %153 : vector<7x128xf32> to vector<7x128xbf16>
      %c0_56 = arith.constant 0 : index
      %c0_57 = arith.constant 0 : index
      %c0_58 = arith.constant 0 : index
      %155 = vector.load %arg7[%c0_56, %c0_57, %c0_58] : memref<1x7x128xbf16, #tpu.memory_space<vmem>>, vector<1x7x128xbf16>
      %156 = vector.shape_cast %155 : vector<1x7x128xbf16> to vector<7x128xbf16>
      %157 = vector.shape_cast %154 : vector<7x128xbf16> to vector<1x7x128xbf16>
      tpu.vector_store %arg7[%c0_56, %c0_57, %c0_58], %157 {strides = array<i32>} : memref<1x7x128xbf16, #tpu.memory_space<vmem>>, vector<1x7x128xbf16>,
    } else {
    }
    return
  }
  func.func @transform_0(%arg0: i32, %arg1: i32, %arg2: i32) -> (i32, i32, i32) {
    %c0_i32 = arith.constant 0 : i32
    %c0_i32_0 = arith.constant 0 : i32
    return %arg0, %arg1, %c0_i32 : i32, i32, i32
  }
  func.func @transform_1(%arg0: i32, %arg1: i32, %arg2: i32) -> (i32, i32, i32) {
    %c1_i32 = arith.constant 1 : i32
    %c0_i32 = arith.constant 0 : i32
    return %arg0, %arg2, %c1_i32 : i32, i32, i32
  }
  func.func @transform_2(%arg0: i32, %arg1: i32, %arg2: i32) -> (i32, i32, i32) {
    %c2_i32 = arith.constant 2 : i32
    %c0_i32 = arith.constant 0 : i32
    return %arg0, %arg2, %c2_i32 : i32, i32, i32
  }
  func.func @transform_3(%arg0: i32, %arg1: i32, %arg2: i32) -> (i32, i32, i32) {
    %c0_i32 = arith.constant 0 : i32
    %c0_i32_0 = arith.constant 0 : i32
    return %arg0, %c0_i32, %arg2 : i32, i32, i32
  }
  func.func @transform_4(%arg0: i32, %arg1: i32, %arg2: i32) -> (i32, i32, i32) {
    %c0_i32 = arith.constant 0 : i32
    %c0_i32_0 = arith.constant 0 : i32
    return %arg0, %arg1, %c0_i32 : i32, i32, i32
  }
}

module attributes {stable_mosaic.version = 11 : i64} {
  func.func @_ctc_head_kernel(%arg0: i32, %arg1: i32, %arg2: memref<16x128xbf16, #tpu.memory_space<vmem>>, %arg3: memref<1x128xf32, #tpu.memory_space<vmem>>, %arg4: memref<1x128xf32, #tpu.memory_space<vmem>>, %arg5: memref<128x256xbf16, #tpu.memory_space<vmem>>, %arg6: memref<1x256xf32, #tpu.memory_space<vmem>>, %arg7: memref<16x128xf32, #tpu.memory_space<vmem>>, %arg8: memref<16x256xf32, #tpu.memory_space<vmem>>, %arg9: memref<16x10xf32, #tpu.memory_space<vmem>>, %arg10: memref<16x10xi32, #tpu.memory_space<vmem>>, %arg11: memref<16x128xbf16, #tpu.memory_space<vmem>>, %arg12: memref<16x1xf32, #tpu.memory_space<vmem>>, %arg13: memref<16x1xf32, #tpu.memory_space<vmem>>) attributes {dimension_semantics = [#tpu.dimension_semantics<parallel>, #tpu.dimension_semantics<arbitrary>], iteration_bounds = array<i64: 1, 1>, scalar_prefetch = 0 : i64, scratch_operands = 3 : i64, tpu.core_type = #tpu.core_type<tc>, window_params = [{transform_indices = @transform_0, window_bounds = array<i64: 16, 128>}, {pipeline_mode = #tpu.pipeline_mode<synchronous>, transform_indices = @transform_1, window_bounds = array<i64: 1, 128>}, {pipeline_mode = #tpu.pipeline_mode<synchronous>, transform_indices = @transform_2, window_bounds = array<i64: 1, 128>}, {transform_indices = @transform_3, window_bounds = array<i64: 128, 256>}, {transform_indices = @transform_4, window_bounds = array<i64: 1, 256>}, {transform_indices = @transform_5, window_bounds = array<i64: 16, 128>}, {transform_indices = @transform_6, window_bounds = array<i64: 16, 256>}, {transform_indices = @transform_7, window_bounds = array<i64: 16, 10>}, {transform_indices = @transform_8, window_bounds = array<i64: 16, 10>}]} {
    %c0_i32 = arith.constant 0 : i32
    %0 = arith.cmpi eq, %arg1, %c0_i32 : i32
    %1 = arith.extui %0 : i1 to i32
    %c0_i32_0 = arith.constant 0 : i32
    %2 = arith.cmpi ne, %1, %c0_i32_0 : i32
    scf.if %2 {
      %c0_20 = arith.constant 0 : index
      %c0_21 = arith.constant 0 : index
      %31 = vector.load %arg2[%c0_20, %c0_21] : memref<16x128xbf16, #tpu.memory_space<vmem>>, vector<16x128xbf16>
      %32 = arith.extf %31 : vector<16x128xbf16> to vector<16x128xf32>
      %cst_22 = arith.constant dense<0.000000e+00> : vector<16xf32>
      %33 = vector.multi_reduction <add>, %32, %cst_22 [1] : vector<16x128xf32> to vector<16xf32>
      %34 = vector.shape_cast %33 : vector<16xf32> to vector<16x1xf32>
      %cst_23 = arith.constant 1.280000e+02 : f32
      %35 = vector.broadcast %cst_23 : f32 to vector<16x1xf32>
      %36 = arith.divf %34, %35 : vector<16x1xf32>
      %37 = vector.broadcast %36 : vector<16x1xf32> to vector<16x128xf32>
      %38 = arith.subf %32, %37 : vector<16x128xf32>
      %39 = arith.mulf %38, %38 : vector<16x128xf32>
      %cst_24 = arith.constant dense<0.000000e+00> : vector<16xf32>
      %40 = vector.multi_reduction <add>, %39, %cst_24 [1] : vector<16x128xf32> to vector<16xf32>
      %41 = vector.shape_cast %40 : vector<16xf32> to vector<16x1xf32>
      %cst_25 = arith.constant 1.280000e+02 : f32
      %42 = vector.broadcast %cst_25 : f32 to vector<16x1xf32>
      %43 = arith.divf %41, %42 : vector<16x1xf32>
      %44 = vector.broadcast %36 : vector<16x1xf32> to vector<16x128xf32>
      %45 = arith.subf %32, %44 : vector<16x128xf32>
      %cst_26 = arith.constant 9.99999974E-6 : f32
      %46 = vector.broadcast %cst_26 : f32 to vector<16x1xf32>
      %47 = arith.addf %43, %46 : vector<16x1xf32>
      %48 = math.rsqrt %47 : vector<16x1xf32>
      %49 = vector.broadcast %48 : vector<16x1xf32> to vector<16x128xf32>
      %50 = arith.mulf %45, %49 : vector<16x128xf32>
      %c0_27 = arith.constant 0 : index
      %c0_28 = arith.constant 0 : index
      %51 = vector.load %arg3[%c0_27, %c0_28] : memref<1x128xf32, #tpu.memory_space<vmem>>, vector<1x128xf32>
      %52 = vector.broadcast %51 : vector<1x128xf32> to vector<16x128xf32>
      %53 = arith.mulf %50, %52 : vector<16x128xf32>
      %c0_29 = arith.constant 0 : index
      %c0_30 = arith.constant 0 : index
      %54 = vector.load %arg4[%c0_29, %c0_30] : memref<1x128xf32, #tpu.memory_space<vmem>>, vector<1x128xf32>
      %55 = vector.broadcast %54 : vector<1x128xf32> to vector<16x128xf32>
      %56 = arith.addf %53, %55 : vector<16x128xf32>
      %c0_31 = arith.constant 0 : index
      %c0_32 = arith.constant 0 : index
      %57 = vector.load %arg7[%c0_31, %c0_32] : memref<16x128xf32, #tpu.memory_space<vmem>>, vector<16x128xf32>
      tpu.vector_store %arg7[%c0_31, %c0_32], %56 {strides = array<i32>} : memref<16x128xf32, #tpu.memory_space<vmem>>, vector<16x128xf32>,
      %58 = arith.truncf %56 : vector<16x128xf32> to vector<16x128xbf16>
      %c0_33 = arith.constant 0 : index
      %c0_34 = arith.constant 0 : index
      %59 = vector.load %arg11[%c0_33, %c0_34] : memref<16x128xbf16, #tpu.memory_space<vmem>>, vector<16x128xbf16>
      tpu.vector_store %arg11[%c0_33, %c0_34], %58 {strides = array<i32>} : memref<16x128xbf16, #tpu.memory_space<vmem>>, vector<16x128xbf16>,
      %cst_35 = arith.constant -1.000000e+30 : f32
      %60 = vector.broadcast %cst_35 : f32 to vector<16x1xf32>
      %c0_36 = arith.constant 0 : index
      %c0_37 = arith.constant 0 : index
      %61 = vector.load %arg12[%c0_36, %c0_37] : memref<16x1xf32, #tpu.memory_space<vmem>>, vector<16x1xf32>
      tpu.vector_store %arg12[%c0_36, %c0_37], %60 {strides = array<i32>} : memref<16x1xf32, #tpu.memory_space<vmem>>, vector<16x1xf32>,
      %cst_38 = arith.constant 0.000000e+00 : f32
      %62 = vector.broadcast %cst_38 : f32 to vector<16x1xf32>
      %c0_39 = arith.constant 0 : index
      %c0_40 = arith.constant 0 : index
      %63 = vector.load %arg13[%c0_39, %c0_40] : memref<16x1xf32, #tpu.memory_space<vmem>>, vector<16x1xf32>
      tpu.vector_store %arg13[%c0_39, %c0_40], %62 {strides = array<i32>} : memref<16x1xf32, #tpu.memory_space<vmem>>, vector<16x1xf32>,
    } else {
    }
    %c0 = arith.constant 0 : index
    %c0_1 = arith.constant 0 : index
    %3 = vector.load %arg11[%c0, %c0_1] : memref<16x128xbf16, #tpu.memory_space<vmem>>, vector<16x128xbf16>
    %c0_2 = arith.constant 0 : index
    %c0_3 = arith.constant 0 : index
    %4 = vector.load %arg5[%c0_2, %c0_3] : memref<128x256xbf16, #tpu.memory_space<vmem>>, vector<128x256xbf16>
    %cst = arith.constant dense<0.000000e+00> : vector<16x256xf32>
    %5 = tpu.matmul %3, %4, %cst {dimension_numbers = #tpu.dot_dimension_numbers<[1], [0], [0], [1], [0, 0, 1, 1], [], []>} : vector<16x128xbf16>, vector<128x256xbf16>, vector<16x256xf32> -> vector<16x256xf32>
    %c0_4 = arith.constant 0 : index
    %c0_5 = arith.constant 0 : index
    %6 = vector.load %arg6[%c0_4, %c0_5] : memref<1x256xf32, #tpu.memory_space<vmem>>, vector<1x256xf32>
    %7 = vector.broadcast %6 : vector<1x256xf32> to vector<16x256xf32>
    %8 = arith.addf %5, %7 : vector<16x256xf32>
    %c0_6 = arith.constant 0 : index
    %c0_7 = arith.constant 0 : index
    %9 = vector.load %arg12[%c0_6, %c0_7] : memref<16x1xf32, #tpu.memory_space<vmem>>, vector<16x1xf32>
    %cst_8 = arith.constant dense<0xFF800000> : vector<16xf32>
    %10 = vector.multi_reduction <maximumf>, %8, %cst_8 [1] : vector<16x256xf32> to vector<16xf32>
    %11 = vector.shape_cast %10 : vector<16xf32> to vector<16x1xf32>
    %12 = arith.maximumf %9, %11 : vector<16x1xf32>
    %c0_9 = arith.constant 0 : index
    %c0_10 = arith.constant 0 : index
    %13 = vector.load %arg13[%c0_9, %c0_10] : memref<16x1xf32, #tpu.memory_space<vmem>>, vector<16x1xf32>
    %14 = arith.subf %9, %12 : vector<16x1xf32>
    %15 = math.exp %14 : vector<16x1xf32>
    %16 = arith.mulf %13, %15 : vector<16x1xf32>
    %17 = vector.broadcast %12 : vector<16x1xf32> to vector<16x256xf32>
    %18 = arith.subf %8, %17 : vector<16x256xf32>
    %19 = math.exp %18 : vector<16x256xf32>
    %cst_11 = arith.constant dense<0.000000e+00> : vector<16xf32>
    %20 = vector.multi_reduction <add>, %19, %cst_11 [1] : vector<16x256xf32> to vector<16xf32>
    %21 = vector.shape_cast %20 : vector<16xf32> to vector<16x1xf32>
    %22 = arith.addf %16, %21 : vector<16x1xf32>
    %c0_12 = arith.constant 0 : index
    %c0_13 = arith.constant 0 : index
    %23 = vector.load %arg13[%c0_12, %c0_13] : memref<16x1xf32, #tpu.memory_space<vmem>>, vector<16x1xf32>
    tpu.vector_store %arg13[%c0_12, %c0_13], %22 {strides = array<i32>} : memref<16x1xf32, #tpu.memory_space<vmem>>, vector<16x1xf32>,
    %c0_14 = arith.constant 0 : index
    %c0_15 = arith.constant 0 : index
    %24 = vector.load %arg12[%c0_14, %c0_15] : memref<16x1xf32, #tpu.memory_space<vmem>>, vector<16x1xf32>
    tpu.vector_store %arg12[%c0_14, %c0_15], %12 {strides = array<i32>} : memref<16x1xf32, #tpu.memory_space<vmem>>, vector<16x1xf32>,
    %c0_i32_16 = arith.constant 0 : i32
    %25 = arith.cmpi eq, %arg1, %c0_i32_16 : i32
    %26 = arith.extui %25 : i1 to i32
    %c0_i32_17 = arith.constant 0 : i32
    %27 = arith.cmpi ne, %26, %c0_i32_17 : i32
    scf.if %27 {
      %c0_20 = arith.constant 0 : index
      %c0_21 = arith.constant 0 : index
      %31 = vector.load %arg8[%c0_20, %c0_21] : memref<16x256xf32, #tpu.memory_space<vmem>>, vector<16x256xf32>
      tpu.vector_store %arg8[%c0_20, %c0_21], %8 {strides = array<i32>} : memref<16x256xf32, #tpu.memory_space<vmem>>, vector<16x256xf32>,
    } else {
    }
    %c0_i32_18 = arith.constant 0 : i32
    %28 = arith.cmpi eq, %arg1, %c0_i32_18 : i32
    %29 = arith.extui %28 : i1 to i32
    %c0_i32_19 = arith.constant 0 : i32
    %30 = arith.cmpi ne, %29, %c0_i32_19 : i32
    scf.if %30 {
      %c0_20 = arith.constant 0 : index
      %c0_21 = arith.constant 0 : index
      %31 = vector.load %arg12[%c0_20, %c0_21] : memref<16x1xf32, #tpu.memory_space<vmem>>, vector<16x1xf32>
      %c0_22 = arith.constant 0 : index
      %c0_23 = arith.constant 0 : index
      %32 = vector.load %arg13[%c0_22, %c0_23] : memref<16x1xf32, #tpu.memory_space<vmem>>, vector<16x1xf32>
      %33 = math.log %32 : vector<16x1xf32>
      %34 = arith.addf %31, %33 : vector<16x1xf32>
      %c0_24 = arith.constant 0 : index
      %c0_25 = arith.constant 0 : index
      %35 = vector.load %arg8[%c0_24, %c0_25] : memref<16x256xf32, #tpu.memory_space<vmem>>, vector<16x256xf32>
      %36 = vector.broadcast %34 : vector<16x1xf32> to vector<16x256xf32>
      %37 = arith.subf %35, %36 : vector<16x256xf32>
      %c0_26 = arith.constant 0 : index
      %c0_27 = arith.constant 0 : index
      %38 = vector.load %arg8[%c0_26, %c0_27] : memref<16x256xf32, #tpu.memory_space<vmem>>, vector<16x256xf32>
      tpu.vector_store %arg8[%c0_26, %c0_27], %37 {strides = array<i32>} : memref<16x256xf32, #tpu.memory_space<vmem>>, vector<16x256xf32>,
      %39 = tpu.iota {dimensions = array<i32: 1>} : vector<16x256xi32>
      %cst_28 = arith.constant dense<0xFF800000> : vector<16xf32>
      %40 = vector.multi_reduction <maximumf>, %37, %cst_28 [1] : vector<16x256xf32> to vector<16xf32>
      %41 = vector.shape_cast %40 : vector<16xf32> to vector<16x1xf32>
      %42 = vector.broadcast %41 : vector<16x1xf32> to vector<16x256xf32>
      %43 = arith.cmpf oeq, %37, %42 : vector<16x256xf32>
      %c256_i32 = arith.constant 256 : i32
      %44 = vector.broadcast %c256_i32 : i32 to vector<16x256xi32>
      %45 = arith.select %43, %39, %44 : vector<16x256xi1>, vector<16x256xi32>
      %cst_29 = arith.constant dense<2147483647> : vector<16xi32>
      %46 = vector.multi_reduction <minsi>, %45, %cst_29 [1] : vector<16x256xi32> to vector<16xi32>
      %47 = vector.shape_cast %46 : vector<16xi32> to vector<16x1xi32>
      %48 = vector.broadcast %47 : vector<16x1xi32> to vector<16x256xi32>
      %49 = arith.cmpi eq, %39, %48 : vector<16x256xi32>
      %cst_30 = arith.constant 0xFF800000 : f32
      %50 = vector.broadcast %cst_30 : f32 to vector<16x256xf32>
      %51 = arith.select %49, %50, %37 : vector<16x256xi1>, vector<16x256xf32>
      %cst_31 = arith.constant dense<0xFF800000> : vector<16xf32>
      %52 = vector.multi_reduction <maximumf>, %51, %cst_31 [1] : vector<16x256xf32> to vector<16xf32>
      %53 = vector.shape_cast %52 : vector<16xf32> to vector<16x1xf32>
      %54 = vector.broadcast %53 : vector<16x1xf32> to vector<16x256xf32>
      %55 = arith.cmpf oeq, %51, %54 : vector<16x256xf32>
      %c256_i32_32 = arith.constant 256 : i32
      %56 = vector.broadcast %c256_i32_32 : i32 to vector<16x256xi32>
      %57 = arith.select %55, %39, %56 : vector<16x256xi1>, vector<16x256xi32>
      %cst_33 = arith.constant dense<2147483647> : vector<16xi32>
      %58 = vector.multi_reduction <minsi>, %57, %cst_33 [1] : vector<16x256xi32> to vector<16xi32>
      %59 = vector.shape_cast %58 : vector<16xi32> to vector<16x1xi32>
      %60 = vector.broadcast %59 : vector<16x1xi32> to vector<16x256xi32>
      %61 = arith.cmpi eq, %39, %60 : vector<16x256xi32>
      %cst_34 = arith.constant 0xFF800000 : f32
      %62 = vector.broadcast %cst_34 : f32 to vector<16x256xf32>
      %63 = arith.select %61, %62, %51 : vector<16x256xi1>, vector<16x256xf32>
      %cst_35 = arith.constant dense<0xFF800000> : vector<16xf32>
      %64 = vector.multi_reduction <maximumf>, %63, %cst_35 [1] : vector<16x256xf32> to vector<16xf32>
      %65 = vector.shape_cast %64 : vector<16xf32> to vector<16x1xf32>
      %66 = vector.broadcast %65 : vector<16x1xf32> to vector<16x256xf32>
      %67 = arith.cmpf oeq, %63, %66 : vector<16x256xf32>
      %c256_i32_36 = arith.constant 256 : i32
      %68 = vector.broadcast %c256_i32_36 : i32 to vector<16x256xi32>
      %69 = arith.select %67, %39, %68 : vector<16x256xi1>, vector<16x256xi32>
      %cst_37 = arith.constant dense<2147483647> : vector<16xi32>
      %70 = vector.multi_reduction <minsi>, %69, %cst_37 [1] : vector<16x256xi32> to vector<16xi32>
      %71 = vector.shape_cast %70 : vector<16xi32> to vector<16x1xi32>
      %72 = vector.broadcast %71 : vector<16x1xi32> to vector<16x256xi32>
      %73 = arith.cmpi eq, %39, %72 : vector<16x256xi32>
      %cst_38 = arith.constant 0xFF800000 : f32
      %74 = vector.broadcast %cst_38 : f32 to vector<16x256xf32>
      %75 = arith.select %73, %74, %63 : vector<16x256xi1>, vector<16x256xf32>
      %cst_39 = arith.constant dense<0xFF800000> : vector<16xf32>
      %76 = vector.multi_reduction <maximumf>, %75, %cst_39 [1] : vector<16x256xf32> to vector<16xf32>
      %77 = vector.shape_cast %76 : vector<16xf32> to vector<16x1xf32>
      %78 = vector.broadcast %77 : vector<16x1xf32> to vector<16x256xf32>
      %79 = arith.cmpf oeq, %75, %78 : vector<16x256xf32>
      %c256_i32_40 = arith.constant 256 : i32
      %80 = vector.broadcast %c256_i32_40 : i32 to vector<16x256xi32>
      %81 = arith.select %79, %39, %80 : vector<16x256xi1>, vector<16x256xi32>
      %cst_41 = arith.constant dense<2147483647> : vector<16xi32>
      %82 = vector.multi_reduction <minsi>, %81, %cst_41 [1] : vector<16x256xi32> to vector<16xi32>
      %83 = vector.shape_cast %82 : vector<16xi32> to vector<16x1xi32>
      %84 = vector.broadcast %83 : vector<16x1xi32> to vector<16x256xi32>
      %85 = arith.cmpi eq, %39, %84 : vector<16x256xi32>
      %cst_42 = arith.constant 0xFF800000 : f32
      %86 = vector.broadcast %cst_42 : f32 to vector<16x256xf32>
      %87 = arith.select %85, %86, %75 : vector<16x256xi1>, vector<16x256xf32>
      %cst_43 = arith.constant dense<0xFF800000> : vector<16xf32>
      %88 = vector.multi_reduction <maximumf>, %87, %cst_43 [1] : vector<16x256xf32> to vector<16xf32>
      %89 = vector.shape_cast %88 : vector<16xf32> to vector<16x1xf32>
      %90 = vector.broadcast %89 : vector<16x1xf32> to vector<16x256xf32>
      %91 = arith.cmpf oeq, %87, %90 : vector<16x256xf32>
      %c256_i32_44 = arith.constant 256 : i32
      %92 = vector.broadcast %c256_i32_44 : i32 to vector<16x256xi32>
      %93 = arith.select %91, %39, %92 : vector<16x256xi1>, vector<16x256xi32>
      %cst_45 = arith.constant dense<2147483647> : vector<16xi32>
      %94 = vector.multi_reduction <minsi>, %93, %cst_45 [1] : vector<16x256xi32> to vector<16xi32>
      %95 = vector.shape_cast %94 : vector<16xi32> to vector<16x1xi32>
      %96 = vector.broadcast %95 : vector<16x1xi32> to vector<16x256xi32>
      %97 = arith.cmpi eq, %39, %96 : vector<16x256xi32>
      %cst_46 = arith.constant 0xFF800000 : f32
      %98 = vector.broadcast %cst_46 : f32 to vector<16x256xf32>
      %99 = arith.select %97, %98, %87 : vector<16x256xi1>, vector<16x256xf32>
      %cst_47 = arith.constant dense<0xFF800000> : vector<16xf32>
      %100 = vector.multi_reduction <maximumf>, %99, %cst_47 [1] : vector<16x256xf32> to vector<16xf32>
      %101 = vector.shape_cast %100 : vector<16xf32> to vector<16x1xf32>
      %102 = vector.broadcast %101 : vector<16x1xf32> to vector<16x256xf32>
      %103 = arith.cmpf oeq, %99, %102 : vector<16x256xf32>
      %c256_i32_48 = arith.constant 256 : i32
      %104 = vector.broadcast %c256_i32_48 : i32 to vector<16x256xi32>
      %105 = arith.select %103, %39, %104 : vector<16x256xi1>, vector<16x256xi32>
      %cst_49 = arith.constant dense<2147483647> : vector<16xi32>
      %106 = vector.multi_reduction <minsi>, %105, %cst_49 [1] : vector<16x256xi32> to vector<16xi32>
      %107 = vector.shape_cast %106 : vector<16xi32> to vector<16x1xi32>
      %108 = vector.broadcast %107 : vector<16x1xi32> to vector<16x256xi32>
      %109 = arith.cmpi eq, %39, %108 : vector<16x256xi32>
      %cst_50 = arith.constant 0xFF800000 : f32
      %110 = vector.broadcast %cst_50 : f32 to vector<16x256xf32>
      %111 = arith.select %109, %110, %99 : vector<16x256xi1>, vector<16x256xf32>
      %cst_51 = arith.constant dense<0xFF800000> : vector<16xf32>
      %112 = vector.multi_reduction <maximumf>, %111, %cst_51 [1] : vector<16x256xf32> to vector<16xf32>
      %113 = vector.shape_cast %112 : vector<16xf32> to vector<16x1xf32>
      %114 = vector.broadcast %113 : vector<16x1xf32> to vector<16x256xf32>
      %115 = arith.cmpf oeq, %111, %114 : vector<16x256xf32>
      %c256_i32_52 = arith.constant 256 : i32
      %116 = vector.broadcast %c256_i32_52 : i32 to vector<16x256xi32>
      %117 = arith.select %115, %39, %116 : vector<16x256xi1>, vector<16x256xi32>
      %cst_53 = arith.constant dense<2147483647> : vector<16xi32>
      %118 = vector.multi_reduction <minsi>, %117, %cst_53 [1] : vector<16x256xi32> to vector<16xi32>
      %119 = vector.shape_cast %118 : vector<16xi32> to vector<16x1xi32>
      %120 = vector.broadcast %119 : vector<16x1xi32> to vector<16x256xi32>
      %121 = arith.cmpi eq, %39, %120 : vector<16x256xi32>
      %cst_54 = arith.constant 0xFF800000 : f32
      %122 = vector.broadcast %cst_54 : f32 to vector<16x256xf32>
      %123 = arith.select %121, %122, %111 : vector<16x256xi1>, vector<16x256xf32>
      %cst_55 = arith.constant dense<0xFF800000> : vector<16xf32>
      %124 = vector.multi_reduction <maximumf>, %123, %cst_55 [1] : vector<16x256xf32> to vector<16xf32>
      %125 = vector.shape_cast %124 : vector<16xf32> to vector<16x1xf32>
      %126 = vector.broadcast %125 : vector<16x1xf32> to vector<16x256xf32>
      %127 = arith.cmpf oeq, %123, %126 : vector<16x256xf32>
      %c256_i32_56 = arith.constant 256 : i32
      %128 = vector.broadcast %c256_i32_56 : i32 to vector<16x256xi32>
      %129 = arith.select %127, %39, %128 : vector<16x256xi1>, vector<16x256xi32>
      %cst_57 = arith.constant dense<2147483647> : vector<16xi32>
      %130 = vector.multi_reduction <minsi>, %129, %cst_57 [1] : vector<16x256xi32> to vector<16xi32>
      %131 = vector.shape_cast %130 : vector<16xi32> to vector<16x1xi32>
      %132 = vector.broadcast %131 : vector<16x1xi32> to vector<16x256xi32>
      %133 = arith.cmpi eq, %39, %132 : vector<16x256xi32>
      %cst_58 = arith.constant 0xFF800000 : f32
      %134 = vector.broadcast %cst_58 : f32 to vector<16x256xf32>
      %135 = arith.select %133, %134, %123 : vector<16x256xi1>, vector<16x256xf32>
      %cst_59 = arith.constant dense<0xFF800000> : vector<16xf32>
      %136 = vector.multi_reduction <maximumf>, %135, %cst_59 [1] : vector<16x256xf32> to vector<16xf32>
      %137 = vector.shape_cast %136 : vector<16xf32> to vector<16x1xf32>
      %138 = vector.broadcast %137 : vector<16x1xf32> to vector<16x256xf32>
      %139 = arith.cmpf oeq, %135, %138 : vector<16x256xf32>
      %c256_i32_60 = arith.constant 256 : i32
      %140 = vector.broadcast %c256_i32_60 : i32 to vector<16x256xi32>
      %141 = arith.select %139, %39, %140 : vector<16x256xi1>, vector<16x256xi32>
      %cst_61 = arith.constant dense<2147483647> : vector<16xi32>
      %142 = vector.multi_reduction <minsi>, %141, %cst_61 [1] : vector<16x256xi32> to vector<16xi32>
      %143 = vector.shape_cast %142 : vector<16xi32> to vector<16x1xi32>
      %144 = vector.broadcast %143 : vector<16x1xi32> to vector<16x256xi32>
      %145 = arith.cmpi eq, %39, %144 : vector<16x256xi32>
      %cst_62 = arith.constant 0xFF800000 : f32
      %146 = vector.broadcast %cst_62 : f32 to vector<16x256xf32>
      %147 = arith.select %145, %146, %135 : vector<16x256xi1>, vector<16x256xf32>
      %cst_63 = arith.constant dense<0xFF800000> : vector<16xf32>
      %148 = vector.multi_reduction <maximumf>, %147, %cst_63 [1] : vector<16x256xf32> to vector<16xf32>
      %149 = vector.shape_cast %148 : vector<16xf32> to vector<16x1xf32>
      %150 = vector.broadcast %149 : vector<16x1xf32> to vector<16x256xf32>
      %151 = arith.cmpf oeq, %147, %150 : vector<16x256xf32>
      %c256_i32_64 = arith.constant 256 : i32
      %152 = vector.broadcast %c256_i32_64 : i32 to vector<16x256xi32>
      %153 = arith.select %151, %39, %152 : vector<16x256xi1>, vector<16x256xi32>
      %cst_65 = arith.constant dense<2147483647> : vector<16xi32>
      %154 = vector.multi_reduction <minsi>, %153, %cst_65 [1] : vector<16x256xi32> to vector<16xi32>
      %155 = vector.shape_cast %154 : vector<16xi32> to vector<16x1xi32>
      %156 = tpu.concatenate %41, %53, %65, %77, %89, %101, %113, %125, %137, %149 in 1 : vector<16x1xf32>, vector<16x1xf32>, vector<16x1xf32>, vector<16x1xf32>, vector<16x1xf32>, vector<16x1xf32>, vector<16x1xf32>, vector<16x1xf32>, vector<16x1xf32>, vector<16x1xf32> -> vector<16x10xf32>
      %c0_66 = arith.constant 0 : index
      %c0_67 = arith.constant 0 : index
      %157 = vector.load %arg9[%c0_66, %c0_67] : memref<16x10xf32, #tpu.memory_space<vmem>>, vector<16x10xf32>
      tpu.vector_store %arg9[%c0_66, %c0_67], %156 {strides = array<i32>} : memref<16x10xf32, #tpu.memory_space<vmem>>, vector<16x10xf32>,
      %158 = tpu.concatenate %47, %59, %71, %83, %95, %107, %119, %131, %143, %155 in 1 : vector<16x1xi32>, vector<16x1xi32>, vector<16x1xi32>, vector<16x1xi32>, vector<16x1xi32>, vector<16x1xi32>, vector<16x1xi32>, vector<16x1xi32>, vector<16x1xi32>, vector<16x1xi32> -> vector<16x10xi32>
      %c0_68 = arith.constant 0 : index
      %c0_69 = arith.constant 0 : index
      %159 = vector.load %arg10[%c0_68, %c0_69] : memref<16x10xi32, #tpu.memory_space<vmem>>, vector<16x10xi32>
      tpu.vector_store %arg10[%c0_68, %c0_69], %158 {strides = array<i32>} : memref<16x10xi32, #tpu.memory_space<vmem>>, vector<16x10xi32>,
    } else {
    }
    return
  }
  func.func @transform_0(%arg0: i32, %arg1: i32) -> (i32, i32) {
    %c0_i32 = arith.constant 0 : i32
    %c0_i32_0 = arith.constant 0 : i32
    return %arg0, %c0_i32 : i32, i32
  }
  func.func @transform_1(%arg0: i32, %arg1: i32) -> (i32, i32) {
    %c0_i32 = arith.constant 0 : i32
    %c0_i32_0 = arith.constant 0 : i32
    %c0_i32_1 = arith.constant 0 : i32
    return %c0_i32, %c0_i32_0 : i32, i32
  }
  func.func @transform_2(%arg0: i32, %arg1: i32) -> (i32, i32) {
    %c0_i32 = arith.constant 0 : i32
    %c0_i32_0 = arith.constant 0 : i32
    %c0_i32_1 = arith.constant 0 : i32
    return %c0_i32, %c0_i32_0 : i32, i32
  }
  func.func @transform_3(%arg0: i32, %arg1: i32) -> (i32, i32) {
    %c0_i32 = arith.constant 0 : i32
    %c0_i32_0 = arith.constant 0 : i32
    return %c0_i32, %arg1 : i32, i32
  }
  func.func @transform_4(%arg0: i32, %arg1: i32) -> (i32, i32) {
    %c0_i32 = arith.constant 0 : i32
    %c0_i32_0 = arith.constant 0 : i32
    return %c0_i32, %arg1 : i32, i32
  }
  func.func @transform_5(%arg0: i32, %arg1: i32) -> (i32, i32) {
    %c0_i32 = arith.constant 0 : i32
    %c0_i32_0 = arith.constant 0 : i32
    return %arg0, %c0_i32 : i32, i32
  }
  func.func @transform_6(%arg0: i32, %arg1: i32) -> (i32, i32) {
    %c0_i32 = arith.constant 0 : i32
    %c0_i32_0 = arith.constant 0 : i32
    return %arg0, %c0_i32 : i32, i32
  }
  func.func @transform_7(%arg0: i32, %arg1: i32) -> (i32, i32) {
    %c0_i32 = arith.constant 0 : i32
    %c0_i32_0 = arith.constant 0 : i32
    return %arg0, %c0_i32 : i32, i32
  }
  func.func @transform_8(%arg0: i32, %arg1: i32) -> (i32, i32) {
    %c0_i32 = arith.constant 0 : i32
    %c0_i32_0 = arith.constant 0 : i32
    return %arg0, %c0_i32 : i32, i32
  }
}

</mosaic_0001>

<llo_original>
// kernel: encoder_forward.14
$region0: #{encoder_forward.14}
  #allocation0 [shape = 'u32[]', space=smem, size = 0x4, offset = 0x4, fixed_abs, tag = 'smem constant byte address 0x4 - core index']
  #allocation1 [shape = 'u32[144,128]{1,0:T(1,128)}', space=vmem, size = 0x12000, scoped, tag = 'internal scratch']
  %s0 = inlined_call_operand.vmem [shape: f32[216,9], index: 0, kind: input, shape index: {}]
  %s1 = inlined_call_operand.vmem [shape: bf16[9,8], index: 1, kind: input, shape index: {}]
  %s2 = inlined_call_operand.vmem [shape: f32[1,8], index: 2, kind: input, shape index: {}]
  %s3 = inlined_call_operand.vmem [shape: bf16[216,8], index: 3, kind: output, shape index: {}]
  %s4 = sld [smem:[#allocation0]]
  $region22: #{encoder_forward.14} parent=0
    _
  %s6 = ssub.s32 1, %s4
  %s7 = scalar_select 0, %s6, %s4
  // Predicated region
  $region2: #{encoder_forward.14} parent=0 // pred_check
    _
  $region3: #{encoder_forward.14} parent=0 // pred_check_branch
    %9 = sbr.rel (0) target = $region5
  $region4: #{encoder_forward.14} parent=0 // pred_region
    _
  $region5: #{encoder_forward.14} parent=0 // pred_fallthru
    _
  // Predicated region
  $region6: #{encoder_forward.14} parent=0 // pred_check
    _
  $region7: #{encoder_forward.14} parent=0 // pred_check_branch
    %11 = sbr.rel (0) target = $region9
  $region8: #{encoder_forward.14} parent=0 // pred_region
    _
  $region9: #{encoder_forward.14} parent=0 // pred_fallthru
    _
  // Predicated region
  $region10: #{encoder_forward.14} parent=0 // pred_check
    _
  $region11: #{encoder_forward.14} parent=0 // pred_check_branch
    %13 = sbr.rel (0) target = $region13
  $region12: #{encoder_forward.14} parent=0 // pred_region
    _
  $region13: #{encoder_forward.14} parent=0 // pred_fallthru
    _
  %v15 = vld [vmem:[%s0] sm:$0xff]
  %v16 = vld [vmem:[%s0 + $0x8] sm:$0xff]
  %v17 = vld [vmem:[%s0 + $0x10] sm:$0xff]
  %v18 = vld [vmem:[%s0 + $0x18] sm:$0xff]
  %v19 = vld [vmem:[%s0 + $0x20] sm:$0xff]
  %v20 = vld [vmem:[%s0 + $0x28] sm:$0xff]
  %v21 = vld [vmem:[%s0 + $0x30] sm:$0xff]
  %v22 = vld [vmem:[%s0 + $0x38] sm:$0xff]
  %v23 = vld [vmem:[%s0 + $0x40] sm:$0xff]
  %v24 = vld [vmem:[%s0 + $0x48] sm:$0xff]
  %v25 = vld [vmem:[%s0 + $0x50] sm:$0xff]
  %v26 = vld [vmem:[%s0 + $0x58] sm:$0xff]
  %v27 = vld [vmem:[%s0 + $0x60] sm:$0xff]
  %v28 = vld [vmem:[%s0 + $0x68] sm:$0xff]
  %v29 = vld [vmem:[%s0 + $0x70] sm:$0xff]
  %v30 = vld [vmem:[%s0 + $0x78] sm:$0xff]
  %v31 = vld [vmem:[%s0 + $0x80] sm:$0xff]
  %v32 = vld [vmem:[%s0 + $0x88] sm:$0xff]
  %v33 = vld [vmem:[%s0 + $0x90] sm:$0xff]
  %v34 = vld [vmem:[%s0 + $0x98] sm:$0xff]
  %v35 = vld [vmem:[%s0 + $0xa0] sm:$0xff]
  %v36 = vld [vmem:[%s0 + $0xa8] sm:$0xff]
  %v37 = vld [vmem:[%s0 + $0xb0] sm:$0xff]
  %v38 = vld [vmem:[%s0 + $0xb8] sm:$0xff]
  %v39 = vld [vmem:[%s0 + $0xc0] sm:$0xff]
  %v40 = vld [vmem:[%s0 + $0xc8] sm:$0xff]
  %v41 = vld [vmem:[%s0 + $0xd0] sm:$0xff]
  %v42 = vpack.c.bf16 %v16, %v15
  %v43 = vpack.c.bf16 %v18, %v17
  %v44 = vpack.c.bf16 %v20, %v19
  %v45 = vpack.c.bf16 %v22, %v21
  %v46 = vpack.c.bf16 %v24, %v23
  %v47 = vpack.c.bf16 %v26, %v25
  %v48 = vpack.c.bf16 %v28, %v27
  %v49 = vpack.c.bf16 %v30, %v29
  %v50 = vpack.c.bf16 %v32, %v31
  %v51 = vpack.c.bf16 %v34, %v33
  %v52 = vpack.c.bf16 %v36, %v35
  %v53 = vpack.c.bf16 %v38, %v37
  %v54 = vpack.c.bf16 %v40, %v39
  %v55 = vpack.c.bf16 %v41, %v41
  %v56 = vld [vmem:[%s1] sm:$0xf]
  %v57 = vld [vmem:[%s1 + $0x4] sm:$0x1]
  %v58 = vld [vmem:[%s2] sm:$0x1]
  %v60 = vlaneseq
  %v61 = vshrl.u32 %v60, 7
  %v62 = vsub.s32 0, %v61
  %v63 = vrot.slane %v58, %v62
  %v67 = vunpack.c.l.b16 %v56
  %v68 = vunpack.c.l.b16 %v57
  %v69 = vpack.c.b16 %v68, %v67
  %vm70 = vcmask 72704
  %v72 = vsel %vm70, %v42, 0
  %v75 = vsel %vm70, %v43, 0
  %v78 = vsel %vm70, %v44, 0
  %v81 = vsel %vm70, %v45, 0
  %v84 = vsel %vm70, %v46, 0
  %v87 = vsel %vm70, %v47, 0
  %v90 = vsel %vm70, %v48, 0
  %v93 = vsel %vm70, %v49, 0
  %v96 = vsel %vm70, %v50, 0
  %v99 = vsel %vm70, %v51, 0
  %v102 = vsel %vm70, %v52, 0
  %v105 = vsel %vm70, %v53, 0
  %v108 = vsel %vm70, %v54, 0
  %v111 = vsel %vm70, %v55, 0
  %vm113 = vcmask 1043456
  %vm114 = vcmask 1044480
  %v115 = vsel %vm113, 4294967295, 65535
  %v116 = vsel %vm114, %v115, 0
  %v118 = vand.u32 %v69, %v116
  %120 = vmatprep.subr.bf16.mxu0 0
  %121 = vmatpush1.bf16.msra.mxu0 %v118
  %122 = vmatprep.subr.bf16.mxu0 0
  %123 = vmatpush1.bf16.msra.mxu0 0
  %124 = vmatprep.subr.bf16.mxu0 0
  %125 = vmatpush1.bf16.msra.mxu0 0
  %126 = vmatprep.subr.bf16.mxu0 0
  %127 = vmatpush1.bf16.msra.mxu0 0
  %128 = vmatprep.subr.bf16.mxu0 0
  %129 = vmatpush1.bf16.msra.mxu0 0
  %130 = vmatprep.subr.bf16.mxu0 0
  %131 = vmatpush1.bf16.msra.mxu0 0
  %132 = vmatprep.subr.bf16.mxu0 0
  %133 = vmatpush1.bf16.msra.mxu0 0
  %134 = vmatprep.subr.bf16.mxu0 0
  %135 = vmatpush1.bf16.msra.mxu0 0
  %136 = vmatprep.subr.bf16.mxu0 0
  %137 = vmatpush1.bf16.msra.mxu0 0
  %138 = vmatprep.subr.bf16.mxu0 0
  %139 = vmatpush1.bf16.msra.mxu0 0
  %140 = vmatprep.subr.bf16.mxu0 0
  %141 = vmatpush1.bf16.msra.mxu0 0
  %142 = vmatprep.subr.bf16.mxu0 0
  %143 = vmatpush1.bf16.msra.mxu0 0
  %144 = vmatprep.subr.bf16.mxu0 0
  %145 = vmatpush1.bf16.msra.mxu0 0
  %146 = vmatprep.subr.bf16.mxu0 0
  %147 = vmatpush1.bf16.msra.mxu0 0
  %148 = vmatprep.subr.bf16.mxu0 0
  %149 = vmatpush1.bf16.msra.mxu0 0
  %150 = vmatprep.subr.bf16.mxu0 0
  %151 = vmatpush1.bf16.msra.mxu0 0
  %152 = vmatprep.mubr.bf16.mxu0 0
  %153 = vmatmul.mubr.bf16.gmra.mrb[0].mxu0 %v72
  %v154 = vpop.f32.mrb[0].mxu0
  %v155 = vadd.f32 %v63, %v154
  %v156 = vpop.f32.mrb[0].mxu0
  %v157 = vpop.f32.mrb[0].mxu0
  %v158 = vadd.f32 %v63, %v157
  %v159 = vpop.f32.mrb[0].mxu0
  %160 = vmatprep.mubr.bf16.mxu0 0
  %161 = vmatmul.mubr.bf16.gmra.mrb[0].mxu0 %v75
  %v162 = vpop.f32.mrb[0].mxu0
  %v163 = vadd.f32 %v63, %v162
  %v164 = vpop.f32.mrb[0].mxu0
  %v165 = vpop.f32.mrb[0].mxu0
  %v166 = vadd.f32 %v63, %v165
  %v167 = vpop.f32.mrb[0].mxu0
  %168 = vmatprep.mubr.bf16.mxu0 0
  %169 = vmatmul.mubr.bf16.gmra.mrb[0].mxu0 %v78
  %v170 = vpop.f32.mrb[0].mxu0
  %v171 = vadd.f32 %v63, %v170
  %v172 = vpop.f32.mrb[0].mxu0
  %v173 = vpop.f32.mrb[0].mxu0
  %v174 = vadd.f32 %v63, %v173
  %v175 = vpop.f32.mrb[0].mxu0
  %176 = vmatprep.mubr.bf16.mxu0 0
  %177 = vmatmul.mubr.bf16.gmra.mrb[0].mxu0 %v81
  %v178 = vpop.f32.mrb[0].mxu0
  %v179 = vadd.f32 %v63, %v178
  %v180 = vpop.f32.mrb[0].mxu0
  %v181 = vpop.f32.mrb[0].mxu0
  %v182 = vadd.f32 %v63, %v181
  %v183 = vpop.f32.mrb[0].mxu0
  %184 = vmatprep.mubr.bf16.mxu0 0
  %185 = vmatmul.mubr.bf16.gmra.mrb[0].mxu0 %v84
  %v186 = vpop.f32.mrb[0].mxu0
  %v187 = vadd.f32 %v63, %v186
  %v188 = vpop.f32.mrb[0].mxu0
  %v189 = vpop.f32.mrb[0].mxu0
  %v190 = vadd.f32 %v63, %v189
  %v191 = vpop.f32.mrb[0].mxu0
  %192 = vmatprep.mubr.bf16.mxu0 0
  %193 = vmatmul.mubr.bf16.gmra.mrb[0].mxu0 %v87
  %v194 = vpop.f32.mrb[0].mxu0
  %v195 = vadd.f32 %v63, %v194
  %v196 = vpop.f32.mrb[0].mxu0
  %v197 = vpop.f32.mrb[0].mxu0
  %v198 = vadd.f32 %v63, %v197
  %v199 = vpop.f32.mrb[0].mxu0
  %200 = vmatprep.mubr.bf16.mxu0 0
  %201 = vmatmul.mubr.bf16.gmra.mrb[0].mxu0 %v90
  %v202 = vpop.f32.mrb[0].mxu0
  %v203 = vadd.f32 %v63, %v202
  %v204 = vpop.f32.mrb[0].mxu0
  %v205 = vpop.f32.mrb[0].mxu0
  %v206 = vadd.f32 %v63, %v205
  %v207 = vpop.f32.mrb[0].mxu0
  %208 = vmatprep.mubr.bf16.mxu0 0
  %209 = vmatmul.mubr.bf16.gmra.mrb[0].mxu0 %v93
  %v210 = vpop.f32.mrb[0].mxu0
  %v211 = vadd.f32 %v63, %v210
  %v212 = vpop.f32.mrb[0].mxu0
  %v213 = vpop.f32.mrb[0].mxu0
  %v214 = vadd.f32 %v63, %v213
  %v215 = vpop.f32.mrb[0].mxu0
  %216 = vmatprep.mubr.bf16.mxu0 0
  %217 = vmatmul.mubr.bf16.gmra.mrb[0].mxu0 %v96
  %v218 = vpop.f32.mrb[0].mxu0
  %v219 = vadd.f32 %v63, %v218
  %v220 = vpop.f32.mrb[0].mxu0
  %v221 = vpop.f32.mrb[0].mxu0
  %v222 = vadd.f32 %v63, %v221
  %v223 = vpop.f32.mrb[0].mxu0
  %224 = vmatprep.mubr.bf16.mxu0 0
  %225 = vmatmul.mubr.bf16.gmra.mrb[0].mxu0 %v99
  %v226 = vpop.f32.mrb[0].mxu0
  %v227 = vadd.f32 %v63, %v226
  %v228 = vpop.f32.mrb[0].mxu0
  %v229 = vpop.f32.mrb[0].mxu0
  %v230 = vadd.f32 %v63, %v229
  %v231 = vpop.f32.mrb[0].mxu0
  %232 = vmatprep.mubr.bf16.mxu0 0
  %233 = vmatmul.mubr.bf16.gmra.mrb[0].mxu0 %v102
  %v234 = vpop.f32.mrb[0].mxu0
  %v235 = vadd.f32 %v63, %v234
  %v236 = vpop.f32.mrb[0].mxu0
  %v237 = vpop.f32.mrb[0].mxu0
  %v238 = vadd.f32 %v63, %v237
  %v239 = vpop.f32.mrb[0].mxu0
  %240 = vmatprep.mubr.bf16.mxu0 0
  %241 = vmatmul.mubr.bf16.gmra.mrb[0].mxu0 %v105
  %v242 = vpop.f32.mrb[0].mxu0
  %v243 = vadd.f32 %v63, %v242
  %v244 = vpop.f32.mrb[0].mxu0
  %v245 = vpop.f32.mrb[0].mxu0
  %v246 = vadd.f32 %v63, %v245
  %v247 = vpop.f32.mrb[0].mxu0
  %248 = vmatprep.mubr.bf16.mxu0 0
  %249 = vmatmul.mubr.bf16.gmra.mrb[0].mxu0 %v108
  %v250 = vpop.f32.mrb[0].mxu0
  %v251 = vadd.f32 %v63, %v250
  %v252 = vpop.f32.mrb[0].mxu0
  %v253 = vpop.f32.mrb[0].mxu0
  %v254 = vadd.f32 %v63, %v253
  %v255 = vpop.f32.mrb[0].mxu0
  %256 = vmatprep.mubr.bf16.mxu0 0
  %257 = vmatmul.mubr.bf16.gmra.mrb[0].mxu0 %v111
  %v258 = vpop.f32.mrb[0].mxu0
  %v259 = vadd.f32 %v63, %v258
  %v260 = vpop.f32.mrb[0].mxu0
  %v261 = vpop.f32.mrb[0].mxu0
  %v262 = vpop.f32.mrb[0].mxu0
  %263 = vdwg.mxu0
  %v264 = vmax.f32 %v155, 0.0
  %v265 = vmax.f32 %v158, 0.0
  %v266 = vmax.f32 %v163, 0.0
  %v267 = vmax.f32 %v166, 0.0
  %v268 = vmax.f32 %v171, 0.0
  %v269 = vmax.f32 %v174, 0.0
  %v270 = vmax.f32 %v179, 0.0
  %v271 = vmax.f32 %v182, 0.0
  %v272 = vmax.f32 %v187, 0.0
  %v273 = vmax.f32 %v190, 0.0
  %v274 = vmax.f32 %v195, 0.0
  %v275 = vmax.f32 %v198, 0.0
  %v276 = vmax.f32 %v203, 0.0
  %v277 = vmax.f32 %v206, 0.0
  %v278 = vmax.f32 %v211, 0.0
  %v279 = vmax.f32 %v214, 0.0
  %v280 = vmax.f32 %v219, 0.0
  %v281 = vmax.f32 %v222, 0.0
  %v282 = vmax.f32 %v227, 0.0
  %v283 = vmax.f32 %v230, 0.0
  %v284 = vmax.f32 %v235, 0.0
  %v285 = vmax.f32 %v238, 0.0
  %v286 = vmax.f32 %v243, 0.0
  %v287 = vmax.f32 %v246, 0.0
  %v288 = vmax.f32 %v251, 0.0
  %v289 = vmax.f32 %v254, 0.0
  %v290 = vmax.f32 %v259, 0.0
  %v291 = vpack.c.bf16 %v265, %v264
  %v292 = vpack.c.bf16 %v267, %v266
  %v293 = vpack.c.bf16 %v269, %v268
  %v294 = vpack.c.bf16 %v271, %v270
  %v295 = vpack.c.bf16 %v273, %v272
  %v296 = vpack.c.bf16 %v275, %v274
  %v297 = vpack.c.bf16 %v277, %v276
  %v298 = vpack.c.bf16 %v279, %v278
  %v299 = vpack.c.bf16 %v281, %v280
  %v300 = vpack.c.bf16 %v283, %v282
  %v301 = vpack.c.bf16 %v285, %v284
  %v302 = vpack.c.bf16 %v287, %v286
  %v303 = vpack.c.bf16 %v289, %v288
  %v304 = vpack.c.bf16 %v290, %v290
  %v319 = vunpack.c.l.b16 %v291
  %v320 = vunpack.c.h.b16 %v291
  %v321 = vunpack.c.l.b16 %v292
  %v322 = vunpack.c.h.b16 %v292
  %v323 = vunpack.c.l.b16 %v293
  %v324 = vunpack.c.h.b16 %v293
  %v325 = vunpack.c.l.b16 %v294
  %v326 = vunpack.c.h.b16 %v294
  %v327 = vunpack.c.l.b16 %v295
  %v328 = vunpack.c.h.b16 %v295
  %v329 = vunpack.c.l.b16 %v296
  %v330 = vunpack.c.h.b16 %v296
  %v331 = vunpack.c.l.b16 %v297
  %v332 = vunpack.c.h.b16 %v297
  %v333 = vunpack.c.l.b16 %v298
  %v334 = vunpack.c.h.b16 %v298
  %v335 = vunpack.c.l.b16 %v299
  %v336 = vunpack.c.h.b16 %v299
  %v337 = vunpack.c.l.b16 %v300
  %v338 = vunpack.c.h.b16 %v300
  %v339 = vunpack.c.l.b16 %v301
  %v340 = vunpack.c.h.b16 %v301
  %v341 = vunpack.c.l.b16 %v302
  %v342 = vunpack.c.h.b16 %v302
  %v343 = vunpack.c.l.b16 %v303
  %v344 = vunpack.c.h.b16 %v303
  %v345 = vunpack.c.l.b16 %v304
  %v346 = vpack.c.b16 %v319, %v319
  %v347 = vpack.c.b16 %v320, %v320
  %v348 = vpack.c.b16 %v321, %v321
  %v349 = vpack.c.b16 %v322, %v322
  %v350 = vpack.c.b16 %v323, %v323
  %v351 = vpack.c.b16 %v324, %v324
  %v352 = vpack.c.b16 %v325, %v325
  %v353 = vpack.c.b16 %v326, %v326
  %v354 = vpack.c.b16 %v327, %v327
  %v355 = vpack.c.b16 %v328, %v328
  %v356 = vpack.c.b16 %v329, %v329
  %v357 = vpack.c.b16 %v330, %v330
  %v358 = vpack.c.b16 %v331, %v331
  %v359 = vpack.c.b16 %v332, %v332
  %v360 = vpack.c.b16 %v333, %v333
  %v361 = vpack.c.b16 %v334, %v334
  %v362 = vpack.c.b16 %v335, %v335
  %v363 = vpack.c.b16 %v336, %v336
  %v364 = vpack.c.b16 %v337, %v337
  %v365 = vpack.c.b16 %v338, %v338
  %v366 = vpack.c.b16 %v339, %v339
  %v367 = vpack.c.b16 %v340, %v340
  %v368 = vpack.c.b16 %v341, %v341
  %v369 = vpack.c.b16 %v342, %v342
  %v370 = vpack.c.b16 %v343, %v343
  %v371 = vpack.c.b16 %v344, %v344
  %v372 = vpack.c.b16 %v345, %v345
  %vm400 = vcmask 60416
  %401 = vst.msk [vmem:[%s3] sm:$0xf] %vm400, %v346
  %402 = vst.msk [vmem:[%s3 + $0x4] sm:$0xf] %vm400, %v347
  %403 = vst.msk [vmem:[%s3 + $0x8] sm:$0xf] %vm400, %v348
  %404 = vst.msk [vmem:[%s3 + $0xc] sm:$0xf] %vm400, %v349
  %405 = vst.msk [vmem:[%s3 + $0x10] sm:$0xf] %vm400, %v350
  %406 = vst.msk [vmem:[%s3 + $0x14] sm:$0xf] %vm400, %v351
  %407 = vst.msk [vmem:[%s3 + $0x18] sm:$0xf] %vm400, %v352
  %408 = vst.msk [vmem:[%s3 + $0x1c] sm:$0xf] %vm400, %v353
  %409 = vst.msk [vmem:[%s3 + $0x20] sm:$0xf] %vm400, %v354
  %410 = vst.msk [vmem:[%s3 + $0x24] sm:$0xf] %vm400, %v355
  %411 = vst.msk [vmem:[%s3 + $0x28] sm:$0xf] %vm400, %v356
  %412 = vst.msk [vmem:[%s3 + $0x2c] sm:$0xf] %vm400, %v357
  %413 = vst.msk [vmem:[%s3 + $0x30] sm:$0xf] %vm400, %v358
  %414 = vst.msk [vmem:[%s3 + $0x34] sm:$0xf] %vm400, %v359
  %415 = vst.msk [vmem:[%s3 + $0x38] sm:$0xf] %vm400, %v360
  %416 = vst.msk [vmem:[%s3 + $0x3c] sm:$0xf] %vm400, %v361
  %417 = vst.msk [vmem:[%s3 + $0x40] sm:$0xf] %vm400, %v362
  %418 = vst.msk [vmem:[%s3 + $0x44] sm:$0xf] %vm400, %v363
  %419 = vst.msk [vmem:[%s3 + $0x48] sm:$0xf] %vm400, %v364
  %420 = vst.msk [vmem:[%s3 + $0x4c] sm:$0xf] %vm400, %v365
  %421 = vst.msk [vmem:[%s3 + $0x50] sm:$0xf] %vm400, %v366
  %422 = vst.msk [vmem:[%s3 + $0x54] sm:$0xf] %vm400, %v367
  %423 = vst.msk [vmem:[%s3 + $0x58] sm:$0xf] %vm400, %v368
  %424 = vst.msk [vmem:[%s3 + $0x5c] sm:$0xf] %vm400, %v369
  %425 = vst.msk [vmem:[%s3 + $0x60] sm:$0xf] %vm400, %v370
  %426 = vst.msk [vmem:[%s3 + $0x64] sm:$0xf] %vm400, %v371
  %427 = vst.msk [vmem:[%s3 + $0x68] sm:$0xf] %vm400, %v372
  // Predicated region
  $region14: #{encoder_forward.14} parent=0 // pred_check
    _
  $region15: #{encoder_forward.14} parent=0 // pred_check_branch
    %429 = sbr.rel (0) target = $region17
  $region16: #{encoder_forward.14} parent=0 // pred_region
    _
  $region17: #{encoder_forward.14} parent=0 // pred_fallthru
    _
  // Predicated region
  $region18: #{encoder_forward.14} parent=0 // pred_check
    _
  $region19: #{encoder_forward.14} parent=0 // pred_check_branch
    %431 = sbr.rel (0) target = $region21
  $region20: #{encoder_forward.14} parent=0 // pred_region
    _
  $region21: #{encoder_forward.14} parent=0 // pred_fallthru
    _

// kernel: encoder_forward.15
$region0: #{encoder_forward.15}
  #allocation0 [shape = 'u32[]', space=smem, size = 0x4, offset = 0x4, fixed_abs, tag = 'smem constant byte address 0x4 - core index']
  #allocation1 [shape = 'u32[144,128]{1,0:T(1,128)}', space=vmem, size = 0x12000, scoped, tag = 'internal scratch']
  %s0 = inlined_call_operand.vmem [shape: bf16[48,72], index: 0, kind: input, shape index: {}]
  %s1 = inlined_call_operand.vmem [shape: bf16[72,8], index: 1, kind: input, shape index: {}]
  %s2 = inlined_call_operand.vmem [shape: f32[1,8], index: 2, kind: input, shape index: {}]
  %s3 = inlined_call_operand.vmem [shape: bf16[48,8], index: 3, kind: output, shape index: {}]
  %s4 = sld [smem:[#allocation0]]
  $region22: #{encoder_forward.15} parent=0
    _
  %s6 = ssub.s32 1, %s4
  %s7 = scalar_select 0, %s6, %s4
  // Predicated region
  $region2: #{encoder_forward.15} parent=0 // pred_check
    _
  $region3: #{encoder_forward.15} parent=0 // pred_check_branch
    %9 = sbr.rel (0) target = $region5
  $region4: #{encoder_forward.15} parent=0 // pred_region
    _
  $region5: #{encoder_forward.15} parent=0 // pred_fallthru
    _
  // Predicated region
  $region6: #{encoder_forward.15} parent=0 // pred_check
    _
  $region7: #{encoder_forward.15} parent=0 // pred_check_branch
    %11 = sbr.rel (0) target = $region9
  $region8: #{encoder_forward.15} parent=0 // pred_region
    _
  $region9: #{encoder_forward.15} parent=0 // pred_fallthru
    _
  // Predicated region
  $region10: #{encoder_forward.15} parent=0 // pred_check
    _
  $region11: #{encoder_forward.15} parent=0 // pred_check_branch
    %13 = sbr.rel (0) target = $region13
  $region12: #{encoder_forward.15} parent=0 // pred_region
    _
  $region13: #{encoder_forward.15} parent=0 // pred_fallthru
    _
  %v15 = vld [vmem:[%s0] sm:$0xf]
  %v16 = vld [vmem:[%s0 + $0x4] sm:$0xf]
  %v17 = vld [vmem:[%s0 + $0x8] sm:$0xf]
  %v18 = vld [vmem:[%s0 + $0xc] sm:$0xf]
  %v19 = vld [vmem:[%s0 + $0x10] sm:$0xf]
  %v20 = vld [vmem:[%s0 + $0x14] sm:$0xf]
  %v21 = vld [vmem:[%s1] sm:$0xf]
  %v22 = vld [vmem:[%s1 + $0x4] sm:$0xf]
  %v23 = vld [vmem:[%s1 + $0x8] sm:$0xf]
  %v24 = vld [vmem:[%s1 + $0xc] sm:$0xf]
  %v25 = vld [vmem:[%s1 + $0x10] sm:$0xf]
  %v26 = vld [vmem:[%s1 + $0x14] sm:$0xf]
  %v27 = vld [vmem:[%s1 + $0x18] sm:$0xf]
  %v28 = vld [vmem:[%s1 + $0x1c] sm:$0xf]
  %v29 = vld [vmem:[%s1 + $0x20] sm:$0xf]
  %v30 = vld [vmem:[%s2] sm:$0x1]
  %v32 = vlaneseq
  %v33 = vshrl.u32 %v32, 7
  %v34 = vsub.s32 0, %v33
  %v35 = vrot.slane %v30, %v34
  %v43 = vunpack.c.l.b16 %v15
  %v44 = vunpack.c.l.b16 %v16
  %v45 = vunpack.c.l.b16 %v17
  %v46 = vunpack.c.l.b16 %v18
  %v47 = vunpack.c.l.b16 %v19
  %v48 = vunpack.c.l.b16 %v20
  %v49 = vpack.c.b16 %v44, %v43
  %v50 = vpack.c.b16 %v46, %v45
  %v51 = vpack.c.b16 %v48, %v47
  %v61 = vunpack.c.l.b16 %v21
  %v62 = vunpack.c.l.b16 %v22
  %v63 = vunpack.c.l.b16 %v23
  %v64 = vunpack.c.l.b16 %v24
  %v65 = vunpack.c.l.b16 %v25
  %v66 = vunpack.c.l.b16 %v26
  %v67 = vunpack.c.l.b16 %v27
  %v68 = vunpack.c.l.b16 %v28
  %v69 = vunpack.c.l.b16 %v29
  %v70 = vpack.c.b16 %v62, %v61
  %v71 = vpack.c.b16 %v64, %v63
  %v72 = vpack.c.b16 %v66, %v65
  %v73 = vpack.c.b16 %v68, %v67
  %v74 = vpack.c.b16 %v69, %v69
  %vm79 = vcmask 588800
  %v81 = vsel %vm79, %v49, 0
  %v84 = vsel %vm79, %v50, 0
  %v87 = vsel %vm79, %v51, 0
  %vm89 = vcmask 1043456
  %v91 = vsel %vm89, %v74, 0
  %93 = vmatprep.subr.bf16.mxu0 0
  %94 = vmatpush1.bf16.msra.mxu0 %v70
  %95 = vmatprep.subr.bf16.mxu0 0
  %96 = vmatpush1.bf16.msra.mxu0 %v71
  %97 = vmatprep.subr.bf16.mxu0 0
  %98 = vmatpush1.bf16.msra.mxu0 %v72
  %99 = vmatprep.subr.bf16.mxu0 0
  %100 = vmatpush1.bf16.msra.mxu0 %v73
  %101 = vmatprep.subr.bf16.mxu0 0
  %102 = vmatpush1.bf16.msra.mxu0 %v91
  %103 = vmatprep.subr.bf16.mxu0 0
  %104 = vmatpush1.bf16.msra.mxu0 0
  %105 = vmatprep.subr.bf16.mxu0 0
  %106 = vmatpush1.bf16.msra.mxu0 0
  %107 = vmatprep.subr.bf16.mxu0 0
  %108 = vmatpush1.bf16.msra.mxu0 0
  %109 = vmatprep.subr.bf16.mxu0 0
  %110 = vmatpush1.bf16.msra.mxu0 0
  %111 = vmatprep.subr.bf16.mxu0 0
  %112 = vmatpush1.bf16.msra.mxu0 0
  %113 = vmatprep.subr.bf16.mxu0 0
  %114 = vmatpush1.bf16.msra.mxu0 0
  %115 = vmatprep.subr.bf16.mxu0 0
  %116 = vmatpush1.bf16.msra.mxu0 0
  %117 = vmatprep.subr.bf16.mxu0 0
  %118 = vmatpush1.bf16.msra.mxu0 0
  %119 = vmatprep.subr.bf16.mxu0 0
  %120 = vmatpush1.bf16.msra.mxu0 0
  %121 = vmatprep.subr.bf16.mxu0 0
  %122 = vmatpush1.bf16.msra.mxu0 0
  %123 = vmatprep.subr.bf16.mxu0 0
  %124 = vmatpush1.bf16.msra.mxu0 0
  %125 = vmatprep.mubr.bf16.mxu0 0
  %126 = vmatmul.mubr.bf16.gmra.mrb[0].mxu0 %v81
  %v127 = vpop.f32.mrb[0].mxu0
  %v128 = vadd.f32 %v35, %v127
  %v129 = vpop.f32.mrb[0].mxu0
  %v130 = vpop.f32.mrb[0].mxu0
  %v131 = vadd.f32 %v35, %v130
  %v132 = vpop.f32.mrb[0].mxu0
  %133 = vmatprep.mubr.bf16.mxu0 0
  %134 = vmatmul.mubr.bf16.gmra.mrb[0].mxu0 %v84
  %v135 = vpop.f32.mrb[0].mxu0
  %v136 = vadd.f32 %v35, %v135
  %v137 = vpop.f32.mrb[0].mxu0
  %v138 = vpop.f32.mrb[0].mxu0
  %v139 = vadd.f32 %v35, %v138
  %v140 = vpop.f32.mrb[0].mxu0
  %141 = vmatprep.mubr.bf16.mxu0 0
  %142 = vmatmul.mubr.bf16.gmra.mrb[0].mxu0 %v87
  %v143 = vpop.f32.mrb[0].mxu0
  %v144 = vadd.f32 %v35, %v143
  %v145 = vpop.f32.mrb[0].mxu0
  %v146 = vpop.f32.mrb[0].mxu0
  %v147 = vadd.f32 %v35, %v146
  %v148 = vpop.f32.mrb[0].mxu0
  %149 = vdwg.mxu0
  %v150 = vmax.f32 %v128, 0.0
  %v151 = vmax.f32 %v131, 0.0
  %v152 = vmax.f32 %v136, 0.0
  %v153 = vmax.f32 %v139, 0.0
  %v154 = vmax.f32 %v144, 0.0
  %v155 = vmax.f32 %v147, 0.0
  %v156 = vpack.c.bf16 %v151, %v150
  %v157 = vpack.c.bf16 %v153, %v152
  %v158 = vpack.c.bf16 %v155, %v154
  %v162 = vunpack.c.l.b16 %v156
  %v163 = vunpack.c.h.b16 %v156
  %v164 = vunpack.c.l.b16 %v157
  %v165 = vunpack.c.h.b16 %v157
  %v166 = vunpack.c.l.b16 %v158
  %v167 = vunpack.c.h.b16 %v158
  %v168 = vpack.c.b16 %v162, %v162
  %v169 = vpack.c.b16 %v163, %v163
  %v170 = vpack.c.b16 %v164, %v164
  %v171 = vpack.c.b16 %v165, %v165
  %v172 = vpack.c.b16 %v166, %v166
  %v173 = vpack.c.b16 %v167, %v167
  %vm180 = vcmask 60416
  %181 = vst.msk [vmem:[%s3] sm:$0xf] %vm180, %v168
  %182 = vst.msk [vmem:[%s3 + $0x4] sm:$0xf] %vm180, %v169
  %183 = vst.msk [vmem:[%s3 + $0x8] sm:$0xf] %vm180, %v170
  %184 = vst.msk [vmem:[%s3 + $0xc] sm:$0xf] %vm180, %v171
  %185 = vst.msk [vmem:[%s3 + $0x10] sm:$0xf] %vm180, %v172
  %186 = vst.msk [vmem:[%s3 + $0x14] sm:$0xf] %vm180, %v173
  // Predicated region
  $region14: #{encoder_forward.15} parent=0 // pred_check
    _
  $region15: #{encoder_forward.15} parent=0 // pred_check_branch
    %188 = sbr.rel (0) target = $region17
  $region16: #{encoder_forward.15} parent=0 // pred_region
    _
  $region17: #{encoder_forward.15} parent=0 // pred_fallthru
    _
  // Predicated region
  $region18: #{encoder_forward.15} parent=0 // pred_check
    _
  $region19: #{encoder_forward.15} parent=0 // pred_check_branch
    %190 = sbr.rel (0) target = $region21
  $region20: #{encoder_forward.15} parent=0 // pred_region
    _
  $region21: #{encoder_forward.15} parent=0 // pred_fallthru
    _

// kernel: encoder_forward.16
$region0: #{encoder_forward.16}
  #allocation0 [shape = 'u32[]', space=smem, size = 0x4, offset = 0x4, fixed_abs, tag = 'smem constant byte address 0x4 - core index']
  #allocation1 [shape = 'u32[144,128]{1,0:T(1,128)}', space=vmem, size = 0x12000, scoped, tag = 'internal scratch']
  %s0 = inlined_call_operand.vmem [shape: bf16[16,24], index: 0, kind: input, shape index: {}]
  %s1 = inlined_call_operand.vmem [shape: bf16[24,128], index: 1, kind: input, shape index: {}]
  %s2 = inlined_call_operand.vmem [shape: f32[1,128], index: 2, kind: input, shape index: {}]
  %s3 = inlined_call_operand.vmem [shape: bf16[16,128], index: 3, kind: output, shape index: {}]
  %s4 = sld [smem:[#allocation0]]
  $region22: #{encoder_forward.16} parent=0
    _
  %s6 = ssub.s32 1, %s4
  %s7 = scalar_select 0, %s6, %s4
  // Predicated region
  $region2: #{encoder_forward.16} parent=0 // pred_check
    _
  $region3: #{encoder_forward.16} parent=0 // pred_check_branch
    %9 = sbr.rel (0) target = $region5
  $region4: #{encoder_forward.16} parent=0 // pred_region
    _
  $region5: #{encoder_forward.16} parent=0 // pred_fallthru
    _
  // Predicated region
  $region6: #{encoder_forward.16} parent=0 // pred_check
    _
  $region7: #{encoder_forward.16} parent=0 // pred_check_branch
    %11 = sbr.rel (0) target = $region9
  $region8: #{encoder_forward.16} parent=0 // pred_region
    _
  $region9: #{encoder_forward.16} parent=0 // pred_fallthru
    _
  // Predicated region
  $region10: #{encoder_forward.16} parent=0 // pred_check
    _
  $region11: #{encoder_forward.16} parent=0 // pred_check_branch
    %13 = sbr.rel (0) target = $region13
  $region12: #{encoder_forward.16} parent=0 // pred_region
    _
  $region13: #{encoder_forward.16} parent=0 // pred_fallthru
    _
  %v15 = vld [vmem:[%s0] sm:$0xf]
  %v16 = vld [vmem:[%s0 + $0x4] sm:$0xf]
  %v17 = vld [vmem:[%s1] sm:$0xf]
  %v18 = vld [vmem:[%s1 + $0x4] sm:$0xf]
  %v19 = vld [vmem:[%s1 + $0x8] sm:$0xf]
  %v20 = vld [vmem:[%s2] sm:$0x1]
  %v22 = vlaneseq
  %v23 = vshrl.u32 %v22, 7
  %v24 = vsub.s32 0, %v23
  %v25 = vrot.slane %v20, %v24
  %v29 = vunpack.c.l.b16 %v15
  %v30 = vunpack.c.l.b16 %v16
  %v31 = vpack.c.b16 %v30, %v29
  %v35 = vunpack.c.l.b16 %v17
  %v36 = vunpack.c.l.b16 %v18
  %v37 = vunpack.c.l.b16 %v19
  %v38 = vpack.c.b16 %v36, %v35
  %v39 = vpack.c.b16 %v37, %v37
  %vm41 = vcmask 195584
  %v43 = vsel %vm41, %v31, 0
  %vm45 = vcmask 1043456
  %v47 = vsel %vm45, %v39, 0
  %49 = vmatprep.subr.bf16.mxu0 0
  %50 = vmatpush1.bf16.msra.mxu0 %v38
  %51 = vmatprep.subr.bf16.mxu0 0
  %52 = vmatpush1.bf16.msra.mxu0 %v47
  %53 = vmatprep.subr.bf16.mxu0 0
  %54 = vmatpush1.bf16.msra.mxu0 0
  %55 = vmatprep.subr.bf16.mxu0 0
  %56 = vmatpush1.bf16.msra.mxu0 0
  %57 = vmatprep.subr.bf16.mxu0 0
  %58 = vmatpush1.bf16.msra.mxu0 0
  %59 = vmatprep.subr.bf16.mxu0 0
  %60 = vmatpush1.bf16.msra.mxu0 0
  %61 = vmatprep.subr.bf16.mxu0 0
  %62 = vmatpush1.bf16.msra.mxu0 0
  %63 = vmatprep.subr.bf16.mxu0 0
  %64 = vmatpush1.bf16.msra.mxu0 0
  %65 = vmatprep.subr.bf16.mxu0 0
  %66 = vmatpush1.bf16.msra.mxu0 0
  %67 = vmatprep.subr.bf16.mxu0 0
  %68 = vmatpush1.bf16.msra.mxu0 0
  %69 = vmatprep.subr.bf16.mxu0 0
  %70 = vmatpush1.bf16.msra.mxu0 0
  %71 = vmatprep.subr.bf16.mxu0 0
  %72 = vmatpush1.bf16.msra.mxu0 0
  %73 = vmatprep.subr.bf16.mxu0 0
  %74 = vmatpush1.bf16.msra.mxu0 0
  %75 = vmatprep.subr.bf16.mxu0 0
  %76 = vmatpush1.bf16.msra.mxu0 0
  %77 = vmatprep.subr.bf16.mxu0 0
  %78 = vmatpush1.bf16.msra.mxu0 0
  %79 = vmatprep.subr.bf16.mxu0 0
  %80 = vmatpush1.bf16.msra.mxu0 0
  %81 = vmatprep.mubr.bf16.mxu0 0
  %82 = vmatmul.mubr.bf16.gmra.mrb[0].mxu0 %v43
  %v83 = vpop.f32.mrb[0].mxu0
  %v84 = vadd.f32 %v25, %v83
  %v85 = vpop.f32.mrb[0].mxu0
  %v86 = vpop.f32.mrb[0].mxu0
  %v87 = vadd.f32 %v25, %v86
  %v88 = vpop.f32.mrb[0].mxu0
  %89 = vdwg.mxu0
  %v90 = vpack.c.bf16 %v87, %v84
  %v92 = vunpack.c.l.b16 %v90
  %v93 = vunpack.c.h.b16 %v90
  %v94 = vpack.c.b16 %v92, %v92
  %v95 = vpack.c.b16 %v93, %v93
  %98 = vst [vmem:[%s3] sm:$0xf] %v94
  %99 = vst [vmem:[%s3 + $0x4] sm:$0xf] %v95
  // Predicated region
  $region14: #{encoder_forward.16} parent=0 // pred_check
    _
  $region15: #{encoder_forward.16} parent=0 // pred_check_branch
    %101 = sbr.rel (0) target = $region17
  $region16: #{encoder_forward.16} parent=0 // pred_region
    _
  $region17: #{encoder_forward.16} parent=0 // pred_fallthru
    _
  // Predicated region
  $region18: #{encoder_forward.16} parent=0 // pred_check
    _
  $region19: #{encoder_forward.16} parent=0 // pred_check_branch
    %103 = sbr.rel (0) target = $region21
  $region20: #{encoder_forward.16} parent=0 // pred_region
    _
  $region21: #{encoder_forward.16} parent=0 // pred_fallthru
    _

// kernel: encoder_forward.17
$region0: #{encoder_forward.17}
  #allocation0 [shape = 'u32[]', space=smem, size = 0x4, offset = 0x4, fixed_abs, tag = 'smem constant byte address 0x4 - core index']
  #allocation1 [shape = 'u32[144,128]{1,0:T(1,128)}', space=vmem, size = 0x12000, scoped, tag = 'internal scratch']
  %s0 = inlined_call_operand.vmem [shape: bf16[16,128], index: 0, kind: input, shape index: {}]
  %s1 = inlined_call_operand.vmem [shape: f32[1,128], index: 1, kind: input, shape index: {}]
  %s2 = inlined_call_operand.vmem [shape: f32[1,128], index: 2, kind: input, shape index: {}]
  %s3 = inlined_call_operand.vmem [shape: bf16[128,384], index: 3, kind: input, shape index: {}]
  %s4 = inlined_call_operand.vmem [shape: f32[1,384], index: 4, kind: input, shape index: {}]
  %s5 = inlined_call_operand.vmem [shape: bf16[16,384], index: 5, kind: output, shape index: {}]
  %s6 = sld [smem:[#allocation0]]
  $region30: #{encoder_forward.17} parent=0
    _
  %s8 = ssub.s32 1, %s6
  %s9 = scalar_select 0, %s8, %s6
  // Predicated region
  $region2: #{encoder_forward.17} parent=0 // pred_check
    _
  $region3: #{encoder_forward.17} parent=0 // pred_check_branch
    %11 = sbr.rel (0) target = $region5
  $region4: #{encoder_forward.17} parent=0 // pred_region
    _
  $region5: #{encoder_forward.17} parent=0 // pred_fallthru
    _
  // Predicated region
  $region6: #{encoder_forward.17} parent=0 // pred_check
    _
  $region7: #{encoder_forward.17} parent=0 // pred_check_branch
    %13 = sbr.rel (0) target = $region9
  $region8: #{encoder_forward.17} parent=0 // pred_region
    _
  $region9: #{encoder_forward.17} parent=0 // pred_fallthru
    _
  // Predicated region
  $region10: #{encoder_forward.17} parent=0 // pred_check
    _
  $region11: #{encoder_forward.17} parent=0 // pred_check_branch
    %15 = sbr.rel (0) target = $region13
  $region12: #{encoder_forward.17} parent=0 // pred_region
    _
  $region13: #{encoder_forward.17} parent=0 // pred_fallthru
    _
  // Predicated region
  $region14: #{encoder_forward.17} parent=0 // pred_check
    _
  $region15: #{encoder_forward.17} parent=0 // pred_check_branch
    %17 = sbr.rel (0) target = $region17
  $region16: #{encoder_forward.17} parent=0 // pred_region
    _
  $region17: #{encoder_forward.17} parent=0 // pred_fallthru
    _
  // Predicated region
  $region18: #{encoder_forward.17} parent=0 // pred_check
    _
  $region19: #{encoder_forward.17} parent=0 // pred_check_branch
    %19 = sbr.rel (0) target = $region21
  $region20: #{encoder_forward.17} parent=0 // pred_region
    _
  $region21: #{encoder_forward.17} parent=0 // pred_fallthru
    _
  %v21 = vld [vmem:[%s0] sm:$0xf]
  %v22 = vld [vmem:[%s0 + $0x4] sm:$0xf]
  %v23 = vunpack.c.l.bf16 %v21
  %v24 = vunpack.c.l.bf16 %v22
  %25 = vadd.xlane.f32.xlu0 %v23
  %v26 = vpop.xlane.xlu0 %25
  %27 = vadd.xlane.f32.xlu0 %v24
  %v28 = vpop.xlane.xlu0 %27
  %v29 = vrcp.pop 128.0
  %v30 = vmul.f32 %v26, %v29
  %v31 = vmul.f32 %v28, %v29
  %v32 = vsub.f32 %v23, %v30
  %v33 = vsub.f32 %v24, %v31
  %v34 = vmul.f32 %v32, %v32
  %v35 = vmul.f32 %v33, %v33
  %36 = vadd.xlane.f32.xlu0 %v34
  %v37 = vpop.xlane.xlu0 %36
  %38 = vadd.xlane.f32.xlu0 %v35
  %v39 = vpop.xlane.xlu0 %38
  %v40 = vmul.f32 %v37, %v29
  %v41 = vmul.f32 %v39, %v29
  %v42 = vadd.f32 %v40, 1e-05
  %v43 = vadd.f32 %v41, 1e-05
  %v44 = vrsqrt.pop %v42
  %v45 = vrsqrt.pop %v43
  %v46 = vmul.f32 %v32, %v44
  %v47 = vmul.f32 %v33, %v45
  %v48 = vld [vmem:[%s1] sm:$0x1]
  %v50 = vlaneseq
  %v51 = vshrl.u32 %v50, 7
  %v52 = vsub.s32 0, %v51
  %v53 = vrot.slane %v48, %v52
  %v55 = vmul.f32 %v46, %v53
  %v56 = vmul.f32 %v47, %v53
  %v57 = vld [vmem:[%s2] sm:$0x1]
  %v59 = vlaneseq
  %v60 = vshrl.u32 %v59, 7
  %v61 = vsub.s32 0, %v60
  %v62 = vrot.slane %v57, %v61
  %v64 = vadd.f32 %v55, %v62
  %v65 = vadd.f32 %v56, %v62
  %v66 = vpack.c.bf16 %v65, %v64
  %v67 = vld [vmem:[%s3] sm:$0xff]
  %v68 = vld [vmem:[%s3 + $0x8] sm:$0xf]
  %v69 = vld [vmem:[%s3 + $0xc] sm:$0xff]
  %v70 = vld [vmem:[%s3 + $0x14] sm:$0xf]
  %v71 = vld [vmem:[%s3 + $0x18] sm:$0xff]
  %v72 = vld [vmem:[%s3 + $0x20] sm:$0xf]
  %v73 = vld [vmem:[%s3 + $0x24] sm:$0xff]
  %v74 = vld [vmem:[%s3 + $0x2c] sm:$0xf]
  %v75 = vld [vmem:[%s3 + $0x30] sm:$0xff]
  %v76 = vld [vmem:[%s3 + $0x38] sm:$0xf]
  %v77 = vld [vmem:[%s3 + $0x3c] sm:$0xff]
  %v78 = vld [vmem:[%s3 + $0x44] sm:$0xf]
  %v79 = vld [vmem:[%s3 + $0x48] sm:$0xff]
  %v80 = vld [vmem:[%s3 + $0x50] sm:$0xf]
  %v81 = vld [vmem:[%s3 + $0x54] sm:$0xff]
  %v82 = vld [vmem:[%s3 + $0x5c] sm:$0xf]
  %v83 = vld [vmem:[%s3 + $0x60] sm:$0xff]
  %v84 = vld [vmem:[%s3 + $0x68] sm:$0xf]
  %v85 = vld [vmem:[%s3 + $0x6c] sm:$0xff]
  %v86 = vld [vmem:[%s3 + $0x74] sm:$0xf]
  %v87 = vld [vmem:[%s3 + $0x78] sm:$0xff]
  %v88 = vld [vmem:[%s3 + $0x80] sm:$0xf]
  %v89 = vld [vmem:[%s3 + $0x84] sm:$0xff]
  %v90 = vld [vmem:[%s3 + $0x8c] sm:$0xf]
  %v91 = vld [vmem:[%s3 + $0x90] sm:$0xff]
  %v92 = vld [vmem:[%s3 + $0x98] sm:$0xf]
  %v93 = vld [vmem:[%s3 + $0x9c] sm:$0xff]
  %v94 = vld [vmem:[%s3 + $0xa4] sm:$0xf]
  %v95 = vld [vmem:[%s3 + $0xa8] sm:$0xff]
  %v96 = vld [vmem:[%s3 + $0xb0] sm:$0xf]
  %v97 = vld [vmem:[%s3 + $0xb4] sm:$0xff]
  %v98 = vld [vmem:[%s3 + $0xbc] sm:$0xf]
  %v99 = vld [vmem:[%s4] sm:$0x7]
  %v101 = vlaneseq
  %v102 = vshrl.u32 %v101, 7
  %v103 = vsub.s32 0, %v102
  %v104 = vrot.slane %v99, %v103
  %v105 = vlaneseq
  %v106 = vshrl.u32 %v105, 7
  %v107 = vsub.s32 1, %v106
  %v108 = vrot.slane %v99, %v107
  %v109 = vlaneseq
  %v110 = vshrl.u32 %v109, 7
  %v111 = vsub.s32 2, %v110
  %v112 = vrot.slane %v99, %v111
  %v148 = vunpack.c.l.b16 %v67
  %v149 = vunpack.c.h.b16 %v67
  %v150 = vunpack.c.l.b16 %v68
  %v151 = vunpack.c.l.b16 %v69
  %v152 = vunpack.c.h.b16 %v69
  %v153 = vunpack.c.l.b16 %v70
  %v154 = vunpack.c.l.b16 %v71
  %v155 = vunpack.c.h.b16 %v71
  %v156 = vunpack.c.l.b16 %v72
  %v157 = vunpack.c.l.b16 %v73
  %v158 = vunpack.c.h.b16 %v73
  %v159 = vunpack.c.l.b16 %v74
  %v160 = vunpack.c.l.b16 %v75
  %v161 = vunpack.c.h.b16 %v75
  %v162 = vunpack.c.l.b16 %v76
  %v163 = vunpack.c.l.b16 %v77
  %v164 = vunpack.c.h.b16 %v77
  %v165 = vunpack.c.l.b16 %v78
  %v166 = vunpack.c.l.b16 %v79
  %v167 = vunpack.c.h.b16 %v79
  %v168 = vunpack.c.l.b16 %v80
  %v169 = vunpack.c.l.b16 %v81
  %v170 = vunpack.c.h.b16 %v81
  %v171 = vunpack.c.l.b16 %v82
  %v172 = vunpack.c.l.b16 %v83
  %v173 = vunpack.c.h.b16 %v83
  %v174 = vunpack.c.l.b16 %v84
  %v175 = vunpack.c.l.b16 %v85
  %v176 = vunpack.c.h.b16 %v85
  %v177 = vunpack.c.l.b16 %v86
  %v178 = vunpack.c.l.b16 %v87
  %v179 = vunpack.c.h.b16 %v87
  %v180 = vunpack.c.l.b16 %v88
  %v181 = vunpack.c.l.b16 %v89
  %v182 = vunpack.c.h.b16 %v89
  %v183 = vunpack.c.l.b16 %v90
  %v184 = vunpack.c.l.b16 %v91
  %v185 = vunpack.c.h.b16 %v91
  %v186 = vunpack.c.l.b16 %v92
  %v187 = vunpack.c.l.b16 %v93
  %v188 = vunpack.c.h.b16 %v93
  %v189 = vunpack.c.l.b16 %v94
  %v190 = vunpack.c.l.b16 %v95
  %v191 = vunpack.c.h.b16 %v95
  %v192 = vunpack.c.l.b16 %v96
  %v193 = vunpack.c.l.b16 %v97
  %v194 = vunpack.c.h.b16 %v97
  %v195 = vunpack.c.l.b16 %v98
  %v196 = vpack.c.b16 %v151, %v148
  %v197 = vpack.c.b16 %v152, %v149
  %v198 = vpack.c.b16 %v153, %v150
  %v199 = vpack.c.b16 %v157, %v154
  %v200 = vpack.c.b16 %v158, %v155
  %v201 = vpack.c.b16 %v159, %v156
  %v202 = vpack.c.b16 %v163, %v160
  %v203 = vpack.c.b16 %v164, %v161
  %v204 = vpack.c.b16 %v165, %v162
  %v205 = vpack.c.b16 %v169, %v166
  %v206 = vpack.c.b16 %v170, %v167
  %v207 = vpack.c.b16 %v171, %v168
  %v208 = vpack.c.b16 %v175, %v172
  %v209 = vpack.c.b16 %v176, %v173
  %v210 = vpack.c.b16 %v177, %v174
  %v211 = vpack.c.b16 %v181, %v178
  %v212 = vpack.c.b16 %v182, %v179
  %v213 = vpack.c.b16 %v183, %v180
  %v214 = vpack.c.b16 %v187, %v184
  %v215 = vpack.c.b16 %v188, %v185
  %v216 = vpack.c.b16 %v189, %v186
  %v217 = vpack.c.b16 %v193, %v190
  %v218 = vpack.c.b16 %v194, %v191
  %v219 = vpack.c.b16 %v195, %v192
  %244 = vmatprep.subr.bf16.mxu0 %v197
  %245 = vmatpush1.bf16.msra.mxu0 %v196
  %246 = vmatprep.subr.bf16.mxu0 %v200
  %247 = vmatpush1.bf16.msra.mxu0 %v199
  %248 = vmatprep.subr.bf16.mxu0 %v203
  %249 = vmatpush1.bf16.msra.mxu0 %v202
  %250 = vmatprep.subr.bf16.mxu0 %v206
  %251 = vmatpush1.bf16.msra.mxu0 %v205
  %252 = vmatprep.subr.bf16.mxu0 %v209
  %253 = vmatpush1.bf16.msra.mxu0 %v208
  %254 = vmatprep.subr.bf16.mxu0 %v212
  %255 = vmatpush1.bf16.msra.mxu0 %v211
  %256 = vmatprep.subr.bf16.mxu0 %v215
  %257 = vmatpush1.bf16.msra.mxu0 %v214
  %258 = vmatprep.subr.bf16.mxu0 %v218
  %259 = vmatpush1.bf16.msra.mxu0 %v217
  %260 = vmatprep.subr.bf16.mxu0 0
  %261 = vmatpush1.bf16.msra.mxu0 0
  %262 = vmatprep.subr.bf16.mxu0 0
  %263 = vmatpush1.bf16.msra.mxu0 0
  %264 = vmatprep.subr.bf16.mxu0 0
  %265 = vmatpush1.bf16.msra.mxu0 0
  %266 = vmatprep.subr.bf16.mxu0 0
  %267 = vmatpush1.bf16.msra.mxu0 0
  %268 = vmatprep.subr.bf16.mxu0 0
  %269 = vmatpush1.bf16.msra.mxu0 0
  %270 = vmatprep.subr.bf16.mxu0 0
  %271 = vmatpush1.bf16.msra.mxu0 0
  %272 = vmatprep.subr.bf16.mxu0 0
  %273 = vmatpush1.bf16.msra.mxu0 0
  %274 = vmatprep.subr.bf16.mxu0 0
  %275 = vmatpush1.bf16.msra.mxu0 0
  %276 = vmatprep.mubr.bf16.mxu0 0
  %277 = vmatmul.mubr.bf16.gmra.mrb[0].mxu0 %v66
  %v278 = vpop.f32.mrb[0].mxu0
  %v279 = vadd.f32 %v104, %v278
  %v280 = vpop.f32.mrb[0].mxu0
  %v281 = vadd.f32 %v108, %v280
  %v282 = vpop.f32.mrb[0].mxu0
  %v283 = vadd.f32 %v104, %v282
  %v284 = vpop.f32.mrb[0].mxu0
  %v285 = vadd.f32 %v108, %v284
  %286 = vdwg.mxu0
  %287 = vmatprep.subr.bf16.mxu0 0
  %288 = vmatpush1.bf16.msra.mxu0 %v198
  %289 = vmatprep.subr.bf16.mxu0 0
  %290 = vmatpush1.bf16.msra.mxu0 %v201
  %291 = vmatprep.subr.bf16.mxu0 0
  %292 = vmatpush1.bf16.msra.mxu0 %v204
  %293 = vmatprep.subr.bf16.mxu0 0
  %294 = vmatpush1.bf16.msra.mxu0 %v207
  %295 = vmatprep.subr.bf16.mxu0 0
  %296 = vmatpush1.bf16.msra.mxu0 %v210
  %297 = vmatprep.subr.bf16.mxu0 0
  %298 = vmatpush1.bf16.msra.mxu0 %v213
  %299 = vmatprep.subr.bf16.mxu0 0
  %300 = vmatpush1.bf16.msra.mxu0 %v216
  %301 = vmatprep.subr.bf16.mxu0 0
  %302 = vmatpush1.bf16.msra.mxu0 %v219
  %303 = vmatprep.subr.bf16.mxu0 0
  %304 = vmatpush1.bf16.msra.mxu0 0
  %305 = vmatprep.subr.bf16.mxu0 0
  %306 = vmatpush1.bf16.msra.mxu0 0
  %307 = vmatprep.subr.bf16.mxu0 0
  %308 = vmatpush1.bf16.msra.mxu0 0
  %309 = vmatprep.subr.bf16.mxu0 0
  %310 = vmatpush1.bf16.msra.mxu0 0
  %311 = vmatprep.subr.bf16.mxu0 0
  %312 = vmatpush1.bf16.msra.mxu0 0
  %313 = vmatprep.subr.bf16.mxu0 0
  %314 = vmatpush1.bf16.msra.mxu0 0
  %315 = vmatprep.subr.bf16.mxu0 0
  %316 = vmatpush1.bf16.msra.mxu0 0
  %317 = vmatprep.subr.bf16.mxu0 0
  %318 = vmatpush1.bf16.msra.mxu0 0
  %319 = vmatprep.mubr.bf16.mxu0 0
  %320 = vmatmul.mubr.bf16.gmra.mrb[0].mxu0 %v66
  %v321 = vpop.f32.mrb[0].mxu0
  %v322 = vadd.f32 %v112, %v321
  %v323 = vpop.f32.mrb[0].mxu0
  %v324 = vpop.f32.mrb[0].mxu0
  %v325 = vadd.f32 %v112, %v324
  %v326 = vpop.f32.mrb[0].mxu0
  %327 = vdwg.mxu0
  %v328 = vpack.c.bf16 %v283, %v279
  %v329 = vpack.c.bf16 %v285, %v281
  %v330 = vpack.c.bf16 %v325, %v322
  %v334 = vunpack.c.l.b16 %v328
  %v335 = vunpack.c.l.b16 %v329
  %v336 = vunpack.c.l.b16 %v330
  %v337 = vunpack.c.h.b16 %v328
  %v338 = vunpack.c.h.b16 %v329
  %v339 = vunpack.c.h.b16 %v330
  %v340 = vpack.c.b16 %v335, %v334
  %v341 = vpack.c.b16 %v336, %v336
  %v342 = vpack.c.b16 %v338, %v337
  %v343 = vpack.c.b16 %v339, %v339
  %348 = vst [vmem:[%s5] sm:$0xff] %v340
  %349 = vst [vmem:[%s5 + $0x8] sm:$0xf] %v341
  %350 = vst [vmem:[%s5 + $0xc] sm:$0xff] %v342
  %351 = vst [vmem:[%s5 + $0x14] sm:$0xf] %v343
  // Predicated region
  $region22: #{encoder_forward.17} parent=0 // pred_check
    _
  $region23: #{encoder_forward.17} parent=0 // pred_check_branch
    %353 = sbr.rel (0) target = $region25
  $region24: #{encoder_forward.17} parent=0 // pred_region
    _
  $region25: #{encoder_forward.17} parent=0 // pred_fallthru
    _
  // Predicated region
  $region26: #{encoder_forward.17} parent=0 // pred_check
    _
  $region27: #{encoder_forward.17} parent=0 // pred_check_branch
    %355 = sbr.rel (0) target = $region29
  $region28: #{encoder_forward.17} parent=0 // pred_region
    _
  $region29: #{encoder_forward.17} parent=0 // pred_fallthru
    _

// kernel: encoder_forward.21
$region0: #{encoder_forward.21}
  #allocation0 [shape = 'u32[]', space=smem, size = 0x4, offset = 0x4, fixed_abs, tag = 'smem constant byte address 0x4 - core index']
  #allocation1 [shape = 'u32[144,128]{1,0:T(1,128)}', space=vmem, size = 0x12000, scoped, tag = 'internal scratch']
  %s0 = inlined_call_operand.vmem [shape: bf16[16,256], index: 0, kind: input, shape index: {}]
  %s1 = inlined_call_operand.vmem [shape: bf16[256,128], index: 1, kind: input, shape index: {}]
  %s2 = inlined_call_operand.vmem [shape: f32[1,128], index: 2, kind: input, shape index: {}]
  %s3 = inlined_call_operand.vmem [shape: bf16[16,128], index: 3, kind: input, shape index: {}]
  %s4 = inlined_call_operand.vmem [shape: bf16[16,128], index: 4, kind: output, shape index: {}]
  %s5 = sld [smem:[#allocation0]]
  $region26: #{encoder_forward.21} parent=0
    _
  %s7 = ssub.s32 1, %s5
  %s8 = scalar_select 0, %s7, %s5
  // Predicated region
  $region2: #{encoder_forward.21} parent=0 // pred_check
    _
  $region3: #{encoder_forward.21} parent=0 // pred_check_branch
    %10 = sbr.rel (0) target = $region5
  $region4: #{encoder_forward.21} parent=0 // pred_region
    _
  $region5: #{encoder_forward.21} parent=0 // pred_fallthru
    _
  // Predicated region
  $region6: #{encoder_forward.21} parent=0 // pred_check
    _
  $region7: #{encoder_forward.21} parent=0 // pred_check_branch
    %12 = sbr.rel (0) target = $region9
  $region8: #{encoder_forward.21} parent=0 // pred_region
    _
  $region9: #{encoder_forward.21} parent=0 // pred_fallthru
    _
  // Predicated region
  $region10: #{encoder_forward.21} parent=0 // pred_check
    _
  $region11: #{encoder_forward.21} parent=0 // pred_check_branch
    %14 = sbr.rel (0) target = $region13
  $region12: #{encoder_forward.21} parent=0 // pred_region
    _
  $region13: #{encoder_forward.21} parent=0 // pred_fallthru
    _
  // Predicated region
  $region14: #{encoder_forward.21} parent=0 // pred_check
    _
  $region15: #{encoder_forward.21} parent=0 // pred_check_branch
    %16 = sbr.rel (0) target = $region17
  $region16: #{encoder_forward.21} parent=0 // pred_region
    _
  $region17: #{encoder_forward.21} parent=0 // pred_fallthru
    _
  %v18 = vld [vmem:[%s0] sm:$0xff]
  %v19 = vld [vmem:[%s0 + $0x8] sm:$0xff]
  %v20 = vld [vmem:[%s1] sm:$0xf]
  %v21 = vld [vmem:[%s1 + $0x4] sm:$0xf]
  %v22 = vld [vmem:[%s1 + $0x8] sm:$0xf]
  %v23 = vld [vmem:[%s1 + $0xc] sm:$0xf]
  %v24 = vld [vmem:[%s1 + $0x10] sm:$0xf]
  %v25 = vld [vmem:[%s1 + $0x14] sm:$0xf]
  %v26 = vld [vmem:[%s1 + $0x18] sm:$0xf]
  %v27 = vld [vmem:[%s1 + $0x1c] sm:$0xf]
  %v28 = vld [vmem:[%s1 + $0x20] sm:$0xf]
  %v29 = vld [vmem:[%s1 + $0x24] sm:$0xf]
  %v30 = vld [vmem:[%s1 + $0x28] sm:$0xf]
  %v31 = vld [vmem:[%s1 + $0x2c] sm:$0xf]
  %v32 = vld [vmem:[%s1 + $0x30] sm:$0xf]
  %v33 = vld [vmem:[%s1 + $0x34] sm:$0xf]
  %v34 = vld [vmem:[%s1 + $0x38] sm:$0xf]
  %v35 = vld [vmem:[%s1 + $0x3c] sm:$0xf]
  %v36 = vld [vmem:[%s1 + $0x40] sm:$0xf]
  %v37 = vld [vmem:[%s1 + $0x44] sm:$0xf]
  %v38 = vld [vmem:[%s1 + $0x48] sm:$0xf]
  %v39 = vld [vmem:[%s1 + $0x4c] sm:$0xf]
  %v40 = vld [vmem:[%s1 + $0x50] sm:$0xf]
  %v41 = vld [vmem:[%s1 + $0x54] sm:$0xf]
  %v42 = vld [vmem:[%s1 + $0x58] sm:$0xf]
  %v43 = vld [vmem:[%s1 + $0x5c] sm:$0xf]
  %v44 = vld [vmem:[%s1 + $0x60] sm:$0xf]
  %v45 = vld [vmem:[%s1 + $0x64] sm:$0xf]
  %v46 = vld [vmem:[%s1 + $0x68] sm:$0xf]
  %v47 = vld [vmem:[%s1 + $0x6c] sm:$0xf]
  %v48 = vld [vmem:[%s1 + $0x70] sm:$0xf]
  %v49 = vld [vmem:[%s1 + $0x74] sm:$0xf]
  %v50 = vld [vmem:[%s1 + $0x78] sm:$0xf]
  %v51 = vld [vmem:[%s1 + $0x7c] sm:$0xf]
  %v52 = vld [vmem:[%s2] sm:$0x1]
  %v54 = vlaneseq
  %v55 = vshrl.u32 %v54, 7
  %v56 = vsub.s32 0, %v55
  %v57 = vrot.slane %v52, %v56
  %v61 = vunpack.c.l.b16 %v18
  %v62 = vunpack.c.h.b16 %v18
  %v63 = vunpack.c.l.b16 %v19
  %v64 = vunpack.c.h.b16 %v19
  %v65 = vpack.c.b16 %v63, %v61
  %v66 = vpack.c.b16 %v64, %v62
  %v101 = vunpack.c.l.b16 %v20
  %v102 = vunpack.c.l.b16 %v21
  %v103 = vunpack.c.l.b16 %v22
  %v104 = vunpack.c.l.b16 %v23
  %v105 = vunpack.c.l.b16 %v24
  %v106 = vunpack.c.l.b16 %v25
  %v107 = vunpack.c.l.b16 %v26
  %v108 = vunpack.c.l.b16 %v27
  %v109 = vunpack.c.l.b16 %v28
  %v110 = vunpack.c.l.b16 %v29
  %v111 = vunpack.c.l.b16 %v30
  %v112 = vunpack.c.l.b16 %v31
  %v113 = vunpack.c.l.b16 %v32
  %v114 = vunpack.c.l.b16 %v33
  %v115 = vunpack.c.l.b16 %v34
  %v116 = vunpack.c.l.b16 %v35
  %v117 = vunpack.c.l.b16 %v36
  %v118 = vunpack.c.l.b16 %v37
  %v119 = vunpack.c.l.b16 %v38
  %v120 = vunpack.c.l.b16 %v39
  %v121 = vunpack.c.l.b16 %v40
  %v122 = vunpack.c.l.b16 %v41
  %v123 = vunpack.c.l.b16 %v42
  %v124 = vunpack.c.l.b16 %v43
  %v125 = vunpack.c.l.b16 %v44
  %v126 = vunpack.c.l.b16 %v45
  %v127 = vunpack.c.l.b16 %v46
  %v128 = vunpack.c.l.b16 %v47
  %v129 = vunpack.c.l.b16 %v48
  %v130 = vunpack.c.l.b16 %v49
  %v131 = vunpack.c.l.b16 %v50
  %v132 = vunpack.c.l.b16 %v51
  %v133 = vpack.c.b16 %v102, %v101
  %v134 = vpack.c.b16 %v104, %v103
  %v135 = vpack.c.b16 %v106, %v105
  %v136 = vpack.c.b16 %v108, %v107
  %v137 = vpack.c.b16 %v110, %v109
  %v138 = vpack.c.b16 %v112, %v111
  %v139 = vpack.c.b16 %v114, %v113
  %v140 = vpack.c.b16 %v116, %v115
  %v141 = vpack.c.b16 %v118, %v117
  %v142 = vpack.c.b16 %v120, %v119
  %v143 = vpack.c.b16 %v122, %v121
  %v144 = vpack.c.b16 %v124, %v123
  %v145 = vpack.c.b16 %v126, %v125
  %v146 = vpack.c.b16 %v128, %v127
  %v147 = vpack.c.b16 %v130, %v129
  %v148 = vpack.c.b16 %v132, %v131
  %165 = vmatprep.subr.bf16.mxu0 0
  %166 = vmatpush1.bf16.msra.mxu0 %v133
  %167 = vmatprep.subr.bf16.mxu0 0
  %168 = vmatpush1.bf16.msra.mxu0 %v134
  %169 = vmatprep.subr.bf16.mxu0 0
  %170 = vmatpush1.bf16.msra.mxu0 %v135
  %171 = vmatprep.subr.bf16.mxu0 0
  %172 = vmatpush1.bf16.msra.mxu0 %v136
  %173 = vmatprep.subr.bf16.mxu0 0
  %174 = vmatpush1.bf16.msra.mxu0 %v137
  %175 = vmatprep.subr.bf16.mxu0 0
  %176 = vmatpush1.bf16.msra.mxu0 %v138
  %177 = vmatprep.subr.bf16.mxu0 0
  %178 = vmatpush1.bf16.msra.mxu0 %v139
  %179 = vmatprep.subr.bf16.mxu0 0
  %180 = vmatpush1.bf16.msra.mxu0 %v140
  %181 = vmatprep.subr.bf16.mxu0 0
  %182 = vmatpush1.bf16.msra.mxu0 %v141
  %183 = vmatprep.subr.bf16.mxu0 0
  %184 = vmatpush1.bf16.msra.mxu0 %v142
  %185 = vmatprep.subr.bf16.mxu0 0
  %186 = vmatpush1.bf16.msra.mxu0 %v143
  %187 = vmatprep.subr.bf16.mxu0 0
  %188 = vmatpush1.bf16.msra.mxu0 %v144
  %189 = vmatprep.subr.bf16.mxu0 0
  %190 = vmatpush1.bf16.msra.mxu0 %v145
  %191 = vmatprep.subr.bf16.mxu0 0
  %192 = vmatpush1.bf16.msra.mxu0 %v146
  %193 = vmatprep.subr.bf16.mxu0 0
  %194 = vmatpush1.bf16.msra.mxu0 %v147
  %195 = vmatprep.subr.bf16.mxu0 0
  %196 = vmatpush1.bf16.msra.mxu0 %v148
  %197 = vmatprep.mubr.bf16.mxu0 %v66
  %198 = vmatmul.mubr.bf16.gmra.mrb[0].mxu0 %v65
  %v199 = vpop.f32.mrb[0].mxu0
  %v200 = vadd.f32 %v57, %v199
  %v201 = vpop.f32.mrb[0].mxu0
  %v202 = vpop.f32.mrb[0].mxu0
  %v203 = vadd.f32 %v57, %v202
  %v204 = vpop.f32.mrb[0].mxu0
  %205 = vdwg.mxu0
  %v206 = vld [vmem:[%s3] sm:$0xf]
  %v207 = vld [vmem:[%s3 + $0x4] sm:$0xf]
  %v208 = vunpack.c.l.bf16 %v206
  %v209 = vunpack.c.l.bf16 %v207
  %v210 = vadd.f32 %v200, %v208
  %v211 = vadd.f32 %v203, %v209
  %v212 = vpack.c.bf16 %v211, %v210
  %v214 = vunpack.c.l.b16 %v212
  %v215 = vunpack.c.h.b16 %v212
  %v216 = vpack.c.b16 %v214, %v214
  %v217 = vpack.c.b16 %v215, %v215
  %220 = vst [vmem:[%s4] sm:$0xf] %v216
  %221 = vst [vmem:[%s4 + $0x4] sm:$0xf] %v217
  // Predicated region
  $region18: #{encoder_forward.21} parent=0 // pred_check
    _
  $region19: #{encoder_forward.21} parent=0 // pred_check_branch
    %223 = sbr.rel (0) target = $region21
  $region20: #{encoder_forward.21} parent=0 // pred_region
    _
  $region21: #{encoder_forward.21} parent=0 // pred_fallthru
    _
  // Predicated region
  $region22: #{encoder_forward.21} parent=0 // pred_check
    _
  $region23: #{encoder_forward.21} parent=0 // pred_check_branch
    %225 = sbr.rel (0) target = $region25
  $region24: #{encoder_forward.21} parent=0 // pred_region
    _
  $region25: #{encoder_forward.21} parent=0 // pred_fallthru
    _

// kernel: encoder_forward.20
$region0: #{encoder_forward.20}
  #allocation0 [shape = 'u32[]', space=smem, size = 0x4, offset = 0x4, fixed_abs, tag = 'smem constant byte address 0x4 - core index']
  #allocation1 [shape = 'u32[144,128]{1,0:T(1,128)}', space=vmem, size = 0x12000, scoped, tag = 'internal scratch']
  %s0 = inlined_call_operand.vmem [shape: bf16[16,128], index: 0, kind: input, shape index: {}]
  %s1 = inlined_call_operand.vmem [shape: f32[1,128], index: 1, kind: input, shape index: {}]
  %s2 = inlined_call_operand.vmem [shape: f32[1,128], index: 2, kind: input, shape index: {}]
  %s3 = inlined_call_operand.vmem [shape: bf16[128,256], index: 3, kind: input, shape index: {}]
  %s4 = inlined_call_operand.vmem [shape: f32[1,256], index: 4, kind: input, shape index: {}]
  %s5 = inlined_call_operand.vmem [shape: bf16[16,256], index: 5, kind: output, shape index: {}]
  %s6 = sld [smem:[#allocation0]]
  $region30: #{encoder_forward.20} parent=0
    _
  %s8 = ssub.s32 1, %s6
  %s9 = scalar_select 0, %s8, %s6
  // Predicated region
  $region2: #{encoder_forward.20} parent=0 // pred_check
    _
  $region3: #{encoder_forward.20} parent=0 // pred_check_branch
    %11 = sbr.rel (0) target = $region5
  $region4: #{encoder_forward.20} parent=0 // pred_region
    _
  $region5: #{encoder_forward.20} parent=0 // pred_fallthru
    _
  // Predicated region
  $region6: #{encoder_forward.20} parent=0 // pred_check
    _
  $region7: #{encoder_forward.20} parent=0 // pred_check_branch
    %13 = sbr.rel (0) target = $region9
  $region8: #{encoder_forward.20} parent=0 // pred_region
    _
  $region9: #{encoder_forward.20} parent=0 // pred_fallthru
    _
  // Predicated region
  $region10: #{encoder_forward.20} parent=0 // pred_check
    _
  $region11: #{encoder_forward.20} parent=0 // pred_check_branch
    %15 = sbr.rel (0) target = $region13
  $region12: #{encoder_forward.20} parent=0 // pred_region
    _
  $region13: #{encoder_forward.20} parent=0 // pred_fallthru
    _
  // Predicated region
  $region14: #{encoder_forward.20} parent=0 // pred_check
    _
  $region15: #{encoder_forward.20} parent=0 // pred_check_branch
    %17 = sbr.rel (0) target = $region17
  $region16: #{encoder_forward.20} parent=0 // pred_region
    _
  $region17: #{encoder_forward.20} parent=0 // pred_fallthru
    _
  // Predicated region
  $region18: #{encoder_forward.20} parent=0 // pred_check
    _
  $region19: #{encoder_forward.20} parent=0 // pred_check_branch
    %19 = sbr.rel (0) target = $region21
  $region20: #{encoder_forward.20} parent=0 // pred_region
    _
  $region21: #{encoder_forward.20} parent=0 // pred_fallthru
    _
  %v21 = vld [vmem:[%s0] sm:$0xf]
  %v22 = vld [vmem:[%s0 + $0x4] sm:$0xf]
  %v23 = vunpack.c.l.bf16 %v21
  %v24 = vunpack.c.l.bf16 %v22
  %25 = vadd.xlane.f32.xlu0 %v23
  %v26 = vpop.xlane.xlu0 %25
  %27 = vadd.xlane.f32.xlu0 %v24
  %v28 = vpop.xlane.xlu0 %27
  %v29 = vrcp.pop 128.0
  %v30 = vmul.f32 %v26, %v29
  %v31 = vmul.f32 %v28, %v29
  %v32 = vsub.f32 %v23, %v30
  %v33 = vsub.f32 %v24, %v31
  %v34 = vmul.f32 %v32, %v32
  %v35 = vmul.f32 %v33, %v33
  %36 = vadd.xlane.f32.xlu0 %v34
  %v37 = vpop.xlane.xlu0 %36
  %38 = vadd.xlane.f32.xlu0 %v35
  %v39 = vpop.xlane.xlu0 %38
  %v40 = vmul.f32 %v37, %v29
  %v41 = vmul.f32 %v39, %v29
  %v42 = vadd.f32 %v40, 1e-05
  %v43 = vadd.f32 %v41, 1e-05
  %v44 = vrsqrt.pop %v42
  %v45 = vrsqrt.pop %v43
  %v46 = vmul.f32 %v32, %v44
  %v47 = vmul.f32 %v33, %v45
  %v48 = vld [vmem:[%s1] sm:$0x1]
  %v50 = vlaneseq
  %v51 = vshrl.u32 %v50, 7
  %v52 = vsub.s32 0, %v51
  %v53 = vrot.slane %v48, %v52
  %v55 = vmul.f32 %v46, %v53
  %v56 = vmul.f32 %v47, %v53
  %v57 = vld [vmem:[%s2] sm:$0x1]
  %v59 = vlaneseq
  %v60 = vshrl.u32 %v59, 7
  %v61 = vsub.s32 0, %v60
  %v62 = vrot.slane %v57, %v61
  %v64 = vadd.f32 %v55, %v62
  %v65 = vadd.f32 %v56, %v62
  %v66 = vpack.c.bf16 %v65, %v64
  %v67 = vld [vmem:[%s3] sm:$0xff]
  %v68 = vld [vmem:[%s3 + $0x8] sm:$0xff]
  %v69 = vld [vmem:[%s3 + $0x10] sm:$0xff]
  %v70 = vld [vmem:[%s3 + $0x18] sm:$0xff]
  %v71 = vld [vmem:[%s3 + $0x20] sm:$0xff]
  %v72 = vld [vmem:[%s3 + $0x28] sm:$0xff]
  %v73 = vld [vmem:[%s3 + $0x30] sm:$0xff]
  %v74 = vld [vmem:[%s3 + $0x38] sm:$0xff]
  %v75 = vld [vmem:[%s3 + $0x40] sm:$0xff]
  %v76 = vld [vmem:[%s3 + $0x48] sm:$0xff]
  %v77 = vld [vmem:[%s3 + $0x50] sm:$0xff]
  %v78 = vld [vmem:[%s3 + $0x58] sm:$0xff]
  %v79 = vld [vmem:[%s3 + $0x60] sm:$0xff]
  %v80 = vld [vmem:[%s3 + $0x68] sm:$0xff]
  %v81 = vld [vmem:[%s3 + $0x70] sm:$0xff]
  %v82 = vld [vmem:[%s3 + $0x78] sm:$0xff]
  %v83 = vld [vmem:[%s4] sm:$0x3]
  %v85 = vlaneseq
  %v86 = vshrl.u32 %v85, 7
  %v87 = vsub.s32 0, %v86
  %v88 = vrot.slane %v83, %v87
  %v89 = vlaneseq
  %v90 = vshrl.u32 %v89, 7
  %v91 = vsub.s32 1, %v90
  %v92 = vrot.slane %v83, %v91
  %v111 = vunpack.c.l.b16 %v67
  %v112 = vunpack.c.h.b16 %v67
  %v113 = vunpack.c.l.b16 %v68
  %v114 = vunpack.c.h.b16 %v68
  %v115 = vunpack.c.l.b16 %v69
  %v116 = vunpack.c.h.b16 %v69
  %v117 = vunpack.c.l.b16 %v70
  %v118 = vunpack.c.h.b16 %v70
  %v119 = vunpack.c.l.b16 %v71
  %v120 = vunpack.c.h.b16 %v71
  %v121 = vunpack.c.l.b16 %v72
  %v122 = vunpack.c.h.b16 %v72
  %v123 = vunpack.c.l.b16 %v73
  %v124 = vunpack.c.h.b16 %v73
  %v125 = vunpack.c.l.b16 %v74
  %v126 = vunpack.c.h.b16 %v74
  %v127 = vunpack.c.l.b16 %v75
  %v128 = vunpack.c.h.b16 %v75
  %v129 = vunpack.c.l.b16 %v76
  %v130 = vunpack.c.h.b16 %v76
  %v131 = vunpack.c.l.b16 %v77
  %v132 = vunpack.c.h.b16 %v77
  %v133 = vunpack.c.l.b16 %v78
  %v134 = vunpack.c.h.b16 %v78
  %v135 = vunpack.c.l.b16 %v79
  %v136 = vunpack.c.h.b16 %v79
  %v137 = vunpack.c.l.b16 %v80
  %v138 = vunpack.c.h.b16 %v80
  %v139 = vunpack.c.l.b16 %v81
  %v140 = vunpack.c.h.b16 %v81
  %v141 = vunpack.c.l.b16 %v82
  %v142 = vunpack.c.h.b16 %v82
  %v143 = vpack.c.b16 %v113, %v111
  %v144 = vpack.c.b16 %v114, %v112
  %v145 = vpack.c.b16 %v117, %v115
  %v146 = vpack.c.b16 %v118, %v116
  %v147 = vpack.c.b16 %v121, %v119
  %v148 = vpack.c.b16 %v122, %v120
  %v149 = vpack.c.b16 %v125, %v123
  %v150 = vpack.c.b16 %v126, %v124
  %v151 = vpack.c.b16 %v129, %v127
  %v152 = vpack.c.b16 %v130, %v128
  %v153 = vpack.c.b16 %v133, %v131
  %v154 = vpack.c.b16 %v134, %v132
  %v155 = vpack.c.b16 %v137, %v135
  %v156 = vpack.c.b16 %v138, %v136
  %v157 = vpack.c.b16 %v141, %v139
  %v158 = vpack.c.b16 %v142, %v140
  %175 = vmatprep.subr.bf16.mxu0 %v144
  %176 = vmatpush1.bf16.msra.mxu0 %v143
  %177 = vmatprep.subr.bf16.mxu0 %v146
  %178 = vmatpush1.bf16.msra.mxu0 %v145
  %179 = vmatprep.subr.bf16.mxu0 %v148
  %180 = vmatpush1.bf16.msra.mxu0 %v147
  %181 = vmatprep.subr.bf16.mxu0 %v150
  %182 = vmatpush1.bf16.msra.mxu0 %v149
  %183 = vmatprep.subr.bf16.mxu0 %v152
  %184 = vmatpush1.bf16.msra.mxu0 %v151
  %185 = vmatprep.subr.bf16.mxu0 %v154
  %186 = vmatpush1.bf16.msra.mxu0 %v153
  %187 = vmatprep.subr.bf16.mxu0 %v156
  %188 = vmatpush1.bf16.msra.mxu0 %v155
  %189 = vmatprep.subr.bf16.mxu0 %v158
  %190 = vmatpush1.bf16.msra.mxu0 %v157
  %191 = vmatprep.subr.bf16.mxu0 0
  %192 = vmatpush1.bf16.msra.mxu0 0
  %193 = vmatprep.subr.bf16.mxu0 0
  %194 = vmatpush1.bf16.msra.mxu0 0
  %195 = vmatprep.subr.bf16.mxu0 0
  %196 = vmatpush1.bf16.msra.mxu0 0
  %197 = vmatprep.subr.bf16.mxu0 0
  %198 = vmatpush1.bf16.msra.mxu0 0
  %199 = vmatprep.subr.bf16.mxu0 0
  %200 = vmatpush1.bf16.msra.mxu0 0
  %201 = vmatprep.subr.bf16.mxu0 0
  %202 = vmatpush1.bf16.msra.mxu0 0
  %203 = vmatprep.subr.bf16.mxu0 0
  %204 = vmatpush1.bf16.msra.mxu0 0
  %205 = vmatprep.subr.bf16.mxu0 0
  %206 = vmatpush1.bf16.msra.mxu0 0
  %207 = vmatprep.mubr.bf16.mxu0 0
  %208 = vmatmul.mubr.bf16.gmra.mrb[0].mxu0 %v66
  %v209 = vpop.f32.mrb[0].mxu0
  %v210 = vadd.f32 %v88, %v209
  %v211 = vpop.f32.mrb[0].mxu0
  %v212 = vadd.f32 %v92, %v211
  %v213 = vpop.f32.mrb[0].mxu0
  %v214 = vadd.f32 %v88, %v213
  %v215 = vpop.f32.mrb[0].mxu0
  %v216 = vadd.f32 %v92, %v215
  %217 = vdwg.mxu0
  %v218 = vmax.f32 %v210, 0.0
  %v219 = vmax.f32 %v212, 0.0
  %v220 = vmax.f32 %v214, 0.0
  %v221 = vmax.f32 %v216, 0.0
  %v222 = vpack.c.bf16 %v220, %v218
  %v223 = vpack.c.bf16 %v221, %v219
  %v226 = vunpack.c.l.b16 %v222
  %v227 = vunpack.c.l.b16 %v223
  %v228 = vunpack.c.h.b16 %v222
  %v229 = vunpack.c.h.b16 %v223
  %v230 = vpack.c.b16 %v227, %v226
  %v231 = vpack.c.b16 %v229, %v228
  %234 = vst [vmem:[%s5] sm:$0xff] %v230
  %235 = vst [vmem:[%s5 + $0x8] sm:$0xff] %v231
  // Predicated region
  $region22: #{encoder_forward.20} parent=0 // pred_check
    _
  $region23: #{encoder_forward.20} parent=0 // pred_check_branch
    %237 = sbr.rel (0) target = $region25
  $region24: #{encoder_forward.20} parent=0 // pred_region
    _
  $region25: #{encoder_forward.20} parent=0 // pred_fallthru
    _
  // Predicated region
  $region26: #{encoder_forward.20} parent=0 // pred_check
    _
  $region27: #{encoder_forward.20} parent=0 // pred_check_branch
    %239 = sbr.rel (0) target = $region29
  $region28: #{encoder_forward.20} parent=0 // pred_region
    _
  $region29: #{encoder_forward.20} parent=0 // pred_fallthru
    _

// kernel: encoder_forward.19
$region0: #{encoder_forward.19}
  #allocation0 [shape = 'u32[]', space=smem, size = 0x4, offset = 0x4, fixed_abs, tag = 'smem constant byte address 0x4 - core index']
  #allocation1 [shape = 'u32[144,128]{1,0:T(1,128)}', space=vmem, size = 0x12000, scoped, tag = 'internal scratch']
  %s0 = inlined_call_operand.vmem [shape: bf16[16,128], index: 0, kind: input, shape index: {}]
  %s1 = inlined_call_operand.vmem [shape: bf16[128,128], index: 1, kind: input, shape index: {}]
  %s2 = inlined_call_operand.vmem [shape: f32[1,128], index: 2, kind: input, shape index: {}]
  %s3 = inlined_call_operand.vmem [shape: bf16[16,128], index: 3, kind: input, shape index: {}]
  %s4 = inlined_call_operand.vmem [shape: bf16[16,128], index: 4, kind: output, shape index: {}]
  %s5 = sld [smem:[#allocation0]]
  $region26: #{encoder_forward.19} parent=0
    _
  %s7 = ssub.s32 1, %s5
  %s8 = scalar_select 0, %s7, %s5
  // Predicated region
  $region2: #{encoder_forward.19} parent=0 // pred_check
    _
  $region3: #{encoder_forward.19} parent=0 // pred_check_branch
    %10 = sbr.rel (0) target = $region5
  $region4: #{encoder_forward.19} parent=0 // pred_region
    _
  $region5: #{encoder_forward.19} parent=0 // pred_fallthru
    _
  // Predicated region
  $region6: #{encoder_forward.19} parent=0 // pred_check
    _
  $region7: #{encoder_forward.19} parent=0 // pred_check_branch
    %12 = sbr.rel (0) target = $region9
  $region8: #{encoder_forward.19} parent=0 // pred_region
    _
  $region9: #{encoder_forward.19} parent=0 // pred_fallthru
    _
  // Predicated region
  $region10: #{encoder_forward.19} parent=0 // pred_check
    _
  $region11: #{encoder_forward.19} parent=0 // pred_check_branch
    %14 = sbr.rel (0) target = $region13
  $region12: #{encoder_forward.19} parent=0 // pred_region
    _
  $region13: #{encoder_forward.19} parent=0 // pred_fallthru
    _
  // Predicated region
  $region14: #{encoder_forward.19} parent=0 // pred_check
    _
  $region15: #{encoder_forward.19} parent=0 // pred_check_branch
    %16 = sbr.rel (0) target = $region17
  $region16: #{encoder_forward.19} parent=0 // pred_region
    _
  $region17: #{encoder_forward.19} parent=0 // pred_fallthru
    _
  %v18 = vld [vmem:[%s0] sm:$0xf]
  %v19 = vld [vmem:[%s0 + $0x4] sm:$0xf]
  %v20 = vld [vmem:[%s1] sm:$0xf]
  %v21 = vld [vmem:[%s1 + $0x4] sm:$0xf]
  %v22 = vld [vmem:[%s1 + $0x8] sm:$0xf]
  %v23 = vld [vmem:[%s1 + $0xc] sm:$0xf]
  %v24 = vld [vmem:[%s1 + $0x10] sm:$0xf]
  %v25 = vld [vmem:[%s1 + $0x14] sm:$0xf]
  %v26 = vld [vmem:[%s1 + $0x18] sm:$0xf]
  %v27 = vld [vmem:[%s1 + $0x1c] sm:$0xf]
  %v28 = vld [vmem:[%s1 + $0x20] sm:$0xf]
  %v29 = vld [vmem:[%s1 + $0x24] sm:$0xf]
  %v30 = vld [vmem:[%s1 + $0x28] sm:$0xf]
  %v31 = vld [vmem:[%s1 + $0x2c] sm:$0xf]
  %v32 = vld [vmem:[%s1 + $0x30] sm:$0xf]
  %v33 = vld [vmem:[%s1 + $0x34] sm:$0xf]
  %v34 = vld [vmem:[%s1 + $0x38] sm:$0xf]
  %v35 = vld [vmem:[%s1 + $0x3c] sm:$0xf]
  %v36 = vld [vmem:[%s2] sm:$0x1]
  %v38 = vlaneseq
  %v39 = vshrl.u32 %v38, 7
  %v40 = vsub.s32 0, %v39
  %v41 = vrot.slane %v36, %v40
  %v45 = vunpack.c.l.b16 %v18
  %v46 = vunpack.c.l.b16 %v19
  %v47 = vpack.c.b16 %v46, %v45
  %v65 = vunpack.c.l.b16 %v20
  %v66 = vunpack.c.l.b16 %v21
  %v67 = vunpack.c.l.b16 %v22
  %v68 = vunpack.c.l.b16 %v23
  %v69 = vunpack.c.l.b16 %v24
  %v70 = vunpack.c.l.b16 %v25
  %v71 = vunpack.c.l.b16 %v26
  %v72 = vunpack.c.l.b16 %v27
  %v73 = vunpack.c.l.b16 %v28
  %v74 = vunpack.c.l.b16 %v29
  %v75 = vunpack.c.l.b16 %v30
  %v76 = vunpack.c.l.b16 %v31
  %v77 = vunpack.c.l.b16 %v32
  %v78 = vunpack.c.l.b16 %v33
  %v79 = vunpack.c.l.b16 %v34
  %v80 = vunpack.c.l.b16 %v35
  %v81 = vpack.c.b16 %v66, %v65
  %v82 = vpack.c.b16 %v68, %v67
  %v83 = vpack.c.b16 %v70, %v69
  %v84 = vpack.c.b16 %v72, %v71
  %v85 = vpack.c.b16 %v74, %v73
  %v86 = vpack.c.b16 %v76, %v75
  %v87 = vpack.c.b16 %v78, %v77
  %v88 = vpack.c.b16 %v80, %v79
  %97 = vmatprep.subr.bf16.mxu0 0
  %98 = vmatpush1.bf16.msra.mxu0 %v81
  %99 = vmatprep.subr.bf16.mxu0 0
  %100 = vmatpush1.bf16.msra.mxu0 %v82
  %101 = vmatprep.subr.bf16.mxu0 0
  %102 = vmatpush1.bf16.msra.mxu0 %v83
  %103 = vmatprep.subr.bf16.mxu0 0
  %104 = vmatpush1.bf16.msra.mxu0 %v84
  %105 = vmatprep.subr.bf16.mxu0 0
  %106 = vmatpush1.bf16.msra.mxu0 %v85
  %107 = vmatprep.subr.bf16.mxu0 0
  %108 = vmatpush1.bf16.msra.mxu0 %v86
  %109 = vmatprep.subr.bf16.mxu0 0
  %110 = vmatpush1.bf16.msra.mxu0 %v87
  %111 = vmatprep.subr.bf16.mxu0 0
  %112 = vmatpush1.bf16.msra.mxu0 %v88
  %113 = vmatprep.subr.bf16.mxu0 0
  %114 = vmatpush1.bf16.msra.mxu0 0
  %115 = vmatprep.subr.bf16.mxu0 0
  %116 = vmatpush1.bf16.msra.mxu0 0
  %117 = vmatprep.subr.bf16.mxu0 0
  %118 = vmatpush1.bf16.msra.mxu0 0
  %119 = vmatprep.subr.bf16.mxu0 0
  %120 = vmatpush1.bf16.msra.mxu0 0
  %121 = vmatprep.subr.bf16.mxu0 0
  %122 = vmatpush1.bf16.msra.mxu0 0
  %123 = vmatprep.subr.bf16.mxu0 0
  %124 = vmatpush1.bf16.msra.mxu0 0
  %125 = vmatprep.subr.bf16.mxu0 0
  %126 = vmatpush1.bf16.msra.mxu0 0
  %127 = vmatprep.subr.bf16.mxu0 0
  %128 = vmatpush1.bf16.msra.mxu0 0
  %129 = vmatprep.mubr.bf16.mxu0 0
  %130 = vmatmul.mubr.bf16.gmra.mrb[0].mxu0 %v47
  %v131 = vpop.f32.mrb[0].mxu0
  %v132 = vadd.f32 %v41, %v131
  %v133 = vpop.f32.mrb[0].mxu0
  %v134 = vpop.f32.mrb[0].mxu0
  %v135 = vadd.f32 %v41, %v134
  %v136 = vpop.f32.mrb[0].mxu0
  %137 = vdwg.mxu0
  %v138 = vld [vmem:[%s3] sm:$0xf]
  %v139 = vld [vmem:[%s3 + $0x4] sm:$0xf]
  %v140 = vunpack.c.l.bf16 %v138
  %v141 = vunpack.c.l.bf16 %v139
  %v142 = vadd.f32 %v132, %v140
  %v143 = vadd.f32 %v135, %v141
  %v144 = vpack.c.bf16 %v143, %v142
  %v146 = vunpack.c.l.b16 %v144
  %v147 = vunpack.c.h.b16 %v144
  %v148 = vpack.c.b16 %v146, %v146
  %v149 = vpack.c.b16 %v147, %v147
  %152 = vst [vmem:[%s4] sm:$0xf] %v148
  %153 = vst [vmem:[%s4 + $0x4] sm:$0xf] %v149
  // Predicated region
  $region18: #{encoder_forward.19} parent=0 // pred_check
    _
  $region19: #{encoder_forward.19} parent=0 // pred_check_branch
    %155 = sbr.rel (0) target = $region21
  $region20: #{encoder_forward.19} parent=0 // pred_region
    _
  $region21: #{encoder_forward.19} parent=0 // pred_fallthru
    _
  // Predicated region
  $region22: #{encoder_forward.19} parent=0 // pred_check
    _
  $region23: #{encoder_forward.19} parent=0 // pred_check_branch
    %157 = sbr.rel (0) target = $region25
  $region24: #{encoder_forward.19} parent=0 // pred_region
    _
  $region25: #{encoder_forward.19} parent=0 // pred_fallthru
    _

// kernel: encoder_forward.18
$region0: #{encoder_forward.18}
  #allocation0 [shape = 'u32[]', space=smem, size = 0x4, offset = 0x4, fixed_abs, tag = 'smem constant byte address 0x4 - core index']
  #allocation1 [shape = 'u32[144,128]{1,0:T(1,128)}', space=vmem, size = 0x12000, scoped, tag = 'internal scratch']
  #allocation2 [shape = 'f32[7,4]{1,0:T(8,128)}', space=vmem, size = 0x1000, scoped, tag = 'scratch operand']
  #allocation3 [shape = 'f32[7,4]{1,0:T(8,128)}', space=vmem, size = 0x1000, scoped, tag = 'scratch operand']
  #allocation4 [shape = 'f32[7,128]{1,0:T(8,128)}', space=vmem, size = 0x1000, scoped, tag = 'scratch operand']
  %s0 = inlined_call_operand.vmem [shape: bf16[2,7,384], index: 0, kind: input, shape index: {}, may-alias: {0,1,2}]
  %s1 = inlined_call_operand.vmem [shape: bf16[2,7,384], index: 1, kind: input, shape index: {}, may-alias: {0,1,2}]
  %s2 = inlined_call_operand.vmem [shape: bf16[2,7,384], index: 2, kind: input, shape index: {}, may-alias: {0,1,2}]
  %s3 = inlined_call_operand.vmem [shape: f32[2,1,7], index: 3, kind: input, shape index: {}]
  %s4 = inlined_call_operand.vmem [shape: bf16[2,7,128], index: 4, kind: output, shape index: {}]
  %s5 = sld [smem:[#allocation0]]
  $region57: #{encoder_forward.18} parent=0
    _
  %s7 = ssub.s32 1, %s5
  %s8 = scalar_select 0, %s7, %s5
  loop: start=0, step=1, limit=4
  $region2: #{encoder_forward.18} parent=0 // loop_pre_header
    _
  $region3: #{encoder_forward.18} parent=0 // loop_header
    %s10 = sphi 0, %s14
    %p11 = scmp.ge.s32.totalorder %s10, 4
    %s17 = sphi 0, %s36
    %s18 = sphi 0, %s32
    %s19 = sphi 0, %s28
    %s20 = sphi 0, %s17
    %s21 = sphi 0, %s18
    %s22 = sphi 0, %s19
    %s23 = sphi 0, %s20
    %s24 = sphi 0, %s21
    %s25 = sphi 0, %s22
    %s41 = sphi 0, %s43
    %s44 = sphi 0, %s41
    %s45 = sphi 0, %s44
    %s61 = sphi 0, %s45
    %s69 = sphi 0, %s71
    %s72 = sphi 0, %s69
    %s73 = sphi 0, %s72
    %s89 = sphi 0, %s73
    %s97 = sphi 0, %s99
    %s100 = sphi 0, %s97
    %s101 = sphi 0, %s100
    %s117 = sphi 0, %s101
    %s125 = sphi 0, %s127
    %s128 = sphi 0, %s125
    %s129 = sphi 0, %s128
    %s145 = sphi 0, %s129
    %s153 = sphi 0, %s155
    %s156 = sphi 0, %s153
    %s157 = sphi 0, %s156
    %s173 = sphi 0, %s157
  $region4: #{encoder_forward.18} parent=0 // loop_header_branch
    %13 = sbr.rel (%p11) target = $region8
  $region5: #{encoder_forward.18} parent=0 // loop_body
    %s15 = ssub.s32 %s10, 1
    %s16 = ssub.s32 %s10, 2
    %s26 = sadd.s32 1, %s19
    %p27 = scmp.ge.s32.totalorder %s26, 1
    %s28 = scalar_select %p27, 0, %s26
    %s29 = sadd.s32 1, %s18
    %s30 = scalar_select %p27, %s29, %s18
    %p31 = scmp.ge.s32.totalorder %s30, 1
    %s32 = scalar_select %p31, 0, %s30
    %s33 = sadd.s32 1, %s17
    %s34 = scalar_select %p31, %s33, %s17
    %p35 = scmp.ge.s32.totalorder %s34, 2
    %s36 = scalar_select %p35, 0, %s34
    %s37 = ssub.s32 %s17, %s36
    %s38 = ssub.s32 %s18, %s32
    %s39 = sor.u32 %s37, %s38
    %p40 = scmp.eq.s32.totalorder %s39, 0
    %s42 = sadd.s32 %s41, 1
    %s43 = scalar_select %p40, %s41, %s42
    %p46 = pneg %p40
    %p47 = scmp.eq.s32.totalorder %s10, 1
    %p48 = por %p46, %p47
    %p49 = scmp.ne.s32.totalorder %s41, %s44
    %p50 = scmp.eq.s32.totalorder %s10, 0
    %p51 = por %p49, %p50
    %p52 = scmp.ne.s32.totalorder %s41, %s44
    %p53 = scmp.eq.s32.totalorder %s15, 1
    %p54 = por %p52, %p53
    %p55 = scmp.ne.s32.totalorder %s44, %s45
    %p56 = scmp.eq.s32.totalorder %s15, 0
    %p57 = por %p55, %p56
    %p58 = scmp.ne.s32.totalorder %s44, %s45
    %p59 = scmp.eq.s32.totalorder %s16, 1
    %p60 = por %p58, %p59
    %p62 = scmp.ne.s32.totalorder %s45, %s61
    %p63 = scmp.eq.s32.totalorder %s16, 0
    %p64 = por %p62, %p63
    %s65 = ssub.s32 %s17, %s36
    %s66 = ssub.s32 %s19, %s28
    %s67 = sor.u32 %s65, %s66
    %p68 = scmp.eq.s32.totalorder %s67, 0
    %s70 = sadd.s32 %s69, 1
    %s71 = scalar_select %p68, %s69, %s70
    %p74 = pneg %p68
    %p75 = scmp.eq.s32.totalorder %s10, 1
    %p76 = por %p74, %p75
    %p77 = scmp.ne.s32.totalorder %s69, %s72
    %p78 = scmp.eq.s32.totalorder %s10, 0
    %p79 = por %p77, %p78
    %p80 = scmp.ne.s32.totalorder %s69, %s72
    %p81 = scmp.eq.s32.totalorder %s15, 1
    %p82 = por %p80, %p81
    %p83 = scmp.ne.s32.totalorder %s72, %s73
    %p84 = scmp.eq.s32.totalorder %s15, 0
    %p85 = por %p83, %p84
    %p86 = scmp.ne.s32.totalorder %s72, %s73
    %p87 = scmp.eq.s32.totalorder %s16, 1
    %p88 = por %p86, %p87
    %p90 = scmp.ne.s32.totalorder %s73, %s89
    %p91 = scmp.eq.s32.totalorder %s16, 0
    %p92 = por %p90, %p91
    %s93 = ssub.s32 %s17, %s36
    %s94 = ssub.s32 %s19, %s28
    %s95 = sor.u32 %s93, %s94
    %p96 = scmp.eq.s32.totalorder %s95, 0
    %s98 = sadd.s32 %s97, 1
    %s99 = scalar_select %p96, %s97, %s98
    %p102 = pneg %p96
    %p103 = scmp.eq.s32.totalorder %s10, 1
    %p104 = por %p102, %p103
    %p105 = scmp.ne.s32.totalorder %s97, %s100
    %p106 = scmp.eq.s32.totalorder %s10, 0
    %p107 = por %p105, %p106
    %p108 = scmp.ne.s32.totalorder %s97, %s100
    %p109 = scmp.eq.s32.totalorder %s15, 1
    %p110 = por %p108, %p109
    %p111 = scmp.ne.s32.totalorder %s100, %s101
    %p112 = scmp.eq.s32.totalorder %s15, 0
    %p113 = por %p111, %p112
    %p114 = scmp.ne.s32.totalorder %s100, %s101
    %p115 = scmp.eq.s32.totalorder %s16, 1
    %p116 = por %p114, %p115
    %p118 = scmp.ne.s32.totalorder %s101, %s117
    %p119 = scmp.eq.s32.totalorder %s16, 0
    %p120 = por %p118, %p119
    %s121 = ssub.s32 %s17, %s36
    %s122 = ssub.s32 %s19, %s28
    %s123 = sor.u32 %s121, %s122
    %p124 = scmp.eq.s32.totalorder %s123, 0
    %s126 = sadd.s32 %s125, 1
    %s127 = scalar_select %p124, %s125, %s126
    %p130 = pneg %p124
    %p131 = scmp.eq.s32.totalorder %s10, 1
    %p132 = por %p130, %p131
    %p133 = scmp.ne.s32.totalorder %s125, %s128
    %p134 = scmp.eq.s32.totalorder %s10, 0
    %p135 = por %p133, %p134
    %p136 = scmp.ne.s32.totalorder %s125, %s128
    %p137 = scmp.eq.s32.totalorder %s15, 1
    %p138 = por %p136, %p137
    %p139 = scmp.ne.s32.totalorder %s128, %s129
    %p140 = scmp.eq.s32.totalorder %s15, 0
    %p141 = por %p139, %p140
    %p142 = scmp.ne.s32.totalorder %s128, %s129
    %p143 = scmp.eq.s32.totalorder %s16, 1
    %p144 = por %p142, %p143
    %p146 = scmp.ne.s32.totalorder %s129, %s145
    %p147 = scmp.eq.s32.totalorder %s16, 0
    %p148 = por %p146, %p147
    %s149 = ssub.s32 %s17, %s36
    %s150 = ssub.s32 %s18, %s32
    %s151 = sor.u32 %s149, %s150
    %p152 = scmp.eq.s32.totalorder %s151, 0
    %s154 = sadd.s32 %s153, 1
    %s155 = scalar_select %p152, %s153, %s154
    %p158 = pneg %p152
    %p159 = scmp.eq.s32.totalorder %s10, 1
    %p160 = por %p158, %p159
    %p161 = scmp.ne.s32.totalorder %s153, %s156
    %p162 = scmp.eq.s32.totalorder %s10, 0
    %p163 = por %p161, %p162
    %p164 = scmp.ne.s32.totalorder %s153, %s156
    %p165 = scmp.eq.s32.totalorder %s15, 1
    %p166 = por %p164, %p165
    %p167 = scmp.ne.s32.totalorder %s156, %s157
    %p168 = scmp.eq.s32.totalorder %s15, 0
    %p169 = por %p167, %p168
    %p170 = scmp.ne.s32.totalorder %s156, %s157
    %p171 = scmp.eq.s32.totalorder %s16, 1
    %p172 = por %p170, %p171
    %p174 = scmp.ne.s32.totalorder %s157, %s173
    %p175 = scmp.eq.s32.totalorder %s16, 0
    %p176 = por %p174, %p175
    %p177 = scmp.le.s32.totalorder 1, %s10
    %p178 = scmp.lt.s32.totalorder %s10, 3
    %p179 = pnand %p177, %p178
    %p180 = pneg %p179
    // Predicated region
    $region9: #{encoder_forward.18} parent=5 // pred_check
      _
    $region10: #{encoder_forward.18} parent=5 // pred_check_branch
      %182 = sbr.rel (%p179) target = $region12
    $region11: #{encoder_forward.18} parent=5 // pred_region
      %s183 = ssub.s32 %s10, 1
    $region12: #{encoder_forward.18} parent=5 // pred_fallthru
      _
    %p184 = scmp.lt.s32.totalorder %s10, 2
    // Predicated region
    $region13: #{encoder_forward.18} parent=5 // pred_check
      %p185 = pneg %p184
    $region14: #{encoder_forward.18} parent=5 // pred_check_branch
      %187 = sbr.rel (%p185) target = $region16
    $region15: #{encoder_forward.18} parent=5 // pred_region
      // Predicated region
      $region17: #{encoder_forward.18} parent=15 // pred_check
        %p188 = pneg %p51
      $region18: #{encoder_forward.18} parent=15 // pred_check_branch
        %190 = sbr.rel (%p188) target = $region20
      $region19: #{encoder_forward.18} parent=15 // pred_region
        %p191 = scmp.lt.s32.totalorder %s17, 1
        %s192 = scalar_select %p191, %s17, 1
        %p193 = scmp.lt.s32.totalorder %s18, 0
        %s194 = scalar_select %p193, %s18, 0
        %s195 = smul.addr %s194, 3
        %s196 = smul.addr %s192, 3
        %s197 = sadd.s32 %s195, %s196
        %s198 = smul.addr %s197, 4
        %s199 = scalar_lea.vmem %s0, %s198
      $region20: #{encoder_forward.18} parent=15 // pred_fallthru
        _
      // Predicated region
      $region21: #{encoder_forward.18} parent=15 // pred_check
        %p200 = pneg %p79
      $region22: #{encoder_forward.18} parent=15 // pred_check_branch
        %202 = sbr.rel (%p200) target = $region24
      $region23: #{encoder_forward.18} parent=15 // pred_region
        %p203 = scmp.lt.s32.totalorder %s17, 1
        %s204 = scalar_select %p203, %s17, 1
        %p205 = scmp.lt.s32.totalorder %s19, 0
        %s206 = scalar_select %p205, %s19, 0
        %s207 = smul.addr %s206, 3
        %s208 = sadd.s32 1, %s207
        %s209 = smul.addr %s204, 3
        %s210 = sadd.s32 %s208, %s209
        %s211 = smul.addr %s210, 4
        %s212 = scalar_lea.vmem %s1, %s211
      $region24: #{encoder_forward.18} parent=15 // pred_fallthru
        _
      // Predicated region
      $region25: #{encoder_forward.18} parent=15 // pred_check
        %p213 = pneg %p107
      $region26: #{encoder_forward.18} parent=15 // pred_check_branch
        %215 = sbr.rel (%p213) target = $region28
      $region27: #{encoder_forward.18} parent=15 // pred_region
        %p216 = scmp.lt.s32.totalorder %s17, 1
        %s217 = scalar_select %p216, %s17, 1
        %p218 = scmp.lt.s32.totalorder %s19, 0
        %s219 = scalar_select %p218, %s19, 0
        %s220 = smul.addr %s219, 3
        %s221 = sadd.s32 2, %s220
        %s222 = smul.addr %s217, 3
        %s223 = sadd.s32 %s221, %s222
        %s224 = smul.addr %s223, 4
        %s225 = scalar_lea.vmem %s2, %s224
      $region28: #{encoder_forward.18} parent=15 // pred_fallthru
        _
      // Predicated region
      $region29: #{encoder_forward.18} parent=15 // pred_check
        %p226 = pneg %p135
      $region30: #{encoder_forward.18} parent=15 // pred_check_branch
        %228 = sbr.rel (%p226) target = $region32
      $region31: #{encoder_forward.18} parent=15 // pred_region
        %p229 = scmp.lt.s32.totalorder %s17, 1
        %s230 = scalar_select %p229, %s17, 1
        %p231 = scmp.lt.s32.totalorder %s19, 0
        %s232 = scalar_select %p231, %s19, 0
        %s233 = sadd.s32 %s232, %s230
        %s234 = scalar_lea.vmem %s3, %s233
      $region32: #{encoder_forward.18} parent=15 // pred_fallthru
        _
    $region16: #{encoder_forward.18} parent=5 // pred_fallthru
      _
    %p235 = scmp.le.s32.totalorder 1, %s10
    %p236 = scmp.lt.s32.totalorder %s10, 3
    %p237 = pnand %p235, %p236
    %p238 = pneg %p237
    // Predicated region
    $region33: #{encoder_forward.18} parent=5 // pred_check
      _
    $region34: #{encoder_forward.18} parent=5 // pred_check_branch
      %240 = sbr.rel (%p237) target = $region36
    $region35: #{encoder_forward.18} parent=5 // pred_region
      %s241 = ssub.s32 %s10, 1
      %p242 = scmp.lt.s32.totalorder %s20, 1
      %s243 = scalar_select %p242, %s20, 1
      %p244 = scmp.lt.s32.totalorder %s21, 0
      %s245 = scalar_select %p244, %s21, 0
      %s246 = smul.addr %s245, 3
      %s247 = smul.addr %s243, 3
      %s248 = sadd.s32 %s246, %s247
      %s249 = smul.addr %s248, 4
      %s250 = scalar_lea.vmem %s0, %s249
      %p251 = pneg %p57
      %p252 = pneg %p54
      %p253 = scmp.lt.s32.totalorder %s20, 1
      %s254 = scalar_select %p253, %s20, 1
      %p255 = scmp.lt.s32.totalorder %s22, 0
      %s256 = scalar_select %p255, %s22, 0
      %s257 = smul.addr %s256, 3
      %s258 = sadd.s32 1, %s257
      %s259 = smul.addr %s254, 3
      %s260 = sadd.s32 %s258, %s259
      %s261 = smul.addr %s260, 4
      %s262 = scalar_lea.vmem %s1, %s261
      %p263 = pneg %p85
      %p264 = pneg %p82
      %p265 = scmp.lt.s32.totalorder %s20, 1
      %s266 = scalar_select %p265, %s20, 1
      %p267 = scmp.lt.s32.totalorder %s22, 0
      %s268 = scalar_select %p267, %s22, 0
      %s269 = smul.addr %s268, 3
      %s270 = sadd.s32 2, %s269
      %s271 = smul.addr %s266, 3
      %s272 = sadd.s32 %s270, %s271
      %s273 = smul.addr %s272, 4
      %s274 = scalar_lea.vmem %s2, %s273
      %p275 = pneg %p113
      %p276 = pneg %p110
      %p277 = scmp.lt.s32.totalorder %s20, 1
      %s278 = scalar_select %p277, %s20, 1
      %p279 = scmp.lt.s32.totalorder %s22, 0
      %s280 = scalar_select %p279, %s22, 0
      %s281 = sadd.s32 %s280, %s278
      %s282 = scalar_lea.vmem %s3, %s281
      %p283 = pneg %p141
      %p284 = pneg %p138
      %p285 = pneg %p169
      %p286 = pneg %p166
      %p287 = scmp.lt.s32.totalorder %s20, 1
      %s288 = scalar_select %p287, %s20, 1
      %p289 = scmp.lt.s32.totalorder %s21, 0
      %s290 = scalar_select %p289, %s21, 0
      %s291 = sadd.s32 %s290, %s288
      %s292 = smul.addr %s291, 4
      %s293 = scalar_lea.vmem %s4, %s292
      %p294 = scmp.lt.s32.totalorder %s20, 1
      %s295 = scalar_select %p294, %s20, 1
      %p296 = scmp.lt.s32.totalorder %s21, 0
      %s297 = scalar_select %p296, %s21, 0
      %s298 = smul.addr %s297, 3
      %s299 = smul.addr %s295, 3
      %s300 = sadd.s32 %s298, %s299
      %s301 = smul.addr %s300, 4
      %s302 = scalar_lea.vmem %s0, %s301
      %p303 = scmp.lt.s32.totalorder %s20, 1
      %s304 = scalar_select %p303, %s20, 1
      %p305 = scmp.lt.s32.totalorder %s22, 0
      %s306 = scalar_select %p305, %s22, 0
      %s307 = smul.addr %s306, 3
      %s308 = sadd.s32 1, %s307
      %s309 = smul.addr %s304, 3
      %s310 = sadd.s32 %s308, %s309
      %s311 = smul.addr %s310, 4
      %s312 = scalar_lea.vmem %s1, %s311
      %p313 = scmp.lt.s32.totalorder %s20, 1
      %s314 = scalar_select %p313, %s20, 1
      %p315 = scmp.lt.s32.totalorder %s22, 0
      %s316 = scalar_select %p315, %s22, 0
      %s317 = smul.addr %s316, 3
      %s318 = sadd.s32 2, %s317
      %s319 = smul.addr %s314, 3
      %s320 = sadd.s32 %s318, %s319
      %s321 = smul.addr %s320, 4
      %s322 = scalar_lea.vmem %s2, %s321
      %p323 = scmp.lt.s32.totalorder %s20, 1
      %s324 = scalar_select %p323, %s20, 1
      %p325 = scmp.lt.s32.totalorder %s22, 0
      %s326 = scalar_select %p325, %s22, 0
      %s327 = sadd.s32 %s326, %s324
      %s328 = scalar_lea.vmem %s3, %s327
      %p329 = scmp.lt.s32.totalorder %s20, 1
      %s330 = scalar_select %p329, %s20, 1
      %p331 = scmp.lt.s32.totalorder %s21, 0
      %s332 = scalar_select %p331, %s21, 0
      %s333 = sadd.s32 %s332, %s330
      %s334 = smul.addr %s333, 4
      %s335 = scalar_lea.vmem %s4, %s334
      %p338 = scmp.eq.s32.totalorder %s22, 0
      // Predicated region
      $region37: #{encoder_forward.18} parent=35 // pred_check
        %p339 = pneg %p338
      $region38: #{encoder_forward.18} parent=35 // pred_check_branch
        %341 = sbr.rel (%p339) target = $region40
      $region39: #{encoder_forward.18} parent=35 // pred_region
        %vm342 = vcmask 30720
        %343 = vst.msk [vmem:[#allocation2] sm:$0x7f] %vm342, -1e+30
        %344 = vst.msk [vmem:[#allocation3] sm:$0x7f] %vm342, 0.0
        %345 = vst [vmem:[#allocation4] sm:$0x7f] 0.0
      $region40: #{encoder_forward.18} parent=35 // pred_fallthru
        _
      %v346 = vld [vmem:[%s328] sm:$0x1]
      %v347 = vld [vmem:[%s302] sm:$0xf]
      %v348 = vmul.bf16 %v347, 1043676725
      %v349 = vld [vmem:[%s312] sm:$0xf]
      %v350 = vld [vmem:[%s322] sm:$0xf]
      %v351 = vld [vmem:[#allocation2] sm:$0x7f]
      %v352 = vld [vmem:[#allocation3] sm:$0x7f]
      %vm353 = vcmask 261120
      %v355 = vsel %vm353, %v348, 0
      %v358 = vsel %vm353, %v349, 0
      %360 = vmatprep.subr.bf16.mxu0 0
      %361 = vmatpush1.bf16.xpose.msra.mxu0 %v358
      %362 = vmatprep.subr.bf16.mxu0 0
      %363 = vmatpush1.bf16.xpose.msra.mxu0 0
      %364 = vmatprep.subr.bf16.mxu0 0
      %365 = vmatpush1.bf16.xpose.msra.mxu0 0
      %366 = vmatprep.subr.bf16.mxu0 0
      %367 = vmatpush1.bf16.xpose.msra.mxu0 0
      %368 = vmatprep.subr.bf16.mxu0 0
      %369 = vmatpush1.bf16.xpose.msra.mxu0 0
      %370 = vmatprep.subr.bf16.mxu0 0
      %371 = vmatpush1.bf16.xpose.msra.mxu0 0
      %372 = vmatprep.subr.bf16.mxu0 0
      %373 = vmatpush1.bf16.xpose.msra.mxu0 0
      %374 = vmatprep.subr.bf16.mxu0 0
      %375 = vmatpush1.bf16.xpose.msra.mxu0 0
      %376 = vmatprep.subr.bf16.mxu0 0
      %377 = vmatpush1.bf16.xpose.msra.mxu0 0
      %378 = vmatprep.subr.bf16.mxu0 0
      %379 = vmatpush1.bf16.xpose.msra.mxu0 0
      %380 = vmatprep.subr.bf16.mxu0 0
      %381 = vmatpush1.bf16.xpose.msra.mxu0 0
      %382 = vmatprep.subr.bf16.mxu0 0
      %383 = vmatpush1.bf16.xpose.msra.mxu0 0
      %384 = vmatprep.subr.bf16.mxu0 0
      %385 = vmatpush1.bf16.xpose.msra.mxu0 0
      %386 = vmatprep.subr.bf16.mxu0 0
      %387 = vmatpush1.bf16.xpose.msra.mxu0 0
      %388 = vmatprep.subr.bf16.mxu0 0
      %389 = vmatpush1.bf16.xpose.msra.mxu0 0
      %390 = vmatprep.subr.bf16.mxu0 0
      %391 = vmatpush1.bf16.xpose.msra.mxu0 0
      %392 = vmatprep.mubr.bf16.mxu0 0
      %393 = vmatmul.mubr.bf16.gmra.mrb[0].mxu0 %v355
      %v394 = vpop.f32.mrb[0].mxu0
      %v395 = vadd.f32 0.0, %v394
      %v396 = vpop.f32.mrb[0].mxu0
      %v397 = vpop.f32.mrb[0].mxu0
      %v398 = vpop.f32.mrb[0].mxu0
      %399 = vdwg.mxu0
      %vm400 = vcmp.gt.f32.partialorder %v346, 0.0
      %v401 = vsel %vm400, 1, 0
      %v402 = vlaneseq
      %v403 = vshrl.u32 %v402, 7
      %v404 = vsub.s32 0, %v403
      %v405 = vrot.slane %v401, %v404
      %vm406 = vcmp.eq.s32.totalorder %v405, 1
      %v407 = vsel %vm406, %v395, -1e+30
      %v409 = vunpack.c.l.b16 %v348
      %v410 = vpack.c.b16 %v409, %v409
      %411 = vrot.lane.b32.xlu0 %v410, 96
      %v412 = vpop.permute.xlu0 %411
      %v414 = vunpack.c.l.b16 %v349
      %v415 = vpack.c.b16 %v414, %v414
      %416 = vrot.lane.b32.xlu0 %v415, 96
      %v417 = vpop.permute.xlu0 %416
      %v419 = vsel %vm353, %v412, 0
      %v422 = vsel %vm353, %v417, 0
      %424 = vmatprep.subr.bf16.mxu0 0
      %425 = vmatpush1.bf16.xpose.msra.mxu0 %v422
      %426 = vmatprep.subr.bf16.mxu0 0
      %427 = vmatpush1.bf16.xpose.msra.mxu0 0
      %428 = vmatprep.subr.bf16.mxu0 0
      %429 = vmatpush1.bf16.xpose.msra.mxu0 0
      %430 = vmatprep.subr.bf16.mxu0 0
      %431 = vmatpush1.bf16.xpose.msra.mxu0 0
      %432 = vmatprep.subr.bf16.mxu0 0
      %433 = vmatpush1.bf16.xpose.msra.mxu0 0
      %434 = vmatprep.subr.bf16.mxu0 0
      %435 = vmatpush1.bf16.xpose.msra.mxu0 0
      %436 = vmatprep.subr.bf16.mxu0 0
      %437 = vmatpush1.bf16.xpose.msra.mxu0 0
      %438 = vmatprep.subr.bf16.mxu0 0
      %439 = vmatpush1.bf16.xpose.msra.mxu0 0
      %440 = vmatprep.subr.bf16.mxu0 0
      %441 = vmatpush1.bf16.xpose.msra.mxu0 0
      %442 = vmatprep.subr.bf16.mxu0 0
      %443 = vmatpush1.bf16.xpose.msra.mxu0 0
      %444 = vmatprep.subr.bf16.mxu0 0
      %445 = vmatpush1.bf16.xpose.msra.mxu0 0
      %446 = vmatprep.subr.bf16.mxu0 0
      %447 = vmatpush1.bf16.xpose.msra.mxu0 0
      %448 = vmatprep.subr.bf16.mxu0 0
      %449 = vmatpush1.bf16.xpose.msra.mxu0 0
      %450 = vmatprep.subr.bf16.mxu0 0
      %451 = vmatpush1.bf16.xpose.msra.mxu0 0
      %452 = vmatprep.subr.bf16.mxu0 0
      %453 = vmatpush1.bf16.xpose.msra.mxu0 0
      %454 = vmatprep.subr.bf16.mxu0 0
      %455 = vmatpush1.bf16.xpose.msra.mxu0 0
      %456 = vmatprep.mubr.bf16.mxu0 0
      %457 = vmatmul.mubr.bf16.gmra.mrb[0].mxu0 %v419
      %v458 = vpop.f32.mrb[0].mxu0
      %v459 = vadd.f32 0.0, %v458
      %v460 = vpop.f32.mrb[0].mxu0
      %v461 = vpop.f32.mrb[0].mxu0
      %v462 = vpop.f32.mrb[0].mxu0
      %463 = vdwg.mxu0
      %v464 = vsel %vm406, %v459, -1e+30
      %465 = vrot.lane.b32.xlu0 %v410, 64
      %v466 = vpop.permute.xlu0 %465
      %467 = vrot.lane.b32.xlu0 %v415, 64
      %v468 = vpop.permute.xlu0 %467
      %v470 = vsel %vm353, %v466, 0
      %v473 = vsel %vm353, %v468, 0
      %475 = vmatprep.subr.bf16.mxu0 0
      %476 = vmatpush1.bf16.xpose.msra.mxu0 %v473
      %477 = vmatprep.subr.bf16.mxu0 0
      %478 = vmatpush1.bf16.xpose.msra.mxu0 0
      %479 = vmatprep.subr.bf16.mxu0 0
      %480 = vmatpush1.bf16.xpose.msra.mxu0 0
      %481 = vmatprep.subr.bf16.mxu0 0
      %482 = vmatpush1.bf16.xpose.msra.mxu0 0
      %483 = vmatprep.subr.bf16.mxu0 0
      %484 = vmatpush1.bf16.xpose.msra.mxu0 0
      %485 = vmatprep.subr.bf16.mxu0 0
      %486 = vmatpush1.bf16.xpose.msra.mxu0 0
      %487 = vmatprep.subr.bf16.mxu0 0
      %488 = vmatpush1.bf16.xpose.msra.mxu0 0
      %489 = vmatprep.subr.bf16.mxu0 0
      %490 = vmatpush1.bf16.xpose.msra.mxu0 0
      %491 = vmatprep.subr.bf16.mxu0 0
      %492 = vmatpush1.bf16.xpose.msra.mxu0 0
      %493 = vmatprep.subr.bf16.mxu0 0
      %494 = vmatpush1.bf16.xpose.msra.mxu0 0
      %495 = vmatprep.subr.bf16.mxu0 0
      %496 = vmatpush1.bf16.xpose.msra.mxu0 0
      %497 = vmatprep.subr.bf16.mxu0 0
      %498 = vmatpush1.bf16.xpose.msra.mxu0 0
      %499 = vmatprep.subr.bf16.mxu0 0
      %500 = vmatpush1.bf16.xpose.msra.mxu0 0
      %501 = vmatprep.subr.bf16.mxu0 0
      %502 = vmatpush1.bf16.xpose.msra.mxu0 0
      %503 = vmatprep.subr.bf16.mxu0 0
      %504 = vmatpush1.bf16.xpose.msra.mxu0 0
      %505 = vmatprep.subr.bf16.mxu0 0
      %506 = vmatpush1.bf16.xpose.msra.mxu0 0
      %507 = vmatprep.mubr.bf16.mxu0 0
      %508 = vmatmul.mubr.bf16.gmra.mrb[0].mxu0 %v470
      %v509 = vpop.f32.mrb[0].mxu0
      %v510 = vadd.f32 0.0, %v509
      %v511 = vpop.f32.mrb[0].mxu0
      %v512 = vpop.f32.mrb[0].mxu0
      %v513 = vpop.f32.mrb[0].mxu0
      %514 = vdwg.mxu0
      %v515 = vsel %vm406, %v510, -1e+30
      %516 = vrot.lane.b32.xlu0 %v410, 32
      %v517 = vpop.permute.xlu0 %516
      %518 = vrot.lane.b32.xlu0 %v415, 32
      %v519 = vpop.permute.xlu0 %518
      %v521 = vsel %vm353, %v517, 0
      %v524 = vsel %vm353, %v519, 0
      %526 = vmatprep.subr.bf16.mxu0 0
      %527 = vmatpush1.bf16.xpose.msra.mxu0 %v524
      %528 = vmatprep.subr.bf16.mxu0 0
      %529 = vmatpush1.bf16.xpose.msra.mxu0 0
      %530 = vmatprep.subr.bf16.mxu0 0
      %531 = vmatpush1.bf16.xpose.msra.mxu0 0
      %532 = vmatprep.subr.bf16.mxu0 0
      %533 = vmatpush1.bf16.xpose.msra.mxu0 0
      %534 = vmatprep.subr.bf16.mxu0 0
      %535 = vmatpush1.bf16.xpose.msra.mxu0 0
      %536 = vmatprep.subr.bf16.mxu0 0
      %537 = vmatpush1.bf16.xpose.msra.mxu0 0
      %538 = vmatprep.subr.bf16.mxu0 0
      %539 = vmatpush1.bf16.xpose.msra.mxu0 0
      %540 = vmatprep.subr.bf16.mxu0 0
      %541 = vmatpush1.bf16.xpose.msra.mxu0 0
      %542 = vmatprep.subr.bf16.mxu0 0
      %543 = vmatpush1.bf16.xpose.msra.mxu0 0
      %544 = vmatprep.subr.bf16.mxu0 0
      %545 = vmatpush1.bf16.xpose.msra.mxu0 0
      %546 = vmatprep.subr.bf16.mxu0 0
      %547 = vmatpush1.bf16.xpose.msra.mxu0 0
      %548 = vmatprep.subr.bf16.mxu0 0
      %549 = vmatpush1.bf16.xpose.msra.mxu0 0
      %550 = vmatprep.subr.bf16.mxu0 0
      %551 = vmatpush1.bf16.xpose.msra.mxu0 0
      %552 = vmatprep.subr.bf16.mxu0 0
      %553 = vmatpush1.bf16.xpose.msra.mxu0 0
      %554 = vmatprep.subr.bf16.mxu0 0
      %555 = vmatpush1.bf16.xpose.msra.mxu0 0
      %556 = vmatprep.subr.bf16.mxu0 0
      %557 = vmatpush1.bf16.xpose.msra.mxu0 0
      %558 = vmatprep.mubr.bf16.mxu0 0
      %559 = vmatmul.mubr.bf16.gmra.mrb[0].mxu0 %v521
      %v560 = vpop.f32.mrb[0].mxu0
      %v561 = vadd.f32 0.0, %v560
      %v562 = vpop.f32.mrb[0].mxu0
      %v563 = vpop.f32.mrb[0].mxu0
      %v564 = vpop.f32.mrb[0].mxu0
      %565 = vdwg.mxu0
      %v566 = vsel %vm406, %v561, -1e+30
      %vm567 = vcmask 55296
      %v568 = vsel %vm567, %v407, -inf
      %569 = vmax.xlane.f32.xlu0 %v568
      %v570 = vpop.xlane.xlu0 %569
      %v571 = vsel %vm567, %v464, -inf
      %572 = vmax.xlane.f32.xlu0 %v571
      %v573 = vpop.xlane.xlu0 %572
      %v574 = vsel %vm567, %v515, -inf
      %575 = vmax.xlane.f32.xlu0 %v574
      %v576 = vpop.xlane.xlu0 %575
      %v577 = vsel %vm567, %v566, -inf
      %578 = vmax.xlane.f32.xlu0 %v577
      %v579 = vpop.xlane.xlu0 %578
      %vm580 = vcmask 7168
      %v581 = vsel %vm580, %v570, %v573
      %vm582 = vcmask 15360
      %v583 = vsel %vm582, %v581, %v576
      %vm584 = vcmask 23552
      %v585 = vsel %vm584, %v583, %v579
      %v586 = vmax.f32 %v351, %v585
      %v587 = vsub.f32 %v351, %v586
      %v588 = vmul.f32 %v587, 1.442695
      %v589 = vpow.pop %v588
      %591 = vset.pattern.permute.xlu0 0
      %592 = vperm.xlu0 %591, %v586
      %v593 = vpop.permute.xlu0 %592
      %v595 = vsub.f32 %v407, %v593
      %v596 = vmul.f32 %v595, 1.442695
      %v597 = vpow.pop %v596
      %v599 = vlaneseq
      %v600 = vshrl.u32 %v599, 7
      %v601 = vsub.s32 0, %v600
      %v602 = vrot.slane %v346, %v601
      %v604 = vmul.f32 %v597, %v602
      %v605 = vsel %vm567, %v604, 0.0
      %606 = vadd.xlane.f32.xlu0 %v605
      %v607 = vpop.xlane.xlu0 %606
      %v608 = vpack.c.bf16 %v604, %v604
      %vm609 = vcmask 56320
      %v611 = vsel %vm609, %v608, 0
      %vm613 = vcmask 1042432
      %vm614 = vcmask 1043456
      %v615 = vsel %vm613, 4294967295, 65535
      %v616 = vsel %vm614, %v615, 0
      %v618 = vand.u32 %v350, %v616
      %620 = vmatprep.subr.bf16.mxu0 0
      %621 = vmatpush1.bf16.msra.mxu0 %v618
      %622 = vmatprep.subr.bf16.mxu0 0
      %623 = vmatpush1.bf16.msra.mxu0 0
      %624 = vmatprep.subr.bf16.mxu0 0
      %625 = vmatpush1.bf16.msra.mxu0 0
      %626 = vmatprep.subr.bf16.mxu0 0
      %627 = vmatpush1.bf16.msra.mxu0 0
      %628 = vmatprep.subr.bf16.mxu0 0
      %629 = vmatpush1.bf16.msra.mxu0 0
      %630 = vmatprep.subr.bf16.mxu0 0
      %631 = vmatpush1.bf16.msra.mxu0 0
      %632 = vmatprep.subr.bf16.mxu0 0
      %633 = vmatpush1.bf16.msra.mxu0 0
      %634 = vmatprep.subr.bf16.mxu0 0
      %635 = vmatpush1.bf16.msra.mxu0 0
      %636 = vmatprep.subr.bf16.mxu0 0
      %637 = vmatpush1.bf16.msra.mxu0 0
      %638 = vmatprep.subr.bf16.mxu0 0
      %639 = vmatpush1.bf16.msra.mxu0 0
      %640 = vmatprep.subr.bf16.mxu0 0
      %641 = vmatpush1.bf16.msra.mxu0 0
      %642 = vmatprep.subr.bf16.mxu0 0
      %643 = vmatpush1.bf16.msra.mxu0 0
      %644 = vmatprep.subr.bf16.mxu0 0
      %645 = vmatpush1.bf16.msra.mxu0 0
      %646 = vmatprep.subr.bf16.mxu0 0
      %647 = vmatpush1.bf16.msra.mxu0 0
      %648 = vmatprep.subr.bf16.mxu0 0
      %649 = vmatpush1.bf16.msra.mxu0 0
      %650 = vmatprep.subr.bf16.mxu0 0
      %651 = vmatpush1.bf16.msra.mxu0 0
      %652 = vmatprep.mubr.bf16.mxu0 0
      %653 = vmatmul.mubr.bf16.gmra.mrb[0].mxu0 %v611
      %v654 = vpop.f32.mrb[0].mxu0
      %v655 = vadd.f32 0.0, %v654
      %v656 = vpop.f32.mrb[0].mxu0
      %v657 = vpop.f32.mrb[0].mxu0
      %v658 = vpop.f32.mrb[0].mxu0
      %659 = vdwg.mxu0
      %660 = vset.pattern.permute.xlu0 1
      %661 = vperm.xlu0 %660, %v586
      %v662 = vpop.permute.xlu0 %661
      %v664 = vsub.f32 %v464, %v662
      %v665 = vmul.f32 %v664, 1.442695
      %v666 = vpow.pop %v665
      %v667 = vmul.f32 %v666, %v602
      %v668 = vsel %vm567, %v667, 0.0
      %669 = vadd.xlane.f32.xlu0 %v668
      %v670 = vpop.xlane.xlu0 %669
      %v671 = vpack.c.bf16 %v667, %v667
      %v673 = vunpack.c.l.b16 %v350
      %v674 = vpack.c.b16 %v673, %v673
      %675 = vrot.lane.b32.xlu0 %v674, 96
      %v676 = vpop.permute.xlu0 %675
      %v678 = vsel %vm609, %v671, 0
      %v681 = vand.u32 %v676, %v616
      %683 = vmatprep.subr.bf16.mxu0 0
      %684 = vmatpush1.bf16.msra.mxu0 %v681
      %685 = vmatprep.subr.bf16.mxu0 0
      %686 = vmatpush1.bf16.msra.mxu0 0
      %687 = vmatprep.subr.bf16.mxu0 0
      %688 = vmatpush1.bf16.msra.mxu0 0
      %689 = vmatprep.subr.bf16.mxu0 0
      %690 = vmatpush1.bf16.msra.mxu0 0
      %691 = vmatprep.subr.bf16.mxu0 0
      %692 = vmatpush1.bf16.msra.mxu0 0
      %693 = vmatprep.subr.bf16.mxu0 0
      %694 = vmatpush1.bf16.msra.mxu0 0
      %695 = vmatprep.subr.bf16.mxu0 0
      %696 = vmatpush1.bf16.msra.mxu0 0
      %697 = vmatprep.subr.bf16.mxu0 0
      %698 = vmatpush1.bf16.msra.mxu0 0
      %699 = vmatprep.subr.bf16.mxu0 0
      %700 = vmatpush1.bf16.msra.mxu0 0
      %701 = vmatprep.subr.bf16.mxu0 0
      %702 = vmatpush1.bf16.msra.mxu0 0
      %703 = vmatprep.subr.bf16.mxu0 0
      %704 = vmatpush1.bf16.msra.mxu0 0
      %705 = vmatprep.subr.bf16.mxu0 0
      %706 = vmatpush1.bf16.msra.mxu0 0
      %707 = vmatprep.subr.bf16.mxu0 0
      %708 = vmatpush1.bf16.msra.mxu0 0
      %709 = vmatprep.subr.bf16.mxu0 0
      %710 = vmatpush1.bf16.msra.mxu0 0
      %711 = vmatprep.subr.bf16.mxu0 0
      %712 = vmatpush1.bf16.msra.mxu0 0
      %713 = vmatprep.subr.bf16.mxu0 0
      %714 = vmatpush1.bf16.msra.mxu0 0
      %715 = vmatprep.mubr.bf16.mxu0 0
      %716 = vmatmul.mubr.bf16.gmra.mrb[0].mxu0 %v678
      %v717 = vpop.f32.mrb[0].mxu0
      %v718 = vadd.f32 0.0, %v717
      %v719 = vpop.f32.mrb[0].mxu0
      %v720 = vpop.f32.mrb[0].mxu0
      %v721 = vpop.f32.mrb[0].mxu0
      %722 = vdwg.mxu0
      %723 = vset.pattern.permute.xlu0 2
      %724 = vperm.xlu0 %723, %v586
      %v725 = vpop.permute.xlu0 %724
      %v727 = vsub.f32 %v515, %v725
      %v728 = vmul.f32 %v727, 1.442695
      %v729 = vpow.pop %v728
      %v730 = vmul.f32 %v729, %v602
      %v731 = vsel %vm567, %v730, 0.0
      %732 = vadd.xlane.f32.xlu0 %v731
      %v733 = vpop.xlane.xlu0 %732
      %v734 = vpack.c.bf16 %v730, %v730
      %735 = vrot.lane.b32.xlu0 %v674, 64
      %v736 = vpop.permute.xlu0 %735
      %v738 = vsel %vm609, %v734, 0
      %v741 = vand.u32 %v736, %v616
      %743 = vmatprep.subr.bf16.mxu0 0
      %744 = vmatpush1.bf16.msra.mxu0 %v741
      %745 = vmatprep.subr.bf16.mxu0 0
      %746 = vmatpush1.bf16.msra.mxu0 0
      %747 = vmatprep.subr.bf16.mxu0 0
      %748 = vmatpush1.bf16.msra.mxu0 0
      %749 = vmatprep.subr.bf16.mxu0 0
      %750 = vmatpush1.bf16.msra.mxu0 0
      %751 = vmatprep.subr.bf16.mxu0 0
      %752 = vmatpush1.bf16.msra.mxu0 0
      %753 = vmatprep.subr.bf16.mxu0 0
      %754 = vmatpush1.bf16.msra.mxu0 0
      %755 = vmatprep.subr.bf16.mxu0 0
      %756 = vmatpush1.bf16.msra.mxu0 0
      %757 = vmatprep.subr.bf16.mxu0 0
      %758 = vmatpush1.bf16.msra.mxu0 0
      %759 = vmatprep.subr.bf16.mxu0 0
      %760 = vmatpush1.bf16.msra.mxu0 0
      %761 = vmatprep.subr.bf16.mxu0 0
      %762 = vmatpush1.bf16.msra.mxu0 0
      %763 = vmatprep.subr.bf16.mxu0 0
      %764 = vmatpush1.bf16.msra.mxu0 0
      %765 = vmatprep.subr.bf16.mxu0 0
      %766 = vmatpush1.bf16.msra.mxu0 0
      %767 = vmatprep.subr.bf16.mxu0 0
      %768 = vmatpush1.bf16.msra.mxu0 0
      %769 = vmatprep.subr.bf16.mxu0 0
      %770 = vmatpush1.bf16.msra.mxu0 0
      %771 = vmatprep.subr.bf16.mxu0 0
      %772 = vmatpush1.bf16.msra.mxu0 0
      %773 = vmatprep.subr.bf16.mxu0 0
      %774 = vmatpush1.bf16.msra.mxu0 0
      %775 = vmatprep.mubr.bf16.mxu0 0
      %776 = vmatmul.mubr.bf16.gmra.mrb[0].mxu0 %v738
      %v777 = vpop.f32.mrb[0].mxu0
      %v778 = vadd.f32 0.0, %v777
      %v779 = vpop.f32.mrb[0].mxu0
      %v780 = vpop.f32.mrb[0].mxu0
      %v781 = vpop.f32.mrb[0].mxu0
      %782 = vdwg.mxu0
      %783 = vset.pattern.permute.xlu0 3
      %784 = vperm.xlu0 %783, %v586
      %v785 = vpop.permute.xlu0 %784
      %v787 = vsub.f32 %v566, %v785
      %v788 = vmul.f32 %v787, 1.442695
      %v789 = vpow.pop %v788
      %v790 = vmul.f32 %v789, %v602
      %v791 = vsel %vm567, %v790, 0.0
      %792 = vadd.xlane.f32.xlu0 %v791
      %v793 = vpop.xlane.xlu0 %792
      %v794 = vpack.c.bf16 %v790, %v790
      %795 = vrot.lane.b32.xlu0 %v674, 32
      %v796 = vpop.permute.xlu0 %795
      %v798 = vsel %vm609, %v794, 0
      %v801 = vand.u32 %v796, %v616
      %803 = vmatprep.subr.bf16.mxu0 0
      %804 = vmatpush1.bf16.msra.mxu0 %v801
      %805 = vmatprep.subr.bf16.mxu0 0
      %806 = vmatpush1.bf16.msra.mxu0 0
      %807 = vmatprep.subr.bf16.mxu0 0
      %808 = vmatpush1.bf16.msra.mxu0 0
      %809 = vmatprep.subr.bf16.mxu0 0
      %810 = vmatpush1.bf16.msra.mxu0 0
      %811 = vmatprep.subr.bf16.mxu0 0
      %812 = vmatpush1.bf16.msra.mxu0 0
      %813 = vmatprep.subr.bf16.mxu0 0
      %814 = vmatpush1.bf16.msra.mxu0 0
      %815 = vmatprep.subr.bf16.mxu0 0
      %816 = vmatpush1.bf16.msra.mxu0 0
      %817 = vmatprep.subr.bf16.mxu0 0
      %818 = vmatpush1.bf16.msra.mxu0 0
      %819 = vmatprep.subr.bf16.mxu0 0
      %820 = vmatpush1.bf16.msra.mxu0 0
      %821 = vmatprep.subr.bf16.mxu0 0
      %822 = vmatpush1.bf16.msra.mxu0 0
      %823 = vmatprep.subr.bf16.mxu0 0
      %824 = vmatpush1.bf16.msra.mxu0 0
      %825 = vmatprep.subr.bf16.mxu0 0
      %826 = vmatpush1.bf16.msra.mxu0 0
      %827 = vmatprep.subr.bf16.mxu0 0
      %828 = vmatpush1.bf16.msra.mxu0 0
      %829 = vmatprep.subr.bf16.mxu0 0
      %830 = vmatpush1.bf16.msra.mxu0 0
      %831 = vmatprep.subr.bf16.mxu0 0
      %832 = vmatpush1.bf16.msra.mxu0 0
      %833 = vmatprep.subr.bf16.mxu0 0
      %834 = vmatpush1.bf16.msra.mxu0 0
      %835 = vmatprep.mubr.bf16.mxu0 0
      %836 = vmatmul.mubr.bf16.gmra.mrb[0].mxu0 %v798
      %v837 = vpop.f32.mrb[0].mxu0
      %v838 = vadd.f32 0.0, %v837
      %v839 = vpop.f32.mrb[0].mxu0
      %v840 = vpop.f32.mrb[0].mxu0
      %v841 = vpop.f32.mrb[0].mxu0
      %842 = vdwg.mxu0
      %844 = vset.pattern.permute.xlu0 0
      %845 = vperm.xlu0 %844, %v589
      %v846 = vpop.permute.xlu0 %845
      %848 = vset.pattern.permute.xlu0 1
      %849 = vperm.xlu0 %848, %v589
      %v850 = vpop.permute.xlu0 %849
      %852 = vset.pattern.permute.xlu0 2
      %853 = vperm.xlu0 %852, %v589
      %v854 = vpop.permute.xlu0 %853
      %856 = vset.pattern.permute.xlu0 3
      %857 = vperm.xlu0 %856, %v589
      %v858 = vpop.permute.xlu0 %857
      %v860 = vsel %vm353, %v846, %v850
      %vm861 = vcmask 523264
      %v862 = vsel %vm861, %v860, %v854
      %vm863 = vcmask 785408
      %v864 = vsel %vm863, %v862, %v858
      %v865 = vld [vmem:[#allocation4] sm:$0x7f]
      %v866 = vmul.f32 %v864, %v865
      %868 = vrot.lane.b32.xlu0 %v718, 32
      %v869 = vpop.permute.xlu0 %868
      %872 = vrot.lane.b32.xlu0 %v778, 64
      %v873 = vpop.permute.xlu0 %872
      %876 = vrot.lane.b32.xlu0 %v838, 96
      %v877 = vpop.permute.xlu0 %876
      %v879 = vsel %vm353, %v655, %v869
      %v880 = vsel %vm861, %v879, %v873
      %v881 = vsel %vm863, %v880, %v877
      %v882 = vadd.f32 %v866, %v881
      %883 = vst [vmem:[#allocation4] sm:$0x7f] %v882
      %v884 = vmul.f32 %v589, %v352
      %v885 = vsel %vm580, %v607, %v670
      %v886 = vsel %vm582, %v885, %v733
      %v887 = vsel %vm584, %v886, %v793
      %v888 = vadd.f32 %v884, %v887
      %vm889 = vcmask 30720
      %890 = vst.msk [vmem:[#allocation3] sm:$0x7f] %vm889, %v888
      %891 = vst.msk [vmem:[#allocation2] sm:$0x7f] %vm889, %v586
      // Predicated region
      $region41: #{encoder_forward.18} parent=35 // pred_check
        %p892 = pneg %p338
      $region42: #{encoder_forward.18} parent=35 // pred_check_branch
        %894 = sbr.rel (%p892) target = $region44
      $region43: #{encoder_forward.18} parent=35 // pred_region
        %v895 = vld [vmem:[#allocation3] sm:$0x7f]
        %vm896 = vcmp.gt.f32.partialorder %v895, 0.0
        %v897 = vsel %vm896, %v895, 1.0
        %v898 = vrcp.pop %v897
        %900 = vset.pattern.permute.xlu0 0
        %901 = vperm.xlu0 %900, %v898
        %v902 = vpop.permute.xlu0 %901
        %904 = vset.pattern.permute.xlu0 1
        %905 = vperm.xlu0 %904, %v898
        %v906 = vpop.permute.xlu0 %905
        %908 = vset.pattern.permute.xlu0 2
        %909 = vperm.xlu0 %908, %v898
        %v910 = vpop.permute.xlu0 %909
        %912 = vset.pattern.permute.xlu0 3
        %913 = vperm.xlu0 %912, %v898
        %v914 = vpop.permute.xlu0 %913
        %v916 = vsel %vm353, %v902, %v906
        %v917 = vsel %vm861, %v916, %v910
        %v918 = vsel %vm863, %v917, %v914
        %v919 = vld [vmem:[#allocation4] sm:$0x7f]
        %v920 = vmul.f32 %v919, %v918
        %v921 = vpack.c.bf16 %v920, %v920
        %vm922 = vcmask 1043456
        %vm923 = vsmask.f32 3328
        %vm924 = vmand %vm922, %vm923
        %v925 = vld [vmem:[%s335] sm:$0xf]
        %v926 = vsel %vm924, %v921, %v925
        %927 = vst [vmem:[%s335] sm:$0xf] %v926
      $region44: #{encoder_forward.18} parent=35 // pred_fallthru
        _
      %p928 = scmp.lt.s32.totalorder %s20, 1
      %s929 = scalar_select %p928, %s20, 1
      %p930 = scmp.lt.s32.totalorder %s21, 0
      %s931 = scalar_select %p930, %s21, 0
      %s932 = sadd.s32 %s931, %s929
      %s933 = smul.addr %s932, 4
      %s934 = scalar_lea.vmem %s4, %s933
      // Predicated region
      $region45: #{encoder_forward.18} parent=35 // pred_check
        %p935 = pneg %p166
      $region46: #{encoder_forward.18} parent=35 // pred_check_branch
        %937 = sbr.rel (%p935) target = $region48
      $region47: #{encoder_forward.18} parent=35 // pred_region
        _
      $region48: #{encoder_forward.18} parent=35 // pred_fallthru
        _
    $region36: #{encoder_forward.18} parent=5 // pred_fallthru
      _
    %p938 = scmp.le.s32.totalorder 2, %s10
    // Predicated region
    $region49: #{encoder_forward.18} parent=5 // pred_check
      %p939 = pneg %p938
    $region50: #{encoder_forward.18} parent=5 // pred_check_branch
      %941 = sbr.rel (%p939) target = $region52
    $region51: #{encoder_forward.18} parent=5 // pred_region
      %s942 = ssub.s32 %s10, 2
      // Predicated region
      $region53: #{encoder_forward.18} parent=51 // pred_check
        %p943 = pneg %p172
      $region54: #{encoder_forward.18} parent=51 // pred_check_branch
        %945 = sbr.rel (%p943) target = $region56
      $region55: #{encoder_forward.18} parent=51 // pred_region
        %p946 = scmp.lt.s32.totalorder %s23, 1
        %s947 = scalar_select %p946, %s23, 1
        %p948 = scmp.lt.s32.totalorder %s24, 0
        %s949 = scalar_select %p948, %s24, 0
        %s950 = sadd.s32 %s949, %s947
        %s951 = smul.addr %s950, 4
        %s952 = scalar_lea.vmem %s4, %s951
      $region56: #{encoder_forward.18} parent=51 // pred_fallthru
        _
    $region52: #{encoder_forward.18} parent=5 // pred_fallthru
      _
  $region6: #{encoder_forward.18} parent=0 // loop_footer
    %s14 = sadd.s32 1, %s10
  $region7: #{encoder_forward.18} parent=0 // loop_footer_branch
    %9 = sbr.rel target = $region3
  $region8: #{encoder_forward.18} parent=0 // loop_exit
    _

// kernel: encoder_forward.27
$region0: #{encoder_forward.27}
  #allocation0 [shape = 'u32[]', space=smem, size = 0x4, offset = 0x4, fixed_abs, tag = 'smem constant byte address 0x4 - core index']
  #allocation1 [shape = 'u32[144,128]{1,0:T(1,128)}', space=vmem, size = 0x12000, scoped, tag = 'internal scratch']
  #allocation2 [shape = 'bf16[16,128]{1,0:T(16,128)(2,1)}', space=vmem, size = 0x1000, scoped, tag = 'scratch operand']
  #allocation3 [shape = 'f32[16,1]{1,0:T(8,128)}', space=vmem, size = 0x2000, scoped, tag = 'scratch operand']
  #allocation4 [shape = 'f32[16,1]{1,0:T(8,128)}', space=vmem, size = 0x2000, scoped, tag = 'scratch operand']
  %s0 = inlined_call_operand.vmem [shape: bf16[16,128], index: 0, kind: input, shape index: {}]
  %s1 = inlined_call_operand.vmem [shape: f32[1,128], index: 1, kind: input, shape index: {}]
  %s2 = inlined_call_operand.vmem [shape: f32[1,128], index: 2, kind: input, shape index: {}]
  %s3 = inlined_call_operand.vmem [shape: bf16[128,256], index: 3, kind: input, shape index: {}]
  %s4 = inlined_call_operand.vmem [shape: f32[1,256], index: 4, kind: input, shape index: {}]
  %s5 = inlined_call_operand.vmem [shape: f32[16,128], index: 5, kind: output, shape index: {0}]
  %s6 = inlined_call_operand.vmem [shape: f32[16,256], index: 6, kind: output, shape index: {1}]
  %s7 = inlined_call_operand.vmem [shape: f32[16,10], index: 7, kind: output, shape index: {2}]
  %s8 = inlined_call_operand.vmem [shape: s32[16,10], index: 8, kind: output, shape index: {3}]
  %9 = xla_tuple %s5, %s6, %s7, %s8
  %s10 = sld [smem:[#allocation0]]
  $region62: #{encoder_forward.27} parent=0
    _
  %s12 = ssub.s32 1, %s10
  %s13 = scalar_select 0, %s12, %s10
  // Predicated region
  $region2: #{encoder_forward.27} parent=0 // pred_check
    _
  $region3: #{encoder_forward.27} parent=0 // pred_check_branch
    %15 = sbr.rel (0) target = $region5
  $region4: #{encoder_forward.27} parent=0 // pred_region
    _
  $region5: #{encoder_forward.27} parent=0 // pred_fallthru
    _
  // Predicated region
  $region6: #{encoder_forward.27} parent=0 // pred_check
    _
  $region7: #{encoder_forward.27} parent=0 // pred_check_branch
    %17 = sbr.rel (0) target = $region9
  $region8: #{encoder_forward.27} parent=0 // pred_region
    _
  $region9: #{encoder_forward.27} parent=0 // pred_fallthru
    _
  // Predicated region
  $region10: #{encoder_forward.27} parent=0 // pred_check
    _
  $region11: #{encoder_forward.27} parent=0 // pred_check_branch
    %19 = sbr.rel (0) target = $region13
  $region12: #{encoder_forward.27} parent=0 // pred_region
    _
  $region13: #{encoder_forward.27} parent=0 // pred_fallthru
    _
  // Predicated region
  $region14: #{encoder_forward.27} parent=0 // pred_check
    _
  $region15: #{encoder_forward.27} parent=0 // pred_check_branch
    %21 = sbr.rel (0) target = $region17
  $region16: #{encoder_forward.27} parent=0 // pred_region
    _
  $region17: #{encoder_forward.27} parent=0 // pred_fallthru
    _
  // Predicated region
  $region18: #{encoder_forward.27} parent=0 // pred_check
    _
  $region19: #{encoder_forward.27} parent=0 // pred_check_branch
    %23 = sbr.rel (0) target = $region21
  $region20: #{encoder_forward.27} parent=0 // pred_region
    _
  $region21: #{encoder_forward.27} parent=0 // pred_fallthru
    _
  %p25 = scmp.eq.s32.totalorder 0, 0
  // Predicated region
  $region22: #{encoder_forward.27} parent=0 // pred_check
    %p26 = pneg %p25
  $region23: #{encoder_forward.27} parent=0 // pred_check_branch
    %28 = sbr.rel (%p26) target = $region25
  $region24: #{encoder_forward.27} parent=0 // pred_region
    %v29 = vld [vmem:[%s0] sm:$0xf]
    %v30 = vld [vmem:[%s0 + $0x4] sm:$0xf]
    %v31 = vunpack.c.l.bf16 %v29
    %v32 = vunpack.c.l.bf16 %v30
    %33 = vadd.xlane.f32.xlu0 %v31
    %v34 = vpop.xlane.xlu0 %33
    %35 = vadd.xlane.f32.xlu0 %v32
    %v36 = vpop.xlane.xlu0 %35
    %v37 = vrcp.pop 128.0
    %v38 = vmul.f32 %v34, %v37
    %v39 = vmul.f32 %v36, %v37
    %v40 = vsub.f32 %v31, %v38
    %v41 = vsub.f32 %v32, %v39
    %v42 = vmul.f32 %v40, %v40
    %v43 = vmul.f32 %v41, %v41
    %44 = vadd.xlane.f32.xlu0 %v42
    %v45 = vpop.xlane.xlu0 %44
    %46 = vadd.xlane.f32.xlu0 %v43
    %v47 = vpop.xlane.xlu0 %46
    %v48 = vmul.f32 %v45, %v37
    %v49 = vmul.f32 %v47, %v37
    %v50 = vadd.f32 %v48, 1e-05
    %v51 = vadd.f32 %v49, 1e-05
    %v52 = vrsqrt.pop %v50
    %v53 = vrsqrt.pop %v51
    %v54 = vmul.f32 %v40, %v52
    %v55 = vmul.f32 %v41, %v53
    %v56 = vld [vmem:[%s1] sm:$0x1]
    %v58 = vlaneseq
    %v59 = vshrl.u32 %v58, 7
    %v60 = vsub.s32 0, %v59
    %v61 = vrot.slane %v56, %v60
    %v63 = vmul.f32 %v54, %v61
    %v64 = vmul.f32 %v55, %v61
    %v65 = vld [vmem:[%s2] sm:$0x1]
    %v67 = vlaneseq
    %v68 = vshrl.u32 %v67, 7
    %v69 = vsub.s32 0, %v68
    %v70 = vrot.slane %v65, %v69
    %v72 = vadd.f32 %v63, %v70
    %v73 = vadd.f32 %v64, %v70
    %74 = vst [vmem:[%s5] sm:$0xff] %v72
    %75 = vst [vmem:[%s5 + $0x8] sm:$0xff] %v73
    %v76 = vpack.c.bf16 %v73, %v72
    %77 = vst [vmem:[#allocation2] sm:$0xff] %v76
    %vm78 = vcmask 7168
    %79 = vst.msk [vmem:[#allocation3] sm:$0xff] %vm78, -1e+30
    %80 = vst.msk [vmem:[#allocation3 + $0x8] sm:$0xff] %vm78, -1e+30
    %81 = vst.msk [vmem:[#allocation4] sm:$0xff] %vm78, 0.0
    %82 = vst.msk [vmem:[#allocation4 + $0x8] sm:$0xff] %vm78, 0.0
  $region25: #{encoder_forward.27} parent=0 // pred_fallthru
    _
  %v83 = vld [vmem:[#allocation2] sm:$0xff]
  %v84 = vld [vmem:[%s3] sm:$0xff]
  %v85 = vld [vmem:[%s3 + $0x8] sm:$0xff]
  %v86 = vld [vmem:[%s3 + $0x10] sm:$0xff]
  %v87 = vld [vmem:[%s3 + $0x18] sm:$0xff]
  %v88 = vld [vmem:[%s3 + $0x20] sm:$0xff]
  %v89 = vld [vmem:[%s3 + $0x28] sm:$0xff]
  %v90 = vld [vmem:[%s3 + $0x30] sm:$0xff]
  %v91 = vld [vmem:[%s3 + $0x38] sm:$0xff]
  %v92 = vld [vmem:[%s3 + $0x40] sm:$0xff]
  %v93 = vld [vmem:[%s3 + $0x48] sm:$0xff]
  %v94 = vld [vmem:[%s3 + $0x50] sm:$0xff]
  %v95 = vld [vmem:[%s3 + $0x58] sm:$0xff]
  %v96 = vld [vmem:[%s3 + $0x60] sm:$0xff]
  %v97 = vld [vmem:[%s3 + $0x68] sm:$0xff]
  %v98 = vld [vmem:[%s3 + $0x70] sm:$0xff]
  %v99 = vld [vmem:[%s3 + $0x78] sm:$0xff]
  %v100 = vld [vmem:[%s4] sm:$0x3]
  %v102 = vlaneseq
  %v103 = vshrl.u32 %v102, 7
  %v104 = vsub.s32 0, %v103
  %v105 = vrot.slane %v100, %v104
  %v106 = vlaneseq
  %v107 = vshrl.u32 %v106, 7
  %v108 = vsub.s32 1, %v107
  %v109 = vrot.slane %v100, %v108
  %v128 = vunpack.c.l.b16 %v84
  %v129 = vunpack.c.h.b16 %v84
  %v130 = vunpack.c.l.b16 %v85
  %v131 = vunpack.c.h.b16 %v85
  %v132 = vunpack.c.l.b16 %v86
  %v133 = vunpack.c.h.b16 %v86
  %v134 = vunpack.c.l.b16 %v87
  %v135 = vunpack.c.h.b16 %v87
  %v136 = vunpack.c.l.b16 %v88
  %v137 = vunpack.c.h.b16 %v88
  %v138 = vunpack.c.l.b16 %v89
  %v139 = vunpack.c.h.b16 %v89
  %v140 = vunpack.c.l.b16 %v90
  %v141 = vunpack.c.h.b16 %v90
  %v142 = vunpack.c.l.b16 %v91
  %v143 = vunpack.c.h.b16 %v91
  %v144 = vunpack.c.l.b16 %v92
  %v145 = vunpack.c.h.b16 %v92
  %v146 = vunpack.c.l.b16 %v93
  %v147 = vunpack.c.h.b16 %v93
  %v148 = vunpack.c.l.b16 %v94
  %v149 = vunpack.c.h.b16 %v94
  %v150 = vunpack.c.l.b16 %v95
  %v151 = vunpack.c.h.b16 %v95
  %v152 = vunpack.c.l.b16 %v96
  %v153 = vunpack.c.h.b16 %v96
  %v154 = vunpack.c.l.b16 %v97
  %v155 = vunpack.c.h.b16 %v97
  %v156 = vunpack.c.l.b16 %v98
  %v157 = vunpack.c.h.b16 %v98
  %v158 = vunpack.c.l.b16 %v99
  %v159 = vunpack.c.h.b16 %v99
  %v160 = vpack.c.b16 %v130, %v128
  %v161 = vpack.c.b16 %v131, %v129
  %v162 = vpack.c.b16 %v134, %v132
  %v163 = vpack.c.b16 %v135, %v133
  %v164 = vpack.c.b16 %v138, %v136
  %v165 = vpack.c.b16 %v139, %v137
  %v166 = vpack.c.b16 %v142, %v140
  %v167 = vpack.c.b16 %v143, %v141
  %v168 = vpack.c.b16 %v146, %v144
  %v169 = vpack.c.b16 %v147, %v145
  %v170 = vpack.c.b16 %v150, %v148
  %v171 = vpack.c.b16 %v151, %v149
  %v172 = vpack.c.b16 %v154, %v152
  %v173 = vpack.c.b16 %v155, %v153
  %v174 = vpack.c.b16 %v158, %v156
  %v175 = vpack.c.b16 %v159, %v157
  %192 = vmatprep.subr.bf16.mxu0 %v161
  %193 = vmatpush1.bf16.msra.mxu0 %v160
  %194 = vmatprep.subr.bf16.mxu0 %v163
  %195 = vmatpush1.bf16.msra.mxu0 %v162
  %196 = vmatprep.subr.bf16.mxu0 %v165
  %197 = vmatpush1.bf16.msra.mxu0 %v164
  %198 = vmatprep.subr.bf16.mxu0 %v167
  %199 = vmatpush1.bf16.msra.mxu0 %v166
  %200 = vmatprep.subr.bf16.mxu0 %v169
  %201 = vmatpush1.bf16.msra.mxu0 %v168
  %202 = vmatprep.subr.bf16.mxu0 %v171
  %203 = vmatpush1.bf16.msra.mxu0 %v170
  %204 = vmatprep.subr.bf16.mxu0 %v173
  %205 = vmatpush1.bf16.msra.mxu0 %v172
  %206 = vmatprep.subr.bf16.mxu0 %v175
  %207 = vmatpush1.bf16.msra.mxu0 %v174
  %208 = vmatprep.subr.bf16.mxu0 0
  %209 = vmatpush1.bf16.msra.mxu0 0
  %210 = vmatprep.subr.bf16.mxu0 0
  %211 = vmatpush1.bf16.msra.mxu0 0
  %212 = vmatprep.subr.bf16.mxu0 0
  %213 = vmatpush1.bf16.msra.mxu0 0
  %214 = vmatprep.subr.bf16.mxu0 0
  %215 = vmatpush1.bf16.msra.mxu0 0
  %216 = vmatprep.subr.bf16.mxu0 0
  %217 = vmatpush1.bf16.msra.mxu0 0
  %218 = vmatprep.subr.bf16.mxu0 0
  %219 = vmatpush1.bf16.msra.mxu0 0
  %220 = vmatprep.subr.bf16.mxu0 0
  %221 = vmatpush1.bf16.msra.mxu0 0
  %222 = vmatprep.subr.bf16.mxu0 0
  %223 = vmatpush1.bf16.msra.mxu0 0
  %224 = vmatprep.mubr.bf16.mxu0 0
  %225 = vmatmul.mubr.bf16.gmra.mrb[0].mxu0 %v83
  %v226 = vpop.f32.mrb[0].mxu0
  %v227 = vadd.f32 %v105, %v226
  %v228 = vpop.f32.mrb[0].mxu0
  %v229 = vadd.f32 %v109, %v228
  %v230 = vpop.f32.mrb[0].mxu0
  %v231 = vadd.f32 %v105, %v230
  %v232 = vpop.f32.mrb[0].mxu0
  %v233 = vadd.f32 %v109, %v232
  %234 = vdwg.mxu0
  %v235 = vld [vmem:[#allocation3] sm:$0xff]
  %v236 = vld [vmem:[#allocation3 + $0x8] sm:$0xff]
  %v237 = vmax.f32 %v227, %v229
  %238 = vmax.xlane.f32.xlu0 %v237
  %v239 = vpop.xlane.xlu0 %238
  %v240 = vmax.f32 %v231, %v233
  %241 = vmax.xlane.f32.xlu0 %v240
  %v242 = vpop.xlane.xlu0 %241
  %v243 = vmax.f32 %v235, %v239
  %v244 = vmax.f32 %v236, %v242
  %v245 = vld [vmem:[#allocation4] sm:$0xff]
  %v246 = vld [vmem:[#allocation4 + $0x8] sm:$0xff]
  %v247 = vsub.f32 %v235, %v243
  %v248 = vsub.f32 %v236, %v244
  %v249 = vmul.f32 %v247, 1.442695
  %v250 = vpow.pop %v249
  %v251 = vmul.f32 %v248, 1.442695
  %v252 = vpow.pop %v251
  %v253 = vmul.f32 %v245, %v250
  %v254 = vmul.f32 %v246, %v252
  %256 = vset.pattern.permute.xlu0 0
  %257 = vperm.xlu0 %256, %v243
  %v258 = vpop.permute.xlu0 %257
  %261 = vset.pattern.permute.xlu0 0
  %262 = vperm.xlu0 %261, %v244
  %v263 = vpop.permute.xlu0 %262
  %v265 = vsub.f32 %v227, %v258
  %v266 = vsub.f32 %v229, %v258
  %v267 = vsub.f32 %v231, %v263
  %v268 = vsub.f32 %v233, %v263
  %v269 = vmul.f32 %v265, 1.442695
  %v270 = vpow.pop %v269
  %v271 = vmul.f32 %v266, 1.442695
  %v272 = vpow.pop %v271
  %v273 = vmul.f32 %v267, 1.442695
  %v274 = vpow.pop %v273
  %v275 = vmul.f32 %v268, 1.442695
  %v276 = vpow.pop %v275
  %v277 = vadd.f32 %v270, %v272
  %278 = vadd.xlane.f32.xlu0 %v277
  %v279 = vpop.xlane.xlu0 %278
  %v280 = vadd.f32 %v274, %v276
  %281 = vadd.xlane.f32.xlu0 %v280
  %v282 = vpop.xlane.xlu0 %281
  %v283 = vadd.f32 %v253, %v279
  %v284 = vadd.f32 %v254, %v282
  %vm285 = vcmask 7168
  %286 = vst.msk [vmem:[#allocation4] sm:$0xff] %vm285, %v283
  %287 = vst.msk [vmem:[#allocation4 + $0x8] sm:$0xff] %vm285, %v284
  %288 = vst.msk [vmem:[#allocation3] sm:$0xff] %vm285, %v243
  %289 = vst.msk [vmem:[#allocation3 + $0x8] sm:$0xff] %vm285, %v244
  // Predicated region
  $region26: #{encoder_forward.27} parent=0 // pred_check
    %p290 = pneg %p25
  $region27: #{encoder_forward.27} parent=0 // pred_check_branch
    %292 = sbr.rel (%p290) target = $region29
  $region28: #{encoder_forward.27} parent=0 // pred_region
    %293 = vst [vmem:[%s6] sm:$0xff] %v227
    %294 = vst [vmem:[%s6 + $0x8] sm:$0xff] %v229
    %295 = vst [vmem:[%s6 + $0x10] sm:$0xff] %v231
    %296 = vst [vmem:[%s6 + $0x18] sm:$0xff] %v233
    %v297 = vld [vmem:[#allocation3] sm:$0xff]
    %v298 = vld [vmem:[#allocation3 + $0x8] sm:$0xff]
    %v299 = vld [vmem:[#allocation4] sm:$0xff]
    %v300 = vld [vmem:[#allocation4 + $0x8] sm:$0xff]
    %v301 = vlog2.pop %v299
    %v302 = vmul.f32 %v301, 0.6931472
    %v303 = vlog2.pop %v300
    %v304 = vmul.f32 %v303, 0.6931472
    %v305 = vadd.f32 %v297, %v302
    %v306 = vadd.f32 %v298, %v304
    %v307 = vld [vmem:[%s6] sm:$0xff]
    %v308 = vld [vmem:[%s6 + $0x8] sm:$0xff]
    %v309 = vld [vmem:[%s6 + $0x10] sm:$0xff]
    %v310 = vld [vmem:[%s6 + $0x18] sm:$0xff]
    %312 = vset.pattern.permute.xlu0 0
    %313 = vperm.xlu0 %312, %v305
    %v314 = vpop.permute.xlu0 %313
    %317 = vset.pattern.permute.xlu0 0
    %318 = vperm.xlu0 %317, %v306
    %v319 = vpop.permute.xlu0 %318
    %v321 = vsub.f32 %v307, %v314
    %v322 = vsub.f32 %v308, %v314
    %v323 = vsub.f32 %v309, %v319
    %v324 = vsub.f32 %v310, %v319
    %325 = vst [vmem:[%s6] sm:$0xff] %v321
    %326 = vst [vmem:[%s6 + $0x8] sm:$0xff] %v322
    %327 = vst [vmem:[%s6 + $0x10] sm:$0xff] %v323
    %328 = vst [vmem:[%s6 + $0x18] sm:$0xff] %v324
    %v329 = vlaneseq
    %v330 = vand.u32 %v329, 127
    %v331 = vadd.s32 %v330, 128
    %v332 = vmax.f32 %v321, %v322
    %333 = vmax.xlane.f32.xlu0 %v332
    %v334 = vpop.xlane.xlu0 %333
    %v335 = vmax.f32 %v323, %v324
    %336 = vmax.xlane.f32.xlu0 %v335
    %v337 = vpop.xlane.xlu0 %336
    %vm338 = vcmp.eq.f32.partialorder %v321, %v334
    %vm339 = vcmp.eq.f32.partialorder %v322, %v334
    %vm340 = vcmp.eq.f32.partialorder %v323, %v337
    %vm341 = vcmp.eq.f32.partialorder %v324, %v337
    %v342 = vsel %vm338, %v330, 256
    %v343 = vsel %vm339, %v331, 256
    %v344 = vsel %vm340, %v330, 256
    %v345 = vsel %vm341, %v331, 256
    %vm346 = vcmp.lt.s32.totalorder %v342, %v343
    %v347 = vsel %vm346, %v342, %v343
    %v348 = vand.u32 %v347, 65535
    %v349 = vshra.s32 %v347, 16
    %v350 = vcvt.s32.f32 %v348
    %v351 = vcvt.s32.f32 %v349
    %352 = vmin.xlane.f32.xlu0 %v351
    %v353 = vpop.xlane.xlu0 %352
    %vm354 = vcmp.eq.f32.partialorder %v351, %v353
    %v355 = vsel %vm354, %v350, inf
    %356 = vmin.xlane.f32.xlu0 %v355
    %v357 = vpop.xlane.xlu0 %356
    %v358 = vcvt.f32.s32 %v357
    %v359 = vcvt.f32.s32 %v353
    %v360 = vshll.u32 %v359, 16
    %v361 = vadd.s32 %v360, %v358
    %vm362 = vcmp.lt.s32.totalorder %v344, %v345
    %v363 = vsel %vm362, %v344, %v345
    %v364 = vand.u32 %v363, 65535
    %v365 = vshra.s32 %v363, 16
    %v366 = vcvt.s32.f32 %v364
    %v367 = vcvt.s32.f32 %v365
    %368 = vmin.xlane.f32.xlu0 %v367
    %v369 = vpop.xlane.xlu0 %368
    %vm370 = vcmp.eq.f32.partialorder %v367, %v369
    %v371 = vsel %vm370, %v366, inf
    %372 = vmin.xlane.f32.xlu0 %v371
    %v373 = vpop.xlane.xlu0 %372
    %v374 = vcvt.f32.s32 %v373
    %v375 = vcvt.f32.s32 %v369
    %v376 = vshll.u32 %v375, 16
    %v377 = vadd.s32 %v376, %v374
    %vm378 = vcmp.eq.s32.totalorder %v330, %v361
    %vm379 = vcmp.eq.s32.totalorder %v331, %v361
    %vm380 = vcmp.eq.s32.totalorder %v330, %v377
    %vm381 = vcmp.eq.s32.totalorder %v331, %v377
    %v382 = vsel %vm378, -inf, %v321
    %v383 = vsel %vm379, -inf, %v322
    %v384 = vsel %vm380, -inf, %v323
    %v385 = vsel %vm381, -inf, %v324
    %v386 = vmax.f32 %v382, %v383
    %387 = vmax.xlane.f32.xlu0 %v386
    %v388 = vpop.xlane.xlu0 %387
    %v389 = vmax.f32 %v384, %v385
    %390 = vmax.xlane.f32.xlu0 %v389
    %v391 = vpop.xlane.xlu0 %390
    %vm392 = vcmp.eq.f32.partialorder %v382, %v388
    %vm393 = vcmp.eq.f32.partialorder %v383, %v388
    %vm394 = vcmp.eq.f32.partialorder %v384, %v391
    %vm395 = vcmp.eq.f32.partialorder %v385, %v391
    %v396 = vsel %vm392, %v330, 256
    %v397 = vsel %vm393, %v331, 256
    %v398 = vsel %vm394, %v330, 256
    %v399 = vsel %vm395, %v331, 256
    %vm400 = vcmp.lt.s32.totalorder %v396, %v397
    %v401 = vsel %vm400, %v396, %v397
    %v402 = vand.u32 %v401, 65535
    %v403 = vshra.s32 %v401, 16
    %v404 = vcvt.s32.f32 %v402
    %v405 = vcvt.s32.f32 %v403
    %406 = vmin.xlane.f32.xlu0 %v405
    %v407 = vpop.xlane.xlu0 %406
    %vm408 = vcmp.eq.f32.partialorder %v405, %v407
    %v409 = vsel %vm408, %v404, inf
    %410 = vmin.xlane.f32.xlu0 %v409
    %v411 = vpop.xlane.xlu0 %410
    %v412 = vcvt.f32.s32 %v411
    %v413 = vcvt.f32.s32 %v407
    %v414 = vshll.u32 %v413, 16
    %v415 = vadd.s32 %v414, %v412
    %vm416 = vcmp.lt.s32.totalorder %v398, %v399
    %v417 = vsel %vm416, %v398, %v399
    %v418 = vand.u32 %v417, 65535
    %v419 = vshra.s32 %v417, 16
    %v420 = vcvt.s32.f32 %v418
    %v421 = vcvt.s32.f32 %v419
    %422 = vmin.xlane.f32.xlu0 %v421
    %v423 = vpop.xlane.xlu0 %422
    %vm424 = vcmp.eq.f32.partialorder %v421, %v423
    %v425 = vsel %vm424, %v420, inf
    %426 = vmin.xlane.f32.xlu0 %v425
    %v427 = vpop.xlane.xlu0 %426
    %v428 = vcvt.f32.s32 %v427
    %v429 = vcvt.f32.s32 %v423
    %v430 = vshll.u32 %v429, 16
    %v431 = vadd.s32 %v430, %v428
    %vm432 = vcmp.eq.s32.totalorder %v330, %v415
    %vm433 = vcmp.eq.s32.totalorder %v331, %v415
    %vm434 = vcmp.eq.s32.totalorder %v330, %v431
    %vm435 = vcmp.eq.s32.totalorder %v331, %v431
    %v436 = vsel %vm432, -inf, %v382
    %v437 = vsel %vm433, -inf, %v383
    %v438 = vsel %vm434, -inf, %v384
    %v439 = vsel %vm435, -inf, %v385
    %v440 = vmax.f32 %v436, %v437
    %441 = vmax.xlane.f32.xlu0 %v440
    %v442 = vpop.xlane.xlu0 %441
    %v443 = vmax.f32 %v438, %v439
    %444 = vmax.xlane.f32.xlu0 %v443
    %v445 = vpop.xlane.xlu0 %444
    %vm446 = vcmp.eq.f32.partialorder %v436, %v442
    %vm447 = vcmp.eq.f32.partialorder %v437, %v442
    %vm448 = vcmp.eq.f32.partialorder %v438, %v445
    %vm449 = vcmp.eq.f32.partialorder %v439, %v445
    %v450 = vsel %vm446, %v330, 256
    %v451 = vsel %vm447, %v331, 256
    %v452 = vsel %vm448, %v330, 256
    %v453 = vsel %vm449, %v331, 256
    %vm454 = vcmp.lt.s32.totalorder %v450, %v451
    %v455 = vsel %vm454, %v450, %v451
    %v456 = vand.u32 %v455, 65535
    %v457 = vshra.s32 %v455, 16
    %v458 = vcvt.s32.f32 %v456
    %v459 = vcvt.s32.f32 %v457
    %460 = vmin.xlane.f32.xlu0 %v459
    %v461 = vpop.xlane.xlu0 %460
    %vm462 = vcmp.eq.f32.partialorder %v459, %v461
    %v463 = vsel %vm462, %v458, inf
    %464 = vmin.xlane.f32.xlu0 %v463
    %v465 = vpop.xlane.xlu0 %464
    %v466 = vcvt.f32.s32 %v465
    %v467 = vcvt.f32.s32 %v461
    %v468 = vshll.u32 %v467, 16
    %v469 = vadd.s32 %v468, %v466
    %vm470 = vcmp.lt.s32.totalorder %v452, %v453
    %v471 = vsel %vm470, %v452, %v453
    %v472 = vand.u32 %v471, 65535
    %v473 = vshra.s32 %v471, 16
    %v474 = vcvt.s32.f32 %v472
    %v475 = vcvt.s32.f32 %v473
    %476 = vmin.xlane.f32.xlu0 %v475
    %v477 = vpop.xlane.xlu0 %476
    %vm478 = vcmp.eq.f32.partialorder %v475, %v477
    %v479 = vsel %vm478, %v474, inf
    %480 = vmin.xlane.f32.xlu0 %v479
    %v481 = vpop.xlane.xlu0 %480
    %v482 = vcvt.f32.s32 %v481
    %v483 = vcvt.f32.s32 %v477
    %v484 = vshll.u32 %v483, 16
    %v485 = vadd.s32 %v484, %v482
    %vm486 = vcmp.eq.s32.totalorder %v330, %v469
    %vm487 = vcmp.eq.s32.totalorder %v331, %v469
    %vm488 = vcmp.eq.s32.totalorder %v330, %v485
    %vm489 = vcmp.eq.s32.totalorder %v331, %v485
    %v490 = vsel %vm486, -inf, %v436
    %v491 = vsel %vm487, -inf, %v437
    %v492 = vsel %vm488, -inf, %v438
    %v493 = vsel %vm489, -inf, %v439
    %v494 = vmax.f32 %v490, %v491
    %495 = vmax.xlane.f32.xlu0 %v494
    %v496 = vpop.xlane.xlu0 %495
    %v497 = vmax.f32 %v492, %v493
    %498 = vmax.xlane.f32.xlu0 %v497
    %v499 = vpop.xlane.xlu0 %498
    %vm500 = vcmp.eq.f32.partialorder %v490, %v496
    %vm501 = vcmp.eq.f32.partialorder %v491, %v496
    %vm502 = vcmp.eq.f32.partialorder %v492, %v499
    %vm503 = vcmp.eq.f32.partialorder %v493, %v499
    %v504 = vsel %vm500, %v330, 256
    %v505 = vsel %vm501, %v331, 256
    %v506 = vsel %vm502, %v330, 256
    %v507 = vsel %vm503, %v331, 256
    %vm508 = vcmp.lt.s32.totalorder %v504, %v505
    %v509 = vsel %vm508, %v504, %v505
    %v510 = vand.u32 %v509, 65535
    %v511 = vshra.s32 %v509, 16
    %v512 = vcvt.s32.f32 %v510
    %v513 = vcvt.s32.f32 %v511
    %514 = vmin.xlane.f32.xlu0 %v513
    %v515 = vpop.xlane.xlu0 %514
    %vm516 = vcmp.eq.f32.partialorder %v513, %v515
    %v517 = vsel %vm516, %v512, inf
    %518 = vmin.xlane.f32.xlu0 %v517
    %v519 = vpop.xlane.xlu0 %518
    %v520 = vcvt.f32.s32 %v519
    %v521 = vcvt.f32.s32 %v515
    %v522 = vshll.u32 %v521, 16
    %v523 = vadd.s32 %v522, %v520
    %vm524 = vcmp.lt.s32.totalorder %v506, %v507
    %v525 = vsel %vm524, %v506, %v507
    %v526 = vand.u32 %v525, 65535
    %v527 = vshra.s32 %v525, 16
    %v528 = vcvt.s32.f32 %v526
    %v529 = vcvt.s32.f32 %v527
    %530 = vmin.xlane.f32.xlu0 %v529
    %v531 = vpop.xlane.xlu0 %530
    %vm532 = vcmp.eq.f32.partialorder %v529, %v531
    %v533 = vsel %vm532, %v528, inf
    %534 = vmin.xlane.f32.xlu0 %v533
    %v535 = vpop.xlane.xlu0 %534
    %v536 = vcvt.f32.s32 %v535
    %v537 = vcvt.f32.s32 %v531
    %v538 = vshll.u32 %v537, 16
    %v539 = vadd.s32 %v538, %v536
    %vm540 = vcmp.eq.s32.totalorder %v330, %v523
    %vm541 = vcmp.eq.s32.totalorder %v331, %v523
    %vm542 = vcmp.eq.s32.totalorder %v330, %v539
    %vm543 = vcmp.eq.s32.totalorder %v331, %v539
    %v544 = vsel %vm540, -inf, %v490
    %v545 = vsel %vm541, -inf, %v491
    %v546 = vsel %vm542, -inf, %v492
    %v547 = vsel %vm543, -inf, %v493
    %v548 = vmax.f32 %v544, %v545
    %549 = vmax.xlane.f32.xlu0 %v548
    %v550 = vpop.xlane.xlu0 %549
    %v551 = vmax.f32 %v546, %v547
    %552 = vmax.xlane.f32.xlu0 %v551
    %v553 = vpop.xlane.xlu0 %552
    %vm554 = vcmp.eq.f32.partialorder %v544, %v550
    %vm555 = vcmp.eq.f32.partialorder %v545, %v550
    %vm556 = vcmp.eq.f32.partialorder %v546, %v553
    %vm557 = vcmp.eq.f32.partialorder %v547, %v553
    %v558 = vsel %vm554, %v330, 256
    %v559 = vsel %vm555, %v331, 256
    %v560 = vsel %vm556, %v330, 256
    %v561 = vsel %vm557, %v331, 256
    %vm562 = vcmp.lt.s32.totalorder %v558, %v559
    %v563 = vsel %vm562, %v558, %v559
    %v564 = vand.u32 %v563, 65535
    %v565 = vshra.s32 %v563, 16
    %v566 = vcvt.s32.f32 %v564
    %v567 = vcvt.s32.f32 %v565
    %568 = vmin.xlane.f32.xlu0 %v567
    %v569 = vpop.xlane.xlu0 %568
    %vm570 = vcmp.eq.f32.partialorder %v567, %v569
    %v571 = vsel %vm570, %v566, inf
    %572 = vmin.xlane.f32.xlu0 %v571
    %v573 = vpop.xlane.xlu0 %572
    %v574 = vcvt.f32.s32 %v573
    %v575 = vcvt.f32.s32 %v569
    %v576 = vshll.u32 %v575, 16
    %v577 = vadd.s32 %v576, %v574
    %vm578 = vcmp.lt.s32.totalorder %v560, %v561
    %v579 = vsel %vm578, %v560, %v561
    %v580 = vand.u32 %v579, 65535
    %v581 = vshra.s32 %v579, 16
    %v582 = vcvt.s32.f32 %v580
    %v583 = vcvt.s32.f32 %v581
    %584 = vmin.xlane.f32.xlu0 %v583
    %v585 = vpop.xlane.xlu0 %584
    %vm586 = vcmp.eq.f32.partialorder %v583, %v585
    %v587 = vsel %vm586, %v582, inf
    %588 = vmin.xlane.f32.xlu0 %v587
    %v589 = vpop.xlane.xlu0 %588
    %v590 = vcvt.f32.s32 %v589
    %v591 = vcvt.f32.s32 %v585
    %v592 = vshll.u32 %v591, 16
    %v593 = vadd.s32 %v592, %v590
    %vm594 = vcmp.eq.s32.totalorder %v330, %v577
    %vm595 = vcmp.eq.s32.totalorder %v331, %v577
    %vm596 = vcmp.eq.s32.totalorder %v330, %v593
    %vm597 = vcmp.eq.s32.totalorder %v331, %v593
    %v598 = vsel %vm594, -inf, %v544
    %v599 = vsel %vm595, -inf, %v545
    %v600 = vsel %vm596, -inf, %v546
    %v601 = vsel %vm597, -inf, %v547
    %v602 = vmax.f32 %v598, %v599
    %603 = vmax.xlane.f32.xlu0 %v602
    %v604 = vpop.xlane.xlu0 %603
    %v605 = vmax.f32 %v600, %v601
    %606 = vmax.xlane.f32.xlu0 %v605
    %v607 = vpop.xlane.xlu0 %606
    %vm608 = vcmp.eq.f32.partialorder %v598, %v604
    %vm609 = vcmp.eq.f32.partialorder %v599, %v604
    %vm610 = vcmp.eq.f32.partialorder %v600, %v607
    %vm611 = vcmp.eq.f32.partialorder %v601, %v607
    %v612 = vsel %vm608, %v330, 256
    %v613 = vsel %vm609, %v331, 256
    %v614 = vsel %vm610, %v330, 256
    %v615 = vsel %vm611, %v331, 256
    %vm616 = vcmp.lt.s32.totalorder %v612, %v613
    %v617 = vsel %vm616, %v612, %v613
    %v618 = vand.u32 %v617, 65535
    %v619 = vshra.s32 %v617, 16
    %v620 = vcvt.s32.f32 %v618
    %v621 = vcvt.s32.f32 %v619
    %622 = vmin.xlane.f32.xlu0 %v621
    %v623 = vpop.xlane.xlu0 %622
    %vm624 = vcmp.eq.f32.partialorder %v621, %v623
    %v625 = vsel %vm624, %v620, inf
    %626 = vmin.xlane.f32.xlu0 %v625
    %v627 = vpop.xlane.xlu0 %626
    %v628 = vcvt.f32.s32 %v627
    %v629 = vcvt.f32.s32 %v623
    %v630 = vshll.u32 %v629, 16
    %v631 = vadd.s32 %v630, %v628
    %vm632 = vcmp.lt.s32.totalorder %v614, %v615
    %v633 = vsel %vm632, %v614, %v615
    %v634 = vand.u32 %v633, 65535
    %v635 = vshra.s32 %v633, 16
    %v636 = vcvt.s32.f32 %v634
    %v637 = vcvt.s32.f32 %v635
    %638 = vmin.xlane.f32.xlu0 %v637
    %v639 = vpop.xlane.xlu0 %638
    %vm640 = vcmp.eq.f32.partialorder %v637, %v639
    %v641 = vsel %vm640, %v636, inf
    %642 = vmin.xlane.f32.xlu0 %v641
    %v643 = vpop.xlane.xlu0 %642
    %v644 = vcvt.f32.s32 %v643
    %v645 = vcvt.f32.s32 %v639
    %v646 = vshll.u32 %v645, 16
    %v647 = vadd.s32 %v646, %v644
    %vm648 = vcmp.eq.s32.totalorder %v330, %v631
    %vm649 = vcmp.eq.s32.totalorder %v331, %v631
    %vm650 = vcmp.eq.s32.totalorder %v330, %v647
    %vm651 = vcmp.eq.s32.totalorder %v331, %v647
    %v652 = vsel %vm648, -inf, %v598
    %v653 = vsel %vm649, -inf, %v599
    %v654 = vsel %vm650, -inf, %v600
    %v655 = vsel %vm651, -inf, %v601
    %v656 = vmax.f32 %v652, %v653
    %657 = vmax.xlane.f32.xlu0 %v656
    %v658 = vpop.xlane.xlu0 %657
    %v659 = vmax.f32 %v654, %v655
    %660 = vmax.xlane.f32.xlu0 %v659
    %v661 = vpop.xlane.xlu0 %660
    %vm662 = vcmp.eq.f32.partialorder %v652, %v658
    %vm663 = vcmp.eq.f32.partialorder %v653, %v658
    %vm664 = vcmp.eq.f32.partialorder %v654, %v661
    %vm665 = vcmp.eq.f32.partialorder %v655, %v661
    %v666 = vsel %vm662, %v330, 256
    %v667 = vsel %vm663, %v331, 256
    %v668 = vsel %vm664, %v330, 256
    %v669 = vsel %vm665, %v331, 256
    %vm670 = vcmp.lt.s32.totalorder %v666, %v667
    %v671 = vsel %vm670, %v666, %v667
    %v672 = vand.u32 %v671, 65535
    %v673 = vshra.s32 %v671, 16
    %v674 = vcvt.s32.f32 %v672
    %v675 = vcvt.s32.f32 %v673
    %676 = vmin.xlane.f32.xlu0 %v675
    %v677 = vpop.xlane.xlu0 %676
    %vm678 = vcmp.eq.f32.partialorder %v675, %v677
    %v679 = vsel %vm678, %v674, inf
    %680 = vmin.xlane.f32.xlu0 %v679
    %v681 = vpop.xlane.xlu0 %680
    %v682 = vcvt.f32.s32 %v681
    %v683 = vcvt.f32.s32 %v677
    %v684 = vshll.u32 %v683, 16
    %v685 = vadd.s32 %v684, %v682
    %vm686 = vcmp.lt.s32.totalorder %v668, %v669
    %v687 = vsel %vm686, %v668, %v669
    %v688 = vand.u32 %v687, 65535
    %v689 = vshra.s32 %v687, 16
    %v690 = vcvt.s32.f32 %v688
    %v691 = vcvt.s32.f32 %v689
    %692 = vmin.xlane.f32.xlu0 %v691
    %v693 = vpop.xlane.xlu0 %692
    %vm694 = vcmp.eq.f32.partialorder %v691, %v693
    %v695 = vsel %vm694, %v690, inf
    %696 = vmin.xlane.f32.xlu0 %v695
    %v697 = vpop.xlane.xlu0 %696
    %v698 = vcvt.f32.s32 %v697
    %v699 = vcvt.f32.s32 %v693
    %v700 = vshll.u32 %v699, 16
    %v701 = vadd.s32 %v700, %v698
    %vm702 = vcmp.eq.s32.totalorder %v330, %v685
    %vm703 = vcmp.eq.s32.totalorder %v331, %v685
    %vm704 = vcmp.eq.s32.totalorder %v330, %v701
    %vm705 = vcmp.eq.s32.totalorder %v331, %v701
    %v706 = vsel %vm702, -inf, %v652
    %v707 = vsel %vm703, -inf, %v653
    %v708 = vsel %vm704, -inf, %v654
    %v709 = vsel %vm705, -inf, %v655
    %v710 = vmax.f32 %v706, %v707
    %711 = vmax.xlane.f32.xlu0 %v710
    %v712 = vpop.xlane.xlu0 %711
    %v713 = vmax.f32 %v708, %v709
    %714 = vmax.xlane.f32.xlu0 %v713
    %v715 = vpop.xlane.xlu0 %714
    %vm716 = vcmp.eq.f32.partialorder %v706, %v712
    %vm717 = vcmp.eq.f32.partialorder %v707, %v712
    %vm718 = vcmp.eq.f32.partialorder %v708, %v715
    %vm719 = vcmp.eq.f32.partialorder %v709, %v715
    %v720 = vsel %vm716, %v330, 256
    %v721 = vsel %vm717, %v331, 256
    %v722 = vsel %vm718, %v330, 256
    %v723 = vsel %vm719, %v331, 256
    %vm724 = vcmp.lt.s32.totalorder %v720, %v721
    %v725 = vsel %vm724, %v720, %v721
    %v726 = vand.u32 %v725, 65535
    %v727 = vshra.s32 %v725, 16
    %v728 = vcvt.s32.f32 %v726
    %v729 = vcvt.s32.f32 %v727
    %730 = vmin.xlane.f32.xlu0 %v729
    %v731 = vpop.xlane.xlu0 %730
    %vm732 = vcmp.eq.f32.partialorder %v729, %v731
    %v733 = vsel %vm732, %v728, inf
    %734 = vmin.xlane.f32.xlu0 %v733
    %v735 = vpop.xlane.xlu0 %734
    %v736 = vcvt.f32.s32 %v735
    %v737 = vcvt.f32.s32 %v731
    %v738 = vshll.u32 %v737, 16
    %v739 = vadd.s32 %v738, %v736
    %vm740 = vcmp.lt.s32.totalorder %v722, %v723
    %v741 = vsel %vm740, %v722, %v723
    %v742 = vand.u32 %v741, 65535
    %v743 = vshra.s32 %v741, 16
    %v744 = vcvt.s32.f32 %v742
    %v745 = vcvt.s32.f32 %v743
    %746 = vmin.xlane.f32.xlu0 %v745
    %v747 = vpop.xlane.xlu0 %746
    %vm748 = vcmp.eq.f32.partialorder %v745, %v747
    %v749 = vsel %vm748, %v744, inf
    %750 = vmin.xlane.f32.xlu0 %v749
    %v751 = vpop.xlane.xlu0 %750
    %v752 = vcvt.f32.s32 %v751
    %v753 = vcvt.f32.s32 %v747
    %v754 = vshll.u32 %v753, 16
    %v755 = vadd.s32 %v754, %v752
    %vm756 = vcmp.eq.s32.totalorder %v330, %v739
    %vm757 = vcmp.eq.s32.totalorder %v331, %v739
    %vm758 = vcmp.eq.s32.totalorder %v330, %v755
    %vm759 = vcmp.eq.s32.totalorder %v331, %v755
    %v760 = vsel %vm756, -inf, %v706
    %v761 = vsel %vm757, -inf, %v707
    %v762 = vsel %vm758, -inf, %v708
    %v763 = vsel %vm759, -inf, %v709
    %v764 = vmax.f32 %v760, %v761
    %765 = vmax.xlane.f32.xlu0 %v764
    %v766 = vpop.xlane.xlu0 %765
    %v767 = vmax.f32 %v762, %v763
    %768 = vmax.xlane.f32.xlu0 %v767
    %v769 = vpop.xlane.xlu0 %768
    %vm770 = vcmp.eq.f32.partialorder %v760, %v766
    %vm771 = vcmp.eq.f32.partialorder %v761, %v766
    %vm772 = vcmp.eq.f32.partialorder %v762, %v769
    %vm773 = vcmp.eq.f32.partialorder %v763, %v769
    %v774 = vsel %vm770, %v330, 256
    %v775 = vsel %vm771, %v331, 256
    %v776 = vsel %vm772, %v330, 256
    %v777 = vsel %vm773, %v331, 256
    %vm778 = vcmp.lt.s32.totalorder %v774, %v775
    %v779 = vsel %vm778, %v774, %v775
    %v780 = vand.u32 %v779, 65535
    %v781 = vshra.s32 %v779, 16
    %v782 = vcvt.s32.f32 %v780
    %v783 = vcvt.s32.f32 %v781
    %784 = vmin.xlane.f32.xlu0 %v783
    %v785 = vpop.xlane.xlu0 %784
    %vm786 = vcmp.eq.f32.partialorder %v783, %v785
    %v787 = vsel %vm786, %v782, inf
    %788 = vmin.xlane.f32.xlu0 %v787
    %v789 = vpop.xlane.xlu0 %788
    %v790 = vcvt.f32.s32 %v789
    %v791 = vcvt.f32.s32 %v785
    %v792 = vshll.u32 %v791, 16
    %v793 = vadd.s32 %v792, %v790
    %vm794 = vcmp.lt.s32.totalorder %v776, %v777
    %v795 = vsel %vm794, %v776, %v777
    %v796 = vand.u32 %v795, 65535
    %v797 = vshra.s32 %v795, 16
    %v798 = vcvt.s32.f32 %v796
    %v799 = vcvt.s32.f32 %v797
    %800 = vmin.xlane.f32.xlu0 %v799
    %v801 = vpop.xlane.xlu0 %800
    %vm802 = vcmp.eq.f32.partialorder %v799, %v801
    %v803 = vsel %vm802, %v798, inf
    %804 = vmin.xlane.f32.xlu0 %v803
    %v805 = vpop.xlane.xlu0 %804
    %v806 = vcvt.f32.s32 %v805
    %v807 = vcvt.f32.s32 %v801
    %v808 = vshll.u32 %v807, 16
    %v809 = vadd.s32 %v808, %v806
    %vm810 = vcmp.eq.s32.totalorder %v330, %v793
    %vm811 = vcmp.eq.s32.totalorder %v331, %v793
    %vm812 = vcmp.eq.s32.totalorder %v330, %v809
    %vm813 = vcmp.eq.s32.totalorder %v331, %v809
    %v814 = vsel %vm810, -inf, %v760
    %v815 = vsel %vm811, -inf, %v761
    %v816 = vsel %vm812, -inf, %v762
    %v817 = vsel %vm813, -inf, %v763
    %v818 = vmax.f32 %v814, %v815
    %819 = vmax.xlane.f32.xlu0 %v818
    %v820 = vpop.xlane.xlu0 %819
    %v821 = vmax.f32 %v816, %v817
    %822 = vmax.xlane.f32.xlu0 %v821
    %v823 = vpop.xlane.xlu0 %822
    %vm824 = vcmp.eq.f32.partialorder %v814, %v820
    %vm825 = vcmp.eq.f32.partialorder %v815, %v820
    %vm826 = vcmp.eq.f32.partialorder %v816, %v823
    %vm827 = vcmp.eq.f32.partialorder %v817, %v823
    %v828 = vsel %vm824, %v330, 256
    %v829 = vsel %vm825, %v331, 256
    %v830 = vsel %vm826, %v330, 256
    %v831 = vsel %vm827, %v331, 256
    %vm832 = vcmp.lt.s32.totalorder %v828, %v829
    %v833 = vsel %vm832, %v828, %v829
    %v834 = vand.u32 %v833, 65535
    %v835 = vshra.s32 %v833, 16
    %v836 = vcvt.s32.f32 %v834
    %v837 = vcvt.s32.f32 %v835
    %838 = vmin.xlane.f32.xlu0 %v837
    %v839 = vpop.xlane.xlu0 %838
    %vm840 = vcmp.eq.f32.partialorder %v837, %v839
    %v841 = vsel %vm840, %v836, inf
    %842 = vmin.xlane.f32.xlu0 %v841
    %v843 = vpop.xlane.xlu0 %842
    %v844 = vcvt.f32.s32 %v843
    %v845 = vcvt.f32.s32 %v839
    %v846 = vshll.u32 %v845, 16
    %v847 = vadd.s32 %v846, %v844
    %vm848 = vcmp.lt.s32.totalorder %v830, %v831
    %v849 = vsel %vm848, %v830, %v831
    %v850 = vand.u32 %v849, 65535
    %v851 = vshra.s32 %v849, 16
    %v852 = vcvt.s32.f32 %v850
    %v853 = vcvt.s32.f32 %v851
    %854 = vmin.xlane.f32.xlu0 %v853
    %v855 = vpop.xlane.xlu0 %854
    %vm856 = vcmp.eq.f32.partialorder %v853, %v855
    %v857 = vsel %vm856, %v852, inf
    %858 = vmin.xlane.f32.xlu0 %v857
    %v859 = vpop.xlane.xlu0 %858
    %v860 = vcvt.f32.s32 %v859
    %v861 = vcvt.f32.s32 %v855
    %v862 = vshll.u32 %v861, 16
    %v863 = vadd.s32 %v862, %v860
    %v864 = vsel %vm285, %v334, %v388
    %v865 = vsel %vm285, %v337, %v391
    %vm866 = vcmask 15360
    %v867 = vsel %vm866, %v864, %v442
    %v868 = vsel %vm866, %v865, %v445
    %vm869 = vcmask 23552
    %v870 = vsel %vm869, %v867, %v496
    %v871 = vsel %vm869, %v868, %v499
    %vm872 = vcmask 31744
    %v873 = vsel %vm872, %v870, %v550
    %v874 = vsel %vm872, %v871, %v553
    %vm875 = vcmask 39936
    %v876 = vsel %vm875, %v873, %v604
    %v877 = vsel %vm875, %v874, %v607
    %vm878 = vcmask 48128
    %v879 = vsel %vm878, %v876, %v658
    %v880 = vsel %vm878, %v877, %v661
    %vm881 = vcmask 56320
    %v882 = vsel %vm881, %v879, %v712
    %v883 = vsel %vm881, %v880, %v715
    %vm884 = vcmask 64512
    %v885 = vsel %vm884, %v882, %v766
    %v886 = vsel %vm884, %v883, %v769
    %vm887 = vcmask 72704
    %v888 = vsel %vm887, %v885, %v820
    %v889 = vsel %vm887, %v886, %v823
    %vm890 = vcmask 80896
    %891 = vst.msk [vmem:[%s7] sm:$0xff] %vm890, %v888
    %892 = vst.msk [vmem:[%s7 + $0x8] sm:$0xff] %vm890, %v889
    %v893 = vsel %vm285, %v361, %v415
    %v894 = vsel %vm285, %v377, %v431
    %v895 = vsel %vm866, %v893, %v469
    %v896 = vsel %vm866, %v894, %v485
    %v897 = vsel %vm869, %v895, %v523
    %v898 = vsel %vm869, %v896, %v539
    %v899 = vsel %vm872, %v897, %v577
    %v900 = vsel %vm872, %v898, %v593
    %v901 = vsel %vm875, %v899, %v631
    %v902 = vsel %vm875, %v900, %v647
    %v903 = vsel %vm878, %v901, %v685
    %v904 = vsel %vm878, %v902, %v701
    %v905 = vsel %vm881, %v903, %v739
    %v906 = vsel %vm881, %v904, %v755
    %v907 = vsel %vm884, %v905, %v793
    %v908 = vsel %vm884, %v906, %v809
    %v909 = vsel %vm887, %v907, %v847
    %v910 = vsel %vm887, %v908, %v863
    %911 = vst.msk [vmem:[%s8] sm:$0xff] %vm890, %v909
    %912 = vst.msk [vmem:[%s8 + $0x8] sm:$0xff] %vm890, %v910
  $region29: #{encoder_forward.27} parent=0 // pred_fallthru
    _
  // Predicated region
  $region30: #{encoder_forward.27} parent=0 // pred_check
    _
  $region31: #{encoder_forward.27} parent=0 // pred_check_branch
    %914 = sbr.rel (0) target = $region33
  $region32: #{encoder_forward.27} parent=0 // pred_region
    _
  $region33: #{encoder_forward.27} parent=0 // pred_fallthru
    _
  // Predicated region
  $region34: #{encoder_forward.27} parent=0 // pred_check
    _
  $region35: #{encoder_forward.27} parent=0 // pred_check_branch
    %916 = sbr.rel (0) target = $region37
  $region36: #{encoder_forward.27} parent=0 // pred_region
    _
  $region37: #{encoder_forward.27} parent=0 // pred_fallthru
    _
  // Predicated region
  $region38: #{encoder_forward.27} parent=0 // pred_check
    _
  $region39: #{encoder_forward.27} parent=0 // pred_check_branch
    %918 = sbr.rel (0) target = $region41
  $region40: #{encoder_forward.27} parent=0 // pred_region
    _
  $region41: #{encoder_forward.27} parent=0 // pred_fallthru
    _
  // Predicated region
  $region42: #{encoder_forward.27} parent=0 // pred_check
    _
  $region43: #{encoder_forward.27} parent=0 // pred_check_branch
    %920 = sbr.rel (0) target = $region45
  $region44: #{encoder_forward.27} parent=0 // pred_region
    _
  $region45: #{encoder_forward.27} parent=0 // pred_fallthru
    _
  // Predicated region
  $region46: #{encoder_forward.27} parent=0 // pred_check
    _
  $region47: #{encoder_forward.27} parent=0 // pred_check_branch
    %922 = sbr.rel (0) target = $region49
  $region48: #{encoder_forward.27} parent=0 // pred_region
    _
  $region49: #{encoder_forward.27} parent=0 // pred_fallthru
    _
  // Predicated region
  $region50: #{encoder_forward.27} parent=0 // pred_check
    _
  $region51: #{encoder_forward.27} parent=0 // pred_check_branch
    %924 = sbr.rel (0) target = $region53
  $region52: #{encoder_forward.27} parent=0 // pred_region
    _
  $region53: #{encoder_forward.27} parent=0 // pred_fallthru
    _
  // Predicated region
  $region54: #{encoder_forward.27} parent=0 // pred_check
    _
  $region55: #{encoder_forward.27} parent=0 // pred_check_branch
    %926 = sbr.rel (0) target = $region57
  $region56: #{encoder_forward.27} parent=0 // pred_region
    _
  $region57: #{encoder_forward.27} parent=0 // pred_fallthru
    _
  // Predicated region
  $region58: #{encoder_forward.27} parent=0 // pred_check
    _
  $region59: #{encoder_forward.27} parent=0 // pred_check_branch
    %928 = sbr.rel (0) target = $region61
  $region60: #{encoder_forward.27} parent=0 // pred_region
    _
  $region61: #{encoder_forward.27} parent=0 // pred_fallthru
    _

</llo_original>
